<compile_context>
chip_gen: v7x
topology: tpu7x:2x2x1
jax: 0.10.0
libtpu: 0.0.40
codegen_flags: <defaults>
</compile_context>

<pallas_src>
import math

import jax
import jax.numpy as jnp
from jax.experimental import pallas as pl
from jax.experimental.pallas import tpu as pltpu

# ----------------------------- config (small synthetic shapes) ---------------
N_CLASSES     = 5                      # len(classes)
IM_SIZE       = 64
C_IN          = 3
PATCH         = 16                     # backbone stand-in: stride-16 patch conv
DOUT_BASE     = 16                     # dout_base_model
FEAT_HW       = IM_SIZE // PATCH       # 4
N_ANCH        = FEAT_HW * FEAT_HW      # 16 anchors / spatial positions
POOL          = 2                      # cfg.POOLING_SIZE
HEAD_DIM      = 32                     # _head_to_tail output dim
N_ROI         = 8
N_GT          = 4
ANCHOR_SIZE   = 32.0
SPATIAL_SCALE = 1.0 / float(PATCH)
DA_HID        = 32                     # hidden dim of ImageDA / InstanceDA
LANE          = 128                    # lane-dense output width
N_LOSS        = 8

PATCH_K = PATCH * PATCH * C_IN         # 768
COL_K   = 9 * DOUT_BASE                # 144
HEAD_K  = DOUT_BASE * POOL * POOL      # 64
BBOX_XFORM_CLIP = math.log(1000.0 / 16.0)

_PARALLEL = pltpu.CompilerParams(dimension_semantics=("parallel",))
_ARBITRARY = pltpu.CompilerParams(dimension_semantics=("arbitrary",))


# ======================= Pallas kernel 1: backbone + ImageDA ==================
def _backbone_da_kernel(patches_ref, base_w_ref, base_b_ref,
                        da1_w_ref, da1_b_ref, da2_w_ref, da2_b_ref,
                        feat_ref, dascore_ref):
    # backbone: relu(patches @ W + b) -> 128-wide padded slab (cols >= DOUT_BASE are 0)
    feat = jnp.dot(patches_ref[...], base_w_ref[...],
                   preferred_element_type=jnp.float32) + base_b_ref[...]
    feat = jnp.maximum(feat, 0.0)
    feat_ref[...] = feat
    # image-DA head on the resident feature map (zero-padded weight rows make the
    # padded feat columns inert).
    da1 = jnp.dot(feat.astype(jnp.bfloat16), da1_w_ref[...],
                  preferred_element_type=jnp.float32) + da1_b_ref[...]
    da1 = jnp.maximum(da1, 0.0)
    da2 = jnp.dot(da1.astype(jnp.bfloat16), da2_w_ref[...],
                  preferred_element_type=jnp.float32) + da2_b_ref[...]
    dascore_ref[...] = jax.nn.sigmoid(da2)


def backbone_da(kp, patches):
    """patches: (2, N_ANCH, PATCH_K) bf16 -> (feat_pad, da_score) each (2, N_ANCH, 128) f32."""
    two = patches.shape[0]
    return pl.pallas_call(
        _backbone_da_kernel,
        out_shape=(jax.ShapeDtypeStruct((two, N_ANCH, LANE), jnp.float32),
                   jax.ShapeDtypeStruct((two, N_ANCH, LANE), jnp.float32)),
        grid=(two,),
        in_specs=[
            pl.BlockSpec((None, N_ANCH, PATCH_K), lambda i: (i, 0, 0)),
            pl.BlockSpec((PATCH_K, LANE), lambda i: (0, 0)),
            pl.BlockSpec((1, LANE), lambda i: (0, 0)),
            pl.BlockSpec((LANE, DA_HID), lambda i: (0, 0)),
            pl.BlockSpec((1, DA_HID), lambda i: (0, 0)),
            pl.BlockSpec((DA_HID, LANE), lambda i: (0, 0)),
            pl.BlockSpec((1, LANE), lambda i: (0, 0)),
        ],
        out_specs=(pl.BlockSpec((None, N_ANCH, LANE), lambda i: (i, 0, 0)),
                   pl.BlockSpec((None, N_ANCH, LANE), lambda i: (i, 0, 0))),
        compiler_params=_PARALLEL,
    )(patches, kp["base_w_p"], kp["base_b_p"],
      kp["imgda1_w_p"], kp["imgda1_b"], kp["imgda2_w_p"], kp["imgda2_b_p"])


# ======================= Pallas kernel 2: fused RPN ===========================
def _rpn_kernel(col_ref, conv_w_ref, conv_b_ref, head_w_ref, head_b_ref, out_ref):
    feat = jnp.dot(col_ref[...], conv_w_ref[...],
                   preferred_element_type=jnp.float32) + conv_b_ref[...]
    feat = jnp.maximum(feat, 0.0)                                   # (N_ANCH, DOUT_BASE)
    out = jnp.dot(feat.astype(jnp.bfloat16), head_w_ref[...],
                  preferred_element_type=jnp.float32) + head_b_ref[...]   # (N_ANCH, 128)
    cidx = jax.lax.broadcasted_iota(jnp.int32, out.shape, 1)
    # col 0 = objectness (sigmoid), cols 1:5 = raw bbox deltas
    out_ref[...] = jnp.where(cidx == 0, jax.nn.sigmoid(out), out)


def rpn_heads(kp, col):
    """col: (2, N_ANCH, COL_K) bf16 -> (2, N_ANCH, 128) f32 [prob | deltas | pad]."""
    two = col.shape[0]
    return pl.pallas_call(
        _rpn_kernel,
        out_shape=jax.ShapeDtypeStruct((two, N_ANCH, LANE), jnp.float32),
        grid=(two,),
        in_specs=[
            pl.BlockSpec((None, N_ANCH, COL_K), lambda i: (i, 0, 0)),
            pl.BlockSpec((COL_K, DOUT_BASE), lambda i: (0, 0)),
            pl.BlockSpec((1, DOUT_BASE), lambda i: (0, 0)),
            pl.BlockSpec((DOUT_BASE, LANE), lambda i: (0, 0)),
            pl.BlockSpec((1, LANE), lambda i: (0, 0)),
        ],
        out_specs=pl.BlockSpec((None, N_ANCH, LANE), lambda i: (i, 0, 0)),
        compiler_params=_PARALLEL,
    )(col, kp["rpn_conv_w"], kp["rpn_conv_b"], kp["rpn_head_w_p"], kp["rpn_head_b_p"])


# ============== Pallas kernel 3: RoI head + cls/bbox + softmax + InstanceDA ===
def _head_kernel(pool_ref, head_w_ref, head_b_ref, out_w_ref, out_b_ref,
                 ins1_w_ref, ins1_b_ref, ins2_w_ref, ins2_b_ref,
                 main_ref, prob_ref, ins_ref):
    pf = jnp.dot(pool_ref[...], head_w_ref[...],
                 preferred_element_type=jnp.float32) + head_b_ref[...]
    pf = jnp.maximum(pf, 0.0)                                        # _head_to_tail
    pf16 = pf.astype(jnp.bfloat16)

    # cols 0:5 cls_score, 5:25 bbox_pred, rest zero-padded
    main = jnp.dot(pf16, out_w_ref[...],
                   preferred_element_type=jnp.float32) + out_b_ref[...]
    main_ref[...] = main

    # masked softmax over the class columns (F.softmax(cls_score, 1))
    cidx = jax.lax.broadcasted_iota(jnp.int32, main.shape, 1)
    masked = jnp.where(cidx < N_CLASSES, main, -1e30)
    m = jnp.max(masked, axis=-1, keepdims=True)
    e = jnp.exp(masked - m)
    prob_ref[...] = e / jnp.sum(e, axis=-1, keepdims=True)

    # InstanceDA on the resident pooled features
    ins1 = jnp.dot(pf16, ins1_w_ref[...],
                   preferred_element_type=jnp.float32) + ins1_b_ref[...]
    ins1 = jnp.maximum(ins1, 0.0)
    ins2 = jnp.dot(ins1.astype(jnp.bfloat16), ins2_w_ref[...],
                   preferred_element_type=jnp.float32) + ins2_b_ref[...]
    ins_ref[...] = jax.nn.sigmoid(ins2)


def head_forward(kp, pooled_flat):
    """pooled_flat: (2, N_ROI, HEAD_K) bf16 -> three (2, N_ROI, 128) f32 slabs."""
    two = pooled_flat.shape[0]
    out_shapes = tuple(jax.ShapeDtypeStruct((two, N_ROI, LANE), jnp.float32)
                       for _ in range(3))
    out_specs = tuple(pl.BlockSpec((None, N_ROI, LANE), lambda i: (i, 0, 0))
                      for _ in range(3))
    return pl.pallas_call(
        _head_kernel,
        out_shape=out_shapes,
        grid=(two,),
        in_specs=[
            pl.BlockSpec((None, N_ROI, HEAD_K), lambda i: (i, 0, 0)),
            pl.BlockSpec((HEAD_K, HEAD_DIM), lambda i: (0, 0)),
            pl.BlockSpec((1, HEAD_DIM), lambda i: (0, 0)),
            pl.BlockSpec((HEAD_DIM, LANE), lambda i: (0, 0)),
            pl.BlockSpec((1, LANE), lambda i: (0, 0)),
            pl.BlockSpec((HEAD_DIM, DA_HID), lambda i: (0, 0)),
            pl.BlockSpec((1, DA_HID), lambda i: (0, 0)),
            pl.BlockSpec((DA_HID, LANE), lambda i: (0, 0)),
            pl.BlockSpec((1, LANE), lambda i: (0, 0)),
        ],
        out_specs=out_specs,
        compiler_params=_PARALLEL,
    )(pooled_flat, kp["head_w"], kp["head_b"], kp["out_w_p"], kp["out_b_p"],
      kp["insda1_w"], kp["insda1_b"], kp["insda2_w_p"], kp["insda2_b_p"])


# ======================= Pallas kernel 4: all scalar losses ===================
def _mean_all_11(x):
    s = jnp.sum(x, axis=1, keepdims=True)
    s = jnp.sum(s, axis=0, keepdims=True)
    return s / float(x.shape[0] * x.shape[1])


def _bce_mean_11(p, y):
    eps = 1e-10
    p = jnp.clip(p, eps, 1.0 - eps)
    return _mean_all_11(-(y * jnp.log(p) + (1.0 - y) * jnp.log(1.0 - p)))


def _bce_const_11(p, label_is_one):
    eps = 1e-10
    p = jnp.clip(p, eps, 1.0 - eps)
    l = -jnp.log(p) if label_is_one else -jnp.log(1.0 - p)
    return _mean_all_11(l)


def _bce_margin_11(p, y):
    NEAR_0 = 1e-10
    bce = -(y * jnp.log(p + NEAR_0) + (1.0 - y) * jnp.log(1.0 - p + NEAR_0))
    a = (bce[:, 0:1] > 0.5).astype(jnp.float32)
    col = jax.lax.broadcasted_iota(jnp.int32, bce.shape, 1)
    w = bce * jnp.where(col == 0, a, 1.0)
    return _mean_all_11(w)


def _xent_11(logits, onehot):
    m = jnp.max(logits, axis=-1, keepdims=True)
    lse = jnp.log(jnp.sum(jnp.exp(logits - m), axis=-1, keepdims=True)) + m
    nll = -jnp.sum(onehot * (logits - lse), axis=-1, keepdims=True)
    return jnp.sum(nll, axis=0, keepdims=True) / float(nll.shape[0])


def _smooth_l1_11(pred, tgt, inw, outw, sigma2):
    diff = inw * (pred - tgt)
    ad = jnp.abs(diff)
    flag = (ad < 1.0 / sigma2).astype(jnp.float32)
    loss = diff * diff * (sigma2 / 2.0) * flag + (ad - 0.5 / sigma2) * (1.0 - flag)
    loss = outw * loss
    per_row = jnp.sum(loss, axis=1, keepdims=True)
    return jnp.sum(per_row, axis=0, keepdims=True) / float(per_row.shape[0])


def _loss_kernel(rpnp_ref, rpny_ref, rpnd_ref, rpnt_ref, rpnw_ref,
                 cls_ref, oh_ref, bbp_ref, bbt_ref, biw_ref, bow_ref,
                 das_ref, dat_ref, ins_ref, insy_ref, tins_ref, tinsy_ref,
                 o_ref):
    losses = [
        _bce_mean_11(rpnp_ref[...], rpny_ref[...]),                                   # rpn_loss_cls
        _smooth_l1_11(rpnd_ref[...], rpnt_ref[...], rpnw_ref[...], rpnw_ref[...], 9.0),  # rpn_loss_bbox (sigma=3)
        _xent_11(cls_ref[...], oh_ref[...]),                                          # RCNN_loss_cls
        _smooth_l1_11(bbp_ref[...], bbt_ref[...], biw_ref[...], bow_ref[...], 1.0),   # RCNN_loss_bbox
        _bce_const_11(das_ref[...], True),                                            # DA_img_loss_cls (label=1)
        _bce_margin_11(ins_ref[...], insy_ref[...]),                                  # DA_ins_loss_cls
        _bce_const_11(dat_ref[...], False),                                           # tgt_DA_img_loss_cls (label=0)
        _bce_margin_11(tins_ref[...], tinsy_ref[...]),                                # tgt_DA_ins_loss_cls
    ]
    col = jax.lax.broadcasted_iota(jnp.int32, (1, N_LOSS), 1)
    out = jnp.zeros((1, N_LOSS), jnp.float32)
    for k, l in enumerate(losses):
        out = out + jnp.where(col == k, l, 0.0)
    o_ref[...] = out


def fused_losses(rpn_p, rpn_y, rpn_d, rpn_t, rpn_w,
                 cls_s, onehot, bb_p, bb_t, bb_iw, bb_ow,
                 da_s, da_t, ins_s, ins_y, tins_s, tins_y):
    arrs = [a.astype(jnp.float32) for a in
            (rpn_p, rpn_y, rpn_d, rpn_t, rpn_w, cls_s, onehot, bb_p, bb_t,
             bb_iw, bb_ow, da_s, da_t, ins_s, ins_y, tins_s, tins_y)]
    return pl.pallas_call(
        _loss_kernel,
        out_shape=jax.ShapeDtypeStruct((1, N_LOSS), jnp.float32),
        grid=(1,),
        in_specs=[pl.BlockSpec(a.shape, lambda i: (0, 0)) for a in arrs],
        out_specs=pl.BlockSpec((1, N_LOSS), lambda i: (0, 0)),
        compiler_params=_ARBITRARY,
    )(*arrs)


# ----------------------------- JAX glue helpers -------------------------------
def bbox_iou(a, b):
    ax1, ay1, ax2, ay2 = a[:, 0:1], a[:, 1:2], a[:, 2:3], a[:, 3:4]
    bx1, by1, bx2, by2 = b[None, :, 0], b[None, :, 1], b[None, :, 2], b[None, :, 3]
    iw = jnp.clip(jnp.minimum(ax2, bx2) - jnp.maximum(ax1, bx1) + 1.0, 0.0, None)
    ih = jnp.clip(jnp.minimum(ay2, by2) - jnp.maximum(ay1, by1) + 1.0, 0.0, None)
    inter = iw * ih
    area_a = (ax2 - ax1 + 1.0) * (ay2 - ay1 + 1.0)
    area_b = (bx2 - bx1 + 1.0) * (by2 - by1 + 1.0)
    return inter / (area_a + area_b - inter + 1e-10)


def bbox_transform(ex, gt):
    ew = ex[:, 2] - ex[:, 0] + 1.0
    eh = ex[:, 3] - ex[:, 1] + 1.0
    ecx = ex[:, 0] + 0.5 * ew
    ecy = ex[:, 1] + 0.5 * eh
    gw = gt[:, 2] - gt[:, 0] + 1.0
    gh = gt[:, 3] - gt[:, 1] + 1.0
    gcx = gt[:, 0] + 0.5 * gw
    gcy = gt[:, 1] + 0.5 * gh
    dx = (gcx - ecx) / ew
    dy = (gcy - ecy) / eh
    dw = jnp.log(gw / ew)
    dh = jnp.log(gh / eh)
    return jnp.stack([dx, dy, dw, dh], axis=1)


def apply_deltas(anchors, deltas):
    w = anchors[:, 2] - anchors[:, 0] + 1.0
    h = anchors[:, 3] - anchors[:, 1] + 1.0
    cx = anchors[:, 0] + 0.5 * w
    cy = anchors[:, 1] + 0.5 * h
    pcx = deltas[:, 0] * w + cx
    pcy = deltas[:, 1] * h + cy
    dw = jnp.minimum(deltas[:, 2], BBOX_XFORM_CLIP)
    dh = jnp.minimum(deltas[:, 3], BBOX_XFORM_CLIP)
    pw = jnp.exp(dw) * w
    ph = jnp.exp(dh) * h
    boxes = jnp.stack([pcx - 0.5 * pw, pcy - 0.5 * ph, pcx + 0.5 * pw, pcy + 0.5 * ph], axis=1)
    return jnp.clip(boxes, 0.0, IM_SIZE - 1.0)


def make_anchors(h2, w2):
    ys, xs = jnp.meshgrid(jnp.arange(h2), jnp.arange(w2), indexing="ij")
    cx = (xs.reshape(-1).astype(jnp.float32) + 0.5) * PATCH
    cy = (ys.reshape(-1).astype(jnp.float32) + 0.5) * PATCH
    half = ANCHOR_SIZE / 2.0
    return jnp.stack([cx - half, cy - half, cx + half, cy + half], axis=1)


def extract_patches(im_nchw):
    """(B,C,H,W) -> (B, h2*w2, PATCH*PATCH*C) in (py, px, c) row order."""
    x = jnp.transpose(im_nchw, (0, 2, 3, 1))
    B, H, W, C = x.shape
    h2, w2 = H // PATCH, W // PATCH
    p = x.reshape(B, h2, PATCH, w2, PATCH, C)
    p = jnp.transpose(p, (0, 1, 3, 2, 4, 5)).reshape(B, h2 * w2, PATCH * PATCH * C)
    return p


def conv3x3_im2col_b(feat):
    """(B,H,W,C) -> (B, H*W, 9*C) patches (zero-pad=1)."""
    B, H, W, C = feat.shape
    p = jnp.pad(feat, ((0, 0), (1, 1), (1, 1), (0, 0)))
    cols = [p[:, dy:dy + H, dx:dx + W, :] for dy in range(3) for dx in range(3)]
    col = jnp.concatenate(cols, axis=-1)
    return col.reshape(B, H * W, 9 * C)


def roi_align_avg(feat_nhwc, rois):
    """Simplified RoIAlignAvg: bilinear sample POOL x POOL bin centers.
    feat: (1,H,W,C); rois: (N,5) [batch, x1,y1,x2,y2]."""
    # TODO(synk): exact RoIAlignAvg uses (P+1)-grid sampling + avg-pool; this samples bin centers.
    H, W = feat_nhwc.shape[1], feat_nhwc.shape[2]
    n = rois.shape[0]
    boxes = rois[:, 1:5] * SPATIAL_SCALE
    x1, y1, x2, y2 = boxes[:, 0], boxes[:, 1], boxes[:, 2], boxes[:, 3]
    bin_w = (x2 - x1) / POOL
    bin_h = (y2 - y1) / POOL
    idx = jnp.arange(POOL, dtype=jnp.float32) + 0.5
    ys = y1[:, None] + idx[None, :] * bin_h[:, None]
    xs = x1[:, None] + idx[None, :] * bin_w[:, None]
    yy = jnp.broadcast_to(ys[:, :, None], (n, POOL, POOL))
    xx = jnp.broadcast_to(xs[:, None, :], (n, POOL, POOL))
    y0 = jnp.clip(jnp.floor(yy), 0, H - 1).astype(jnp.int32)
    x0 = jnp.clip(jnp.floor(xx), 0, W - 1).astype(jnp.int32)
    y1i = jnp.clip(y0 + 1, 0, H - 1)
    x1i = jnp.clip(x0 + 1, 0, W - 1)
    ly = jnp.clip(yy - y0.astype(jnp.float32), 0.0, 1.0)
    lx = jnp.clip(xx - x0.astype(jnp.float32), 0.0, 1.0)
    f = feat_nhwc[0]
    v00 = f[y0, x0]
    v01 = f[y0, x1i]
    v10 = f[y1i, x0]
    v11 = f[y1i, x1i]
    top = v00 * (1.0 - lx)[..., None] + v01 * lx[..., None]
    bot = v10 * (1.0 - lx)[..., None] + v11 * lx[..., None]
    return top * (1.0 - ly)[..., None] + bot * ly[..., None]            # (N,P,P,C)


def proposal_target(rois, gt_boxes, num_boxes):
    """Simplified _ProposalTargetLayer: IoU matching, no fg/bg sampling."""
    # TODO(synk): no bbox target normalization (BBOX_NORMALIZE_MEANS/STDS).
    roi_boxes = rois[0, :, 1:5]
    gt = gt_boxes[0]
    valid = (jnp.arange(N_GT) < num_boxes[0]).astype(jnp.float32)
    iou = bbox_iou(roi_boxes, gt[:, :4]) * valid[None, :]
    best = jnp.argmax(iou, axis=1)
    best_iou = jnp.max(iou, axis=1)
    fg = best_iou >= 0.5
    rois_label = jnp.where(fg, gt[best, 4].astype(jnp.int32), 0)
    rois_target = bbox_transform(roi_boxes, gt[best, :4]) * fg[:, None].astype(jnp.float32)
    ws = jnp.broadcast_to(fg[:, None].astype(jnp.float32), (N_ROI, 4))
    return rois, rois_label[None], rois_target[None], ws[None], ws[None]


def area_masks(rois2):
    area = (rois2[:, 3] - rois2[:, 1]) * (rois2[:, 4] - rois2[:, 2])
    small = (area <= 400.0).astype(jnp.float32)[:, None]
    middle = ((area > 400.0) & (area < 10000.0)).astype(jnp.float32)[:, None]
    large = (area >= 10000.0).astype(jnp.float32)[:, None]
    return small, middle, large


# ----------------------------- full forward (jitted) --------------------------
@jax.jit
def faster_rcnn_forward(kp, im_data, im_info, gt_boxes, num_boxes,
                        tgt_im_data, tgt_im_info, tgt_gt_boxes, tgt_num_boxes):
    del im_info, tgt_im_info  # kept for interface parity
    batch_size = im_data.shape[0]

    # -------- backbone + image-DA: source & target batched on a parallel grid --------
    imgs = jnp.concatenate([im_data, tgt_im_data], axis=0)                    # (2,C,H,W)
    patches = extract_patches(imgs).astype(jnp.bfloat16)                      # (2,16,768)
    feat_pad, da_score_pad = backbone_da(kp, patches)                          # (2,16,128) x2
    base_feats = feat_pad[:, :, :DOUT_BASE].reshape(2, FEAT_HW, FEAT_HW, DOUT_BASE)

    # -------- RPN (3x3 conv + cls/bbox heads fused), batched --------
    col = conv3x3_im2col_b(base_feats).astype(jnp.bfloat16)                   # (2,16,144)
    rpn_out = rpn_heads(kp, col)                                              # (2,16,128)
    rpn_prob = rpn_out[:, :, 0]                                               # (2,16)
    rpn_deltas = rpn_out[:, :, 1:5]                                           # (2,16,4)

    anchors = make_anchors(FEAT_HW, FEAT_HW)                                  # (16,4)
    proposals = jax.vmap(lambda d: apply_deltas(anchors, d))(rpn_deltas)      # (2,16,4)
    _, top_idx = jax.lax.top_k(rpn_prob, N_ROI)                               # (2,8)
    roi_boxes = jnp.take_along_axis(proposals, top_idx[:, :, None], axis=1)   # (2,8,4)
    rois_both = jnp.concatenate([jnp.zeros((2, N_ROI, 1), jnp.float32), roi_boxes], axis=2)
    rois = rois_both[0:1]                                                     # (1,8,5)
    tgt_rois = rois_both[1:2]                                                 # (1,8,5)

    # -------- source RPN training targets (glue; losses computed in the fused kernel) --------
    # TODO(synk): no anchor ignore band / sampling / NMS; single anchor scale.
    gt = gt_boxes[0]
    valid = (jnp.arange(N_GT) < num_boxes[0]).astype(jnp.float32)
    iou = bbox_iou(anchors, gt[:, :4]) * valid[None, :]
    best = jnp.argmax(iou, axis=1)
    best_iou = jnp.max(iou, axis=1)
    rpn_labels = (best_iou >= 0.5).astype(jnp.float32)[:, None]               # (16,1)
    rpn_tgt = bbox_transform(anchors, gt[best, :4])                           # (16,4)
    rpn_w = jnp.broadcast_to(rpn_labels, rpn_tgt.shape)                       # (16,4)

    # -------- proposal target (source) --------
    rois, rois_label_b, rois_target_b, rois_in_b, rois_out_b = proposal_target(
        rois, gt_boxes, num_boxes)
    rois_label = rois_label_b.reshape(-1)
    rois_target = rois_target_b.reshape(-1, 4)
    rois_inside_ws = rois_in_b.reshape(-1, 4)
    rois_outside_ws = rois_out_b.reshape(-1, 4)

    s_small, s_mid, s_large = area_masks(rois[0])
    t_small, t_mid, t_large = area_masks(tgt_rois[0])

    # -------- RoI align + fused head (source & target batched) --------
    pooled_s = roi_align_avg(base_feats[0:1], rois[0])                        # (8,P,P,C) NHWC
    pooled_t = roi_align_avg(base_feats[1:2], tgt_rois[0])
    pooled_flat = jnp.stack([pooled_s.reshape(N_ROI, HEAD_K),
                             pooled_t.reshape(N_ROI, HEAD_K)], axis=0).astype(jnp.bfloat16)
    main, prob, ins_sig = head_forward(kp, pooled_flat)                       # (2,8,128) x3

    cls_score = main[0, :, :N_CLASSES]                                        # (8,5)
    bbox_all = main[0, :, N_CLASSES:N_CLASSES + 4 * N_CLASSES]                # (8,20)
    cls_prob2 = prob[0, :, :N_CLASSES]                                        # (8,5)
    instance_sigmoid = ins_sig[0, :, :4]                                      # (8,4)
    tgt_instance_sigmoid = ins_sig[1, :, :4]                                  # (8,4)

    # per-class bbox gather (training, class-specific regression)
    bbox_view = bbox_all.reshape(N_ROI, N_CLASSES, 4)
    bbox_pred = jnp.take_along_axis(
        bbox_view, rois_label[:, None, None].astype(jnp.int32), axis=1)[:, 0, :]

    onehot = jax.nn.one_hot(rois_label, N_CLASSES, dtype=jnp.float32)
    src_label_ins = jnp.concatenate(
        [jnp.ones((N_ROI, 1), jnp.float32), s_small, s_mid, s_large], axis=1)
    tgt_label_ins = jnp.concatenate(
        [jnp.zeros((N_ROI, 1), jnp.float32), t_small, t_mid, t_large], axis=1)

    # -------- all 8 scalar losses in one fused reduction kernel --------
    loss_vec = fused_losses(
        rpn_prob[0][:, None], rpn_labels, rpn_deltas[0], rpn_tgt, rpn_w,
        cls_score, onehot, bbox_pred, rois_target, rois_inside_ws, rois_outside_ws,
        da_score_pad[0, :, 0:1], da_score_pad[1, :, 0:1],
        instance_sigmoid, src_label_ins, tgt_instance_sigmoid, tgt_label_ins)

    rpn_loss_cls        = loss_vec[0, 0]
    rpn_loss_bbox       = loss_vec[0, 1]
    RCNN_loss_cls       = loss_vec[0, 2]
    RCNN_loss_bbox      = loss_vec[0, 3]
    DA_img_loss_cls     = loss_vec[0, 4]
    DA_ins_loss_cls     = loss_vec[0, 5]
    tgt_DA_img_loss_cls = loss_vec[0, 6]
    tgt_DA_ins_loss_cls = loss_vec[0, 7]

    cls_prob = cls_prob2.reshape(batch_size, N_ROI, -1)
    bbox_pred_out = bbox_pred.reshape(batch_size, N_ROI, -1)

    return (rois, cls_prob, bbox_pred_out, rpn_loss_cls, rpn_loss_bbox,
            RCNN_loss_cls, RCNN_loss_bbox, rois_label,
            DA_img_loss_cls, DA_ins_loss_cls, tgt_DA_img_loss_cls, tgt_DA_ins_loss_cls)


# ----------------------------- parameters --------------------------------------
def init_params(key):
    def nrm(k, shape, std):
        return std * jax.random.normal(k, shape, jnp.float32)
    ks = jax.random.split(key, 12)
    return {
        "base_w":     nrm(ks[0], (PATCH_K, DOUT_BASE), 0.01),
        "base_b":     jnp.zeros((DOUT_BASE,), jnp.float32),
        "rpn_conv_w": nrm(ks[1], (COL_K, DOUT_BASE), 0.01),
        "rpn_conv_b": jnp.zeros((DOUT_BASE,), jnp.float32),
        "rpn_cls_w":  nrm(ks[2], (DOUT_BASE, 1), 0.01),
        "rpn_cls_b":  jnp.zeros((1,), jnp.float32),
        "rpn_bbox_w": nrm(ks[3], (DOUT_BASE, 4), 0.01),
        "rpn_bbox_b": jnp.zeros((4,), jnp.float32),
        "head_w":     nrm(ks[4], (HEAD_K, HEAD_DIM), 0.01),   # rows in (c,py,px) NCHW-flatten order
        "head_b":     jnp.zeros((HEAD_DIM,), jnp.float32),
        "cls_w":      nrm(ks[5], (HEAD_DIM, N_CLASSES), 0.01),
        "cls_b":      jnp.zeros((N_CLASSES,), jnp.float32),
        "bbox_w":     nrm(ks[6], (HEAD_DIM, 4 * N_CLASSES), 0.001),
        "bbox_b":     jnp.zeros((4 * N_CLASSES,), jnp.float32),
        "imgda1_w":   nrm(ks[7], (DOUT_BASE, DA_HID), 0.01),
        "imgda1_b":   jnp.zeros((DA_HID,), jnp.float32),
        "imgda2_w":   nrm(ks[8], (DA_HID, 1), 0.01),
        "imgda2_b":   jnp.zeros((1,), jnp.float32),
        "insda1_w":   nrm(ks[9], (HEAD_DIM, DA_HID), 0.01),
        "insda1_b":   jnp.zeros((DA_HID,), jnp.float32),
        "insda2_w":   nrm(ks[10], (DA_HID, 4), 0.01),
        "insda2_b":   jnp.zeros((4,), jnp.float32),
    }


def prepare_kernel_params(params):
    """One-time layout work: pad heads to 128 lanes, fuse head weights, bf16 cast,
    and permute head_w rows so pooled features can stay in NHWC flatten order."""
    bf = jnp.bfloat16

    def pad_cols(w, width=LANE):
        return jnp.pad(w, ((0, 0), (0, width - w.shape[1])))

    def pad_rows(w, height=LANE):
        return jnp.pad(w, ((0, height - w.shape[0]), (0, 0)))

    def brow(b, width=None):
        b2 = b.reshape(1, -1).astype(jnp.float32)
        if width is not None:
            b2 = jnp.pad(b2, ((0, 0), (0, width - b2.shape[1])))
        return b2

    # permute _head_to_tail weight rows (c,py,px) -> (py,px,c): equivalent to the
    # NCHW `.view(N,-1)` flatten in the reference, but lets us skip the activation transpose.
    head_w = params["head_w"].reshape(DOUT_BASE, POOL, POOL, HEAD_DIM)
    head_w = jnp.transpose(head_w, (1, 2, 0, 3)).reshape(POOL * POOL * DOUT_BASE, HEAD_DIM)

    rpn_head_w = jnp.concatenate([params["rpn_cls_w"], params["rpn_bbox_w"]], axis=1)   # (16,5)
    rpn_head_b = jnp.concatenate([params["rpn_cls_b"], params["rpn_bbox_b"]], axis=0)   # (5,)
    out_w = jnp.concatenate([params["cls_w"], params["bbox_w"]], axis=1)                # (32,25)
    out_b = jnp.concatenate([params["cls_b"], params["bbox_b"]], axis=0)                # (25,)

    return {
        "base_w_p":     pad_cols(params["base_w"]).astype(bf),     # (768,128)
        "base_b_p":     brow(params["base_b"], LANE),               # (1,128)
        "imgda1_w_p":   pad_rows(params["imgda1_w"]).astype(bf),    # (128,32)
        "imgda1_b":     brow(params["imgda1_b"]),                   # (1,32)
        "imgda2_w_p":   pad_cols(params["imgda2_w"]).astype(bf),    # (32,128)
        "imgda2_b_p":   brow(params["imgda2_b"], LANE),             # (1,128)
        "rpn_conv_w":   params["rpn_conv_w"].astype(bf),            # (144,16)
        "rpn_conv_b":   brow(params["rpn_conv_b"]),                 # (1,16)
        "rpn_head_w_p": pad_cols(rpn_head_w).astype(bf),            # (16,128)
        "rpn_head_b_p": brow(rpn_head_b, LANE),                     # (1,128)
        "head_w":       head_w.astype(bf),                          # (64,32)
        "head_b":       brow(params["head_b"]),                     # (1,32)
        "out_w_p":      pad_cols(out_w).astype(bf),                 # (32,128)
        "out_b_p":      brow(out_b, LANE),                          # (1,128)
        "insda1_w":     params["insda1_w"].astype(bf),              # (32,32)
        "insda1_b":     brow(params["insda1_b"]),                   # (1,32)
        "insda2_w_p":   pad_cols(params["insda2_w"]).astype(bf),    # (32,128)
        "insda2_b_p":   brow(params["insda2_b"], LANE),             # (1,128)
    }


# ----------------------------- main ---------------------------------------------
if __name__ == "__main__":
    key = jax.random.PRNGKey(0)
    pkey, ikey, tkey = jax.random.split(key, 3)
    params = init_params(pkey)
    kparams = prepare_kernel_params(params)          # one-time layout / bf16 prep

    im_data = jax.random.normal(ikey, (1, C_IN, IM_SIZE, IM_SIZE), jnp.float32)      # NCHW
    tgt_im_data = jax.random.normal(tkey, (1, C_IN, IM_SIZE, IM_SIZE), jnp.float32)  # NCHW
    im_info = jnp.array([[IM_SIZE, IM_SIZE, 1.0]], jnp.float32)
    tgt_im_info = jnp.array([[IM_SIZE, IM_SIZE, 1.0]], jnp.float32)
    gt_boxes = jnp.array([[[4.0, 4.0, 30.0, 30.0, 1.0],
                           [20.0, 10.0, 60.0, 50.0, 2.0],
                           [0.0, 0.0, 15.0, 63.0, 3.0],
                           [0.0, 0.0, 0.0, 0.0, 0.0]]], jnp.float32)
    tgt_gt_boxes = jnp.zeros((1, N_GT, 5), jnp.float32)
    num_boxes = jnp.array([3], jnp.int32)
    tgt_num_boxes = jnp.array([0], jnp.int32)

    outs = faster_rcnn_forward(kparams, im_data, im_info, gt_boxes, num_boxes,
                               tgt_im_data, tgt_im_info, tgt_gt_boxes, tgt_num_boxes)
    outs = jax.block_until_ready(outs)

    (rois, cls_prob, bbox_pred, rpn_loss_cls, rpn_loss_bbox, RCNN_loss_cls,
     RCNN_loss_bbox, rois_label, DA_img, DA_ins, tgt_DA_img, tgt_DA_ins) = outs
    assert rois.shape == (1, N_ROI, 5)
    assert cls_prob.shape == (1, N_ROI, N_CLASSES)
    assert bbox_pred.shape == (1, N_ROI, 4)
    assert rois_label.shape == (N_ROI,)
    for s in (rpn_loss_cls, rpn_loss_bbox, RCNN_loss_cls, RCNN_loss_bbox,
              DA_img, DA_ins, tgt_DA_img, tgt_DA_ins):
        assert jnp.isfinite(jnp.asarray(s)).all()
    assert jnp.isfinite(cls_prob).all() and jnp.isfinite(bbox_pred).all()
    print("KERNEL_OK")
</pallas_src>

<mosaic_0001>
module attributes {stable_mosaic.version = 11 : i64} {
  func.func @_backbone_da_kernel(%arg0: i32, %arg1: memref<1x16x768xbf16, #tpu.memory_space<vmem>>, %arg2: memref<768x128xbf16, #tpu.memory_space<vmem>>, %arg3: memref<1x128xf32, #tpu.memory_space<vmem>>, %arg4: memref<128x32xbf16, #tpu.memory_space<vmem>>, %arg5: memref<1x32xf32, #tpu.memory_space<vmem>>, %arg6: memref<32x128xbf16, #tpu.memory_space<vmem>>, %arg7: memref<1x128xf32, #tpu.memory_space<vmem>>, %arg8: memref<1x16x128xf32, #tpu.memory_space<vmem>>, %arg9: memref<1x16x128xf32, #tpu.memory_space<vmem>>) attributes {dimension_semantics = [#tpu.dimension_semantics<parallel>], iteration_bounds = array<i64: 2>, scalar_prefetch = 0 : i64, scratch_operands = 0 : i64, tpu.core_type = #tpu.core_type<tc>, window_params = [{transform_indices = @transform_0, window_bounds = array<i64: 1, 16, 768>}, {pipeline_mode = #tpu.pipeline_mode<synchronous>, transform_indices = @transform_1, window_bounds = array<i64: 768, 128>}, {pipeline_mode = #tpu.pipeline_mode<synchronous>, transform_indices = @transform_2, window_bounds = array<i64: 1, 128>}, {pipeline_mode = #tpu.pipeline_mode<synchronous>, transform_indices = @transform_3, window_bounds = array<i64: 128, 32>}, {pipeline_mode = #tpu.pipeline_mode<synchronous>, transform_indices = @transform_4, window_bounds = array<i64: 1, 32>}, {pipeline_mode = #tpu.pipeline_mode<synchronous>, transform_indices = @transform_5, window_bounds = array<i64: 32, 128>}, {pipeline_mode = #tpu.pipeline_mode<synchronous>, transform_indices = @transform_6, window_bounds = array<i64: 1, 128>}, {transform_indices = @transform_7, window_bounds = array<i64: 1, 16, 128>}, {transform_indices = @transform_8, window_bounds = array<i64: 1, 16, 128>}]} {
    %c0 = arith.constant 0 : index
    %c0_0 = arith.constant 0 : index
    %c0_1 = arith.constant 0 : index
    %0 = vector.load %arg1[%c0, %c0_0, %c0_1] : memref<1x16x768xbf16, #tpu.memory_space<vmem>>, vector<1x16x768xbf16>
    %1 = vector.shape_cast %0 : vector<1x16x768xbf16> to vector<16x768xbf16>
    %c0_2 = arith.constant 0 : index
    %c0_3 = arith.constant 0 : index
    %2 = vector.load %arg2[%c0_2, %c0_3] : memref<768x128xbf16, #tpu.memory_space<vmem>>, vector<768x128xbf16>
    %cst = arith.constant dense<0.000000e+00> : vector<16x128xf32>
    %3 = tpu.matmul %1, %2, %cst {dimension_numbers = #tpu.dot_dimension_numbers<[1], [0], [0], [1], [0, 0, 1, 1], [], []>} : vector<16x768xbf16>, vector<768x128xbf16>, vector<16x128xf32> -> vector<16x128xf32>
    %c0_4 = arith.constant 0 : index
    %c0_5 = arith.constant 0 : index
    %4 = vector.load %arg3[%c0_4, %c0_5] : memref<1x128xf32, #tpu.memory_space<vmem>>, vector<1x128xf32>
    %5 = vector.broadcast %4 : vector<1x128xf32> to vector<16x128xf32>
    %6 = arith.addf %3, %5 : vector<16x128xf32>
    %cst_6 = arith.constant 0.000000e+00 : f32
    %7 = vector.broadcast %cst_6 : f32 to vector<16x128xf32>
    %8 = arith.maximumf %6, %7 : vector<16x128xf32>
    %c0_7 = arith.constant 0 : index
    %c0_8 = arith.constant 0 : index
    %c0_9 = arith.constant 0 : index
    %9 = vector.load %arg8[%c0_7, %c0_8, %c0_9] : memref<1x16x128xf32, #tpu.memory_space<vmem>>, vector<1x16x128xf32>
    %10 = vector.shape_cast %9 : vector<1x16x128xf32> to vector<16x128xf32>
    %11 = vector.shape_cast %8 : vector<16x128xf32> to vector<1x16x128xf32>
    tpu.vector_store %arg8[%c0_7, %c0_8, %c0_9], %11 {strides = array<i32>} : memref<1x16x128xf32, #tpu.memory_space<vmem>>, vector<1x16x128xf32>,
    %12 = arith.truncf %8 : vector<16x128xf32> to vector<16x128xbf16>
    %c0_10 = arith.constant 0 : index
    %c0_11 = arith.constant 0 : index
    %13 = vector.load %arg4[%c0_10, %c0_11] : memref<128x32xbf16, #tpu.memory_space<vmem>>, vector<128x32xbf16>
    %cst_12 = arith.constant dense<0.000000e+00> : vector<16x32xf32>
    %14 = tpu.matmul %12, %13, %cst_12 {dimension_numbers = #tpu.dot_dimension_numbers<[1], [0], [0], [1], [0, 0, 1, 1], [], []>} : vector<16x128xbf16>, vector<128x32xbf16>, vector<16x32xf32> -> vector<16x32xf32>
    %c0_13 = arith.constant 0 : index
    %c0_14 = arith.constant 0 : index
    %15 = vector.load %arg5[%c0_13, %c0_14] : memref<1x32xf32, #tpu.memory_space<vmem>>, vector<1x32xf32>
    %16 = vector.broadcast %15 : vector<1x32xf32> to vector<16x32xf32>
    %17 = arith.addf %14, %16 : vector<16x32xf32>
    %cst_15 = arith.constant 0.000000e+00 : f32
    %18 = vector.broadcast %cst_15 : f32 to vector<16x32xf32>
    %19 = arith.maximumf %17, %18 : vector<16x32xf32>
    %20 = arith.truncf %19 : vector<16x32xf32> to vector<16x32xbf16>
    %c0_16 = arith.constant 0 : index
    %c0_17 = arith.constant 0 : index
    %21 = vector.load %arg6[%c0_16, %c0_17] : memref<32x128xbf16, #tpu.memory_space<vmem>>, vector<32x128xbf16>
    %cst_18 = arith.constant dense<0.000000e+00> : vector<16x128xf32>
    %22 = tpu.matmul %20, %21, %cst_18 {dimension_numbers = #tpu.dot_dimension_numbers<[1], [0], [0], [1], [0, 0, 1, 1], [], []>} : vector<16x32xbf16>, vector<32x128xbf16>, vector<16x128xf32> -> vector<16x128xf32>
    %c0_19 = arith.constant 0 : index
    %c0_20 = arith.constant 0 : index
    %23 = vector.load %arg7[%c0_19, %c0_20] : memref<1x128xf32, #tpu.memory_space<vmem>>, vector<1x128xf32>
    %24 = vector.broadcast %23 : vector<1x128xf32> to vector<16x128xf32>
    %25 = arith.addf %22, %24 : vector<16x128xf32>
    %26 = arith.negf %25 : vector<16x128xf32>
    %27 = math.exp %26 : vector<16x128xf32>
    %cst_21 = arith.constant 1.000000e+00 : f32
    %28 = vector.broadcast %cst_21 : f32 to vector<16x128xf32>
    %29 = arith.addf %28, %27 : vector<16x128xf32>
    %30 = arith.divf %28, %29 : vector<16x128xf32>
    %c0_22 = arith.constant 0 : index
    %c0_23 = arith.constant 0 : index
    %c0_24 = arith.constant 0 : index
    %31 = vector.load %arg9[%c0_22, %c0_23, %c0_24] : memref<1x16x128xf32, #tpu.memory_space<vmem>>, vector<1x16x128xf32>
    %32 = vector.shape_cast %31 : vector<1x16x128xf32> to vector<16x128xf32>
    %33 = vector.shape_cast %30 : vector<16x128xf32> to vector<1x16x128xf32>
    tpu.vector_store %arg9[%c0_22, %c0_23, %c0_24], %33 {strides = array<i32>} : memref<1x16x128xf32, #tpu.memory_space<vmem>>, vector<1x16x128xf32>,
    return
  }
  func.func @transform_0(%arg0: i32) -> (i32, i32, i32) {
    %c0_i32 = arith.constant 0 : i32
    %c0_i32_0 = arith.constant 0 : i32
    %c0_i32_1 = arith.constant 0 : i32
    return %arg0, %c0_i32, %c0_i32_0 : i32, i32, i32
  }
  func.func @transform_1(%arg0: i32) -> (i32, i32) {
    %c0_i32 = arith.constant 0 : i32
    %c0_i32_0 = arith.constant 0 : i32
    %c0_i32_1 = arith.constant 0 : i32
    return %c0_i32, %c0_i32_0 : i32, i32
  }
  func.func @transform_2(%arg0: i32) -> (i32, i32) {
    %c0_i32 = arith.constant 0 : i32
    %c0_i32_0 = arith.constant 0 : i32
    %c0_i32_1 = arith.constant 0 : i32
    return %c0_i32, %c0_i32_0 : i32, i32
  }
  func.func @transform_3(%arg0: i32) -> (i32, i32) {
    %c0_i32 = arith.constant 0 : i32
    %c0_i32_0 = arith.constant 0 : i32
    %c0_i32_1 = arith.constant 0 : i32
    return %c0_i32, %c0_i32_0 : i32, i32
  }
  func.func @transform_4(%arg0: i32) -> (i32, i32) {
    %c0_i32 = arith.constant 0 : i32
    %c0_i32_0 = arith.constant 0 : i32
    %c0_i32_1 = arith.constant 0 : i32
    return %c0_i32, %c0_i32_0 : i32, i32
  }
  func.func @transform_5(%arg0: i32) -> (i32, i32) {
    %c0_i32 = arith.constant 0 : i32
    %c0_i32_0 = arith.constant 0 : i32
    %c0_i32_1 = arith.constant 0 : i32
    return %c0_i32, %c0_i32_0 : i32, i32
  }
  func.func @transform_6(%arg0: i32) -> (i32, i32) {
    %c0_i32 = arith.constant 0 : i32
    %c0_i32_0 = arith.constant 0 : i32
    %c0_i32_1 = arith.constant 0 : i32
    return %c0_i32, %c0_i32_0 : i32, i32
  }
  func.func @transform_7(%arg0: i32) -> (i32, i32, i32) {
    %c0_i32 = arith.constant 0 : i32
    %c0_i32_0 = arith.constant 0 : i32
    %c0_i32_1 = arith.constant 0 : i32
    return %arg0, %c0_i32, %c0_i32_0 : i32, i32, i32
  }
  func.func @transform_8(%arg0: i32) -> (i32, i32, i32) {
    %c0_i32 = arith.constant 0 : i32
    %c0_i32_0 = arith.constant 0 : i32
    %c0_i32_1 = arith.constant 0 : i32
    return %arg0, %c0_i32, %c0_i32_0 : i32, i32, i32
  }
}

module attributes {stable_mosaic.version = 11 : i64} {
  func.func @_rpn_kernel(%arg0: i32, %arg1: memref<1x16x144xbf16, #tpu.memory_space<vmem>>, %arg2: memref<144x16xbf16, #tpu.memory_space<vmem>>, %arg3: memref<1x16xf32, #tpu.memory_space<vmem>>, %arg4: memref<16x128xbf16, #tpu.memory_space<vmem>>, %arg5: memref<1x128xf32, #tpu.memory_space<vmem>>, %arg6: memref<1x16x128xf32, #tpu.memory_space<vmem>>) attributes {dimension_semantics = [#tpu.dimension_semantics<parallel>], iteration_bounds = array<i64: 2>, scalar_prefetch = 0 : i64, scratch_operands = 0 : i64, tpu.core_type = #tpu.core_type<tc>, window_params = [{transform_indices = @transform_0, window_bounds = array<i64: 1, 16, 144>}, {pipeline_mode = #tpu.pipeline_mode<synchronous>, transform_indices = @transform_1, window_bounds = array<i64: 144, 16>}, {pipeline_mode = #tpu.pipeline_mode<synchronous>, transform_indices = @transform_2, window_bounds = array<i64: 1, 16>}, {pipeline_mode = #tpu.pipeline_mode<synchronous>, transform_indices = @transform_3, window_bounds = array<i64: 16, 128>}, {pipeline_mode = #tpu.pipeline_mode<synchronous>, transform_indices = @transform_4, window_bounds = array<i64: 1, 128>}, {transform_indices = @transform_5, window_bounds = array<i64: 1, 16, 128>}]} {
    %c0 = arith.constant 0 : index
    %c0_0 = arith.constant 0 : index
    %c0_1 = arith.constant 0 : index
    %0 = vector.load %arg1[%c0, %c0_0, %c0_1] : memref<1x16x144xbf16, #tpu.memory_space<vmem>>, vector<1x16x144xbf16>
    %1 = vector.shape_cast %0 : vector<1x16x144xbf16> to vector<16x144xbf16>
    %c0_2 = arith.constant 0 : index
    %c0_3 = arith.constant 0 : index
    %2 = vector.load %arg2[%c0_2, %c0_3] : memref<144x16xbf16, #tpu.memory_space<vmem>>, vector<144x16xbf16>
    %cst = arith.constant dense<0.000000e+00> : vector<16x16xf32>
    %3 = tpu.matmul %1, %2, %cst {dimension_numbers = #tpu.dot_dimension_numbers<[1], [0], [0], [1], [0, 0, 1, 1], [], []>} : vector<16x144xbf16>, vector<144x16xbf16>, vector<16x16xf32> -> vector<16x16xf32>
    %c0_4 = arith.constant 0 : index
    %c0_5 = arith.constant 0 : index
    %4 = vector.load %arg3[%c0_4, %c0_5] : memref<1x16xf32, #tpu.memory_space<vmem>>, vector<1x16xf32>
    %5 = vector.broadcast %4 : vector<1x16xf32> to vector<16x16xf32>
    %6 = arith.addf %3, %5 : vector<16x16xf32>
    %cst_6 = arith.constant 0.000000e+00 : f32
    %7 = vector.broadcast %cst_6 : f32 to vector<16x16xf32>
    %8 = arith.maximumf %6, %7 : vector<16x16xf32>
    %9 = arith.truncf %8 : vector<16x16xf32> to vector<16x16xbf16>
    %c0_7 = arith.constant 0 : index
    %c0_8 = arith.constant 0 : index
    %10 = vector.load %arg4[%c0_7, %c0_8] : memref<16x128xbf16, #tpu.memory_space<vmem>>, vector<16x128xbf16>
    %cst_9 = arith.constant dense<0.000000e+00> : vector<16x128xf32>
    %11 = tpu.matmul %9, %10, %cst_9 {dimension_numbers = #tpu.dot_dimension_numbers<[1], [0], [0], [1], [0, 0, 1, 1], [], []>} : vector<16x16xbf16>, vector<16x128xbf16>, vector<16x128xf32> -> vector<16x128xf32>
    %c0_10 = arith.constant 0 : index
    %c0_11 = arith.constant 0 : index
    %12 = vector.load %arg5[%c0_10, %c0_11] : memref<1x128xf32, #tpu.memory_space<vmem>>, vector<1x128xf32>
    %13 = vector.broadcast %12 : vector<1x128xf32> to vector<16x128xf32>
    %14 = arith.addf %11, %13 : vector<16x128xf32>
    %15 = tpu.iota {dimensions = array<i32: 1>} : vector<16x128xi32>
    %c0_i32 = arith.constant 0 : i32
    %16 = vector.broadcast %c0_i32 : i32 to vector<16x128xi32>
    %17 = arith.cmpi eq, %15, %16 : vector<16x128xi32>
    %18 = arith.negf %14 : vector<16x128xf32>
    %19 = math.exp %18 : vector<16x128xf32>
    %cst_12 = arith.constant 1.000000e+00 : f32
    %20 = vector.broadcast %cst_12 : f32 to vector<16x128xf32>
    %21 = arith.addf %20, %19 : vector<16x128xf32>
    %22 = arith.divf %20, %21 : vector<16x128xf32>
    %23 = arith.select %17, %22, %14 : vector<16x128xi1>, vector<16x128xf32>
    %c0_13 = arith.constant 0 : index
    %c0_14 = arith.constant 0 : index
    %c0_15 = arith.constant 0 : index
    %24 = vector.load %arg6[%c0_13, %c0_14, %c0_15] : memref<1x16x128xf32, #tpu.memory_space<vmem>>, vector<1x16x128xf32>
    %25 = vector.shape_cast %24 : vector<1x16x128xf32> to vector<16x128xf32>
    %26 = vector.shape_cast %23 : vector<16x128xf32> to vector<1x16x128xf32>
    tpu.vector_store %arg6[%c0_13, %c0_14, %c0_15], %26 {strides = array<i32>} : memref<1x16x128xf32, #tpu.memory_space<vmem>>, vector<1x16x128xf32>,
    return
  }
  func.func @transform_0(%arg0: i32) -> (i32, i32, i32) {
    %c0_i32 = arith.constant 0 : i32
    %c0_i32_0 = arith.constant 0 : i32
    %c0_i32_1 = arith.constant 0 : i32
    return %arg0, %c0_i32, %c0_i32_0 : i32, i32, i32
  }
  func.func @transform_1(%arg0: i32) -> (i32, i32) {
    %c0_i32 = arith.constant 0 : i32
    %c0_i32_0 = arith.constant 0 : i32
    %c0_i32_1 = arith.constant 0 : i32
    return %c0_i32, %c0_i32_0 : i32, i32
  }
  func.func @transform_2(%arg0: i32) -> (i32, i32) {
    %c0_i32 = arith.constant 0 : i32
    %c0_i32_0 = arith.constant 0 : i32
    %c0_i32_1 = arith.constant 0 : i32
    return %c0_i32, %c0_i32_0 : i32, i32
  }
  func.func @transform_3(%arg0: i32) -> (i32, i32) {
    %c0_i32 = arith.constant 0 : i32
    %c0_i32_0 = arith.constant 0 : i32
    %c0_i32_1 = arith.constant 0 : i32
    return %c0_i32, %c0_i32_0 : i32, i32
  }
  func.func @transform_4(%arg0: i32) -> (i32, i32) {
    %c0_i32 = arith.constant 0 : i32
    %c0_i32_0 = arith.constant 0 : i32
    %c0_i32_1 = arith.constant 0 : i32
    return %c0_i32, %c0_i32_0 : i32, i32
  }
  func.func @transform_5(%arg0: i32) -> (i32, i32, i32) {
    %c0_i32 = arith.constant 0 : i32
    %c0_i32_0 = arith.constant 0 : i32
    %c0_i32_1 = arith.constant 0 : i32
    return %arg0, %c0_i32, %c0_i32_0 : i32, i32, i32
  }
}

module attributes {stable_mosaic.version = 11 : i64} {
  func.func @_head_kernel(%arg0: i32, %arg1: memref<1x8x64xbf16, #tpu.memory_space<vmem>>, %arg2: memref<64x32xbf16, #tpu.memory_space<vmem>>, %arg3: memref<1x32xf32, #tpu.memory_space<vmem>>, %arg4: memref<32x128xbf16, #tpu.memory_space<vmem>>, %arg5: memref<1x128xf32, #tpu.memory_space<vmem>>, %arg6: memref<32x32xbf16, #tpu.memory_space<vmem>>, %arg7: memref<1x32xf32, #tpu.memory_space<vmem>>, %arg8: memref<32x128xbf16, #tpu.memory_space<vmem>>, %arg9: memref<1x128xf32, #tpu.memory_space<vmem>>, %arg10: memref<1x8x128xf32, #tpu.memory_space<vmem>>, %arg11: memref<1x8x128xf32, #tpu.memory_space<vmem>>, %arg12: memref<1x8x128xf32, #tpu.memory_space<vmem>>) attributes {dimension_semantics = [#tpu.dimension_semantics<parallel>], iteration_bounds = array<i64: 2>, scalar_prefetch = 0 : i64, scratch_operands = 0 : i64, tpu.core_type = #tpu.core_type<tc>, window_params = [{transform_indices = @transform_0, window_bounds = array<i64: 1, 8, 64>}, {pipeline_mode = #tpu.pipeline_mode<synchronous>, transform_indices = @transform_1, window_bounds = array<i64: 64, 32>}, {pipeline_mode = #tpu.pipeline_mode<synchronous>, transform_indices = @transform_2, window_bounds = array<i64: 1, 32>}, {pipeline_mode = #tpu.pipeline_mode<synchronous>, transform_indices = @transform_3, window_bounds = array<i64: 32, 128>}, {pipeline_mode = #tpu.pipeline_mode<synchronous>, transform_indices = @transform_4, window_bounds = array<i64: 1, 128>}, {pipeline_mode = #tpu.pipeline_mode<synchronous>, transform_indices = @transform_5, window_bounds = array<i64: 32, 32>}, {pipeline_mode = #tpu.pipeline_mode<synchronous>, transform_indices = @transform_6, window_bounds = array<i64: 1, 32>}, {pipeline_mode = #tpu.pipeline_mode<synchronous>, transform_indices = @transform_7, window_bounds = array<i64: 32, 128>}, {pipeline_mode = #tpu.pipeline_mode<synchronous>, transform_indices = @transform_8, window_bounds = array<i64: 1, 128>}, {transform_indices = @transform_9, window_bounds = array<i64: 1, 8, 128>}, {transform_indices = @transform_10, window_bounds = array<i64: 1, 8, 128>}, {transform_indices = @transform_11, window_bounds = array<i64: 1, 8, 128>}]} {
    %c0 = arith.constant 0 : index
    %c0_0 = arith.constant 0 : index
    %c0_1 = arith.constant 0 : index
    %0 = vector.load %arg1[%c0, %c0_0, %c0_1] : memref<1x8x64xbf16, #tpu.memory_space<vmem>>, vector<1x8x64xbf16>
    %1 = vector.shape_cast %0 : vector<1x8x64xbf16> to vector<8x64xbf16>
    %c0_2 = arith.constant 0 : index
    %c0_3 = arith.constant 0 : index
    %2 = vector.load %arg2[%c0_2, %c0_3] : memref<64x32xbf16, #tpu.memory_space<vmem>>, vector<64x32xbf16>
    %cst = arith.constant dense<0.000000e+00> : vector<8x32xf32>
    %3 = tpu.matmul %1, %2, %cst {dimension_numbers = #tpu.dot_dimension_numbers<[1], [0], [0], [1], [0, 0, 1, 1], [], []>} : vector<8x64xbf16>, vector<64x32xbf16>, vector<8x32xf32> -> vector<8x32xf32>
    %c0_4 = arith.constant 0 : index
    %c0_5 = arith.constant 0 : index
    %4 = vector.load %arg3[%c0_4, %c0_5] : memref<1x32xf32, #tpu.memory_space<vmem>>, vector<1x32xf32>
    %5 = vector.broadcast %4 : vector<1x32xf32> to vector<8x32xf32>
    %6 = arith.addf %3, %5 : vector<8x32xf32>
    %cst_6 = arith.constant 0.000000e+00 : f32
    %7 = vector.broadcast %cst_6 : f32 to vector<8x32xf32>
    %8 = arith.maximumf %6, %7 : vector<8x32xf32>
    %9 = arith.truncf %8 : vector<8x32xf32> to vector<8x32xbf16>
    %c0_7 = arith.constant 0 : index
    %c0_8 = arith.constant 0 : index
    %10 = vector.load %arg4[%c0_7, %c0_8] : memref<32x128xbf16, #tpu.memory_space<vmem>>, vector<32x128xbf16>
    %cst_9 = arith.constant dense<0.000000e+00> : vector<8x128xf32>
    %11 = tpu.matmul %9, %10, %cst_9 {dimension_numbers = #tpu.dot_dimension_numbers<[1], [0], [0], [1], [0, 0, 1, 1], [], []>} : vector<8x32xbf16>, vector<32x128xbf16>, vector<8x128xf32> -> vector<8x128xf32>
    %c0_10 = arith.constant 0 : index
    %c0_11 = arith.constant 0 : index
    %12 = vector.load %arg5[%c0_10, %c0_11] : memref<1x128xf32, #tpu.memory_space<vmem>>, vector<1x128xf32>
    %13 = vector.broadcast %12 : vector<1x128xf32> to vector<8x128xf32>
    %14 = arith.addf %11, %13 : vector<8x128xf32>
    %c0_12 = arith.constant 0 : index
    %c0_13 = arith.constant 0 : index
    %c0_14 = arith.constant 0 : index
    %15 = vector.load %arg10[%c0_12, %c0_13, %c0_14] : memref<1x8x128xf32, #tpu.memory_space<vmem>>, vector<1x8x128xf32>
    %16 = vector.shape_cast %15 : vector<1x8x128xf32> to vector<8x128xf32>
    %17 = vector.shape_cast %14 : vector<8x128xf32> to vector<1x8x128xf32>
    tpu.vector_store %arg10[%c0_12, %c0_13, %c0_14], %17 {strides = array<i32>} : memref<1x8x128xf32, #tpu.memory_space<vmem>>, vector<1x8x128xf32>,
    %18 = tpu.iota {dimensions = array<i32: 1>} : vector<8x128xi32>
    %c5_i32 = arith.constant 5 : i32
    %19 = vector.broadcast %c5_i32 : i32 to vector<8x128xi32>
    %20 = arith.cmpi slt, %18, %19 : vector<8x128xi32>
    %cst_15 = arith.constant -1.000000e+30 : f32
    %21 = vector.broadcast %cst_15 : f32 to vector<8x128xf32>
    %22 = arith.select %20, %14, %21 : vector<8x128xi1>, vector<8x128xf32>
    %cst_16 = arith.constant dense<0xFF800000> : vector<8xf32>
    %23 = vector.multi_reduction <maximumf>, %22, %cst_16 [1] : vector<8x128xf32> to vector<8xf32>
    %24 = vector.shape_cast %23 : vector<8xf32> to vector<8x1xf32>
    %25 = vector.broadcast %24 : vector<8x1xf32> to vector<8x128xf32>
    %26 = arith.subf %22, %25 : vector<8x128xf32>
    %27 = math.exp %26 : vector<8x128xf32>
    %cst_17 = arith.constant dense<0.000000e+00> : vector<8xf32>
    %28 = vector.multi_reduction <add>, %27, %cst_17 [1] : vector<8x128xf32> to vector<8xf32>
    %29 = vector.shape_cast %28 : vector<8xf32> to vector<8x1xf32>
    %30 = vector.broadcast %29 : vector<8x1xf32> to vector<8x128xf32>
    %31 = arith.divf %27, %30 : vector<8x128xf32>
    %c0_18 = arith.constant 0 : index
    %c0_19 = arith.constant 0 : index
    %c0_20 = arith.constant 0 : index
    %32 = vector.load %arg11[%c0_18, %c0_19, %c0_20] : memref<1x8x128xf32, #tpu.memory_space<vmem>>, vector<1x8x128xf32>
    %33 = vector.shape_cast %32 : vector<1x8x128xf32> to vector<8x128xf32>
    %34 = vector.shape_cast %31 : vector<8x128xf32> to vector<1x8x128xf32>
    tpu.vector_store %arg11[%c0_18, %c0_19, %c0_20], %34 {strides = array<i32>} : memref<1x8x128xf32, #tpu.memory_space<vmem>>, vector<1x8x128xf32>,
    %c0_21 = arith.constant 0 : index
    %c0_22 = arith.constant 0 : index
    %35 = vector.load %arg6[%c0_21, %c0_22] : memref<32x32xbf16, #tpu.memory_space<vmem>>, vector<32x32xbf16>
    %cst_23 = arith.constant dense<0.000000e+00> : vector<8x32xf32>
    %36 = tpu.matmul %9, %35, %cst_23 {dimension_numbers = #tpu.dot_dimension_numbers<[1], [0], [0], [1], [0, 0, 1, 1], [], []>} : vector<8x32xbf16>, vector<32x32xbf16>, vector<8x32xf32> -> vector<8x32xf32>
    %c0_24 = arith.constant 0 : index
    %c0_25 = arith.constant 0 : index
    %37 = vector.load %arg7[%c0_24, %c0_25] : memref<1x32xf32, #tpu.memory_space<vmem>>, vector<1x32xf32>
    %38 = vector.broadcast %37 : vector<1x32xf32> to vector<8x32xf32>
    %39 = arith.addf %36, %38 : vector<8x32xf32>
    %cst_26 = arith.constant 0.000000e+00 : f32
    %40 = vector.broadcast %cst_26 : f32 to vector<8x32xf32>
    %41 = arith.maximumf %39, %40 : vector<8x32xf32>
    %42 = arith.truncf %41 : vector<8x32xf32> to vector<8x32xbf16>
    %c0_27 = arith.constant 0 : index
    %c0_28 = arith.constant 0 : index
    %43 = vector.load %arg8[%c0_27, %c0_28] : memref<32x128xbf16, #tpu.memory_space<vmem>>, vector<32x128xbf16>
    %cst_29 = arith.constant dense<0.000000e+00> : vector<8x128xf32>
    %44 = tpu.matmul %42, %43, %cst_29 {dimension_numbers = #tpu.dot_dimension_numbers<[1], [0], [0], [1], [0, 0, 1, 1], [], []>} : vector<8x32xbf16>, vector<32x128xbf16>, vector<8x128xf32> -> vector<8x128xf32>
    %c0_30 = arith.constant 0 : index
    %c0_31 = arith.constant 0 : index
    %45 = vector.load %arg9[%c0_30, %c0_31] : memref<1x128xf32, #tpu.memory_space<vmem>>, vector<1x128xf32>
    %46 = vector.broadcast %45 : vector<1x128xf32> to vector<8x128xf32>
    %47 = arith.addf %44, %46 : vector<8x128xf32>
    %48 = arith.negf %47 : vector<8x128xf32>
    %49 = math.exp %48 : vector<8x128xf32>
    %cst_32 = arith.constant 1.000000e+00 : f32
    %50 = vector.broadcast %cst_32 : f32 to vector<8x128xf32>
    %51 = arith.addf %50, %49 : vector<8x128xf32>
    %52 = arith.divf %50, %51 : vector<8x128xf32>
    %c0_33 = arith.constant 0 : index
    %c0_34 = arith.constant 0 : index
    %c0_35 = arith.constant 0 : index
    %53 = vector.load %arg12[%c0_33, %c0_34, %c0_35] : memref<1x8x128xf32, #tpu.memory_space<vmem>>, vector<1x8x128xf32>
    %54 = vector.shape_cast %53 : vector<1x8x128xf32> to vector<8x128xf32>
    %55 = vector.shape_cast %52 : vector<8x128xf32> to vector<1x8x128xf32>
    tpu.vector_store %arg12[%c0_33, %c0_34, %c0_35], %55 {strides = array<i32>} : memref<1x8x128xf32, #tpu.memory_space<vmem>>, vector<1x8x128xf32>,
    return
  }
  func.func @transform_0(%arg0: i32) -> (i32, i32, i32) {
    %c0_i32 = arith.constant 0 : i32
    %c0_i32_0 = arith.constant 0 : i32
    %c0_i32_1 = arith.constant 0 : i32
    return %arg0, %c0_i32, %c0_i32_0 : i32, i32, i32
  }
  func.func @transform_1(%arg0: i32) -> (i32, i32) {
    %c0_i32 = arith.constant 0 : i32
    %c0_i32_0 = arith.constant 0 : i32
    %c0_i32_1 = arith.constant 0 : i32
    return %c0_i32, %c0_i32_0 : i32, i32
  }
  func.func @transform_2(%arg0: i32) -> (i32, i32) {
    %c0_i32 = arith.constant 0 : i32
    %c0_i32_0 = arith.constant 0 : i32
    %c0_i32_1 = arith.constant 0 : i32
    return %c0_i32, %c0_i32_0 : i32, i32
  }
  func.func @transform_3(%arg0: i32) -> (i32, i32) {
    %c0_i32 = arith.constant 0 : i32
    %c0_i32_0 = arith.constant 0 : i32
    %c0_i32_1 = arith.constant 0 : i32
    return %c0_i32, %c0_i32_0 : i32, i32
  }
  func.func @transform_4(%arg0: i32) -> (i32, i32) {
    %c0_i32 = arith.constant 0 : i32
    %c0_i32_0 = arith.constant 0 : i32
    %c0_i32_1 = arith.constant 0 : i32
    return %c0_i32, %c0_i32_0 : i32, i32
  }
  func.func @transform_5(%arg0: i32) -> (i32, i32) {
    %c0_i32 = arith.constant 0 : i32
    %c0_i32_0 = arith.constant 0 : i32
    %c0_i32_1 = arith.constant 0 : i32
    return %c0_i32, %c0_i32_0 : i32, i32
  }
  func.func @transform_6(%arg0: i32) -> (i32, i32) {
    %c0_i32 = arith.constant 0 : i32
    %c0_i32_0 = arith.constant 0 : i32
    %c0_i32_1 = arith.constant 0 : i32
    return %c0_i32, %c0_i32_0 : i32, i32
  }
  func.func @transform_7(%arg0: i32) -> (i32, i32) {
    %c0_i32 = arith.constant 0 : i32
    %c0_i32_0 = arith.constant 0 : i32
    %c0_i32_1 = arith.constant 0 : i32
    return %c0_i32, %c0_i32_0 : i32, i32
  }
  func.func @transform_8(%arg0: i32) -> (i32, i32) {
    %c0_i32 = arith.constant 0 : i32
    %c0_i32_0 = arith.constant 0 : i32
    %c0_i32_1 = arith.constant 0 : i32
    return %c0_i32, %c0_i32_0 : i32, i32
  }
  func.func @transform_9(%arg0: i32) -> (i32, i32, i32) {
    %c0_i32 = arith.constant 0 : i32
    %c0_i32_0 = arith.constant 0 : i32
    %c0_i32_1 = arith.constant 0 : i32
    return %arg0, %c0_i32, %c0_i32_0 : i32, i32, i32
  }
  func.func @transform_10(%arg0: i32) -> (i32, i32, i32) {
    %c0_i32 = arith.constant 0 : i32
    %c0_i32_0 = arith.constant 0 : i32
    %c0_i32_1 = arith.constant 0 : i32
    return %arg0, %c0_i32, %c0_i32_0 : i32, i32, i32
  }
  func.func @transform_11(%arg0: i32) -> (i32, i32, i32) {
    %c0_i32 = arith.constant 0 : i32
    %c0_i32_0 = arith.constant 0 : i32
    %c0_i32_1 = arith.constant 0 : i32
    return %arg0, %c0_i32, %c0_i32_0 : i32, i32, i32
  }
}

module attributes {stable_mosaic.version = 11 : i64} {
  func.func @_loss_kernel(%arg0: i32, %arg1: memref<16x1xf32, #tpu.memory_space<vmem>>, %arg2: memref<16x1xf32, #tpu.memory_space<vmem>>, %arg3: memref<16x4xf32, #tpu.memory_space<vmem>>, %arg4: memref<16x4xf32, #tpu.memory_space<vmem>>, %arg5: memref<16x4xf32, #tpu.memory_space<vmem>>, %arg6: memref<8x5xf32, #tpu.memory_space<vmem>>, %arg7: memref<8x5xf32, #tpu.memory_space<vmem>>, %arg8: memref<8x4xf32, #tpu.memory_space<vmem>>, %arg9: memref<8x4xf32, #tpu.memory_space<vmem>>, %arg10: memref<8x4xf32, #tpu.memory_space<vmem>>, %arg11: memref<8x4xf32, #tpu.memory_space<vmem>>, %arg12: memref<16x1xf32, #tpu.memory_space<vmem>>, %arg13: memref<16x1xf32, #tpu.memory_space<vmem>>, %arg14: memref<8x4xf32, #tpu.memory_space<vmem>>, %arg15: memref<8x4xf32, #tpu.memory_space<vmem>>, %arg16: memref<8x4xf32, #tpu.memory_space<vmem>>, %arg17: memref<8x4xf32, #tpu.memory_space<vmem>>, %arg18: memref<1x8xf32, #tpu.memory_space<vmem>>) attributes {dimension_semantics = [#tpu.dimension_semantics<arbitrary>], iteration_bounds = array<i64: 1>, scalar_prefetch = 0 : i64, scratch_operands = 0 : i64, tpu.core_type = #tpu.core_type<tc>, window_params = [{pipeline_mode = #tpu.pipeline_mode<synchronous>, transform_indices = @transform_0, window_bounds = array<i64: 16, 1>}, {pipeline_mode = #tpu.pipeline_mode<synchronous>, transform_indices = @transform_1, window_bounds = array<i64: 16, 1>}, {pipeline_mode = #tpu.pipeline_mode<synchronous>, transform_indices = @transform_2, window_bounds = array<i64: 16, 4>}, {pipeline_mode = #tpu.pipeline_mode<synchronous>, transform_indices = @transform_3, window_bounds = array<i64: 16, 4>}, {pipeline_mode = #tpu.pipeline_mode<synchronous>, transform_indices = @transform_4, window_bounds = array<i64: 16, 4>}, {pipeline_mode = #tpu.pipeline_mode<synchronous>, transform_indices = @transform_5, window_bounds = array<i64: 8, 5>}, {pipeline_mode = #tpu.pipeline_mode<synchronous>, transform_indices = @transform_6, window_bounds = array<i64: 8, 5>}, {pipeline_mode = #tpu.pipeline_mode<synchronous>, transform_indices = @transform_7, window_bounds = array<i64: 8, 4>}, {pipeline_mode = #tpu.pipeline_mode<synchronous>, transform_indices = @transform_8, window_bounds = array<i64: 8, 4>}, {pipeline_mode = #tpu.pipeline_mode<synchronous>, transform_indices = @transform_9, window_bounds = array<i64: 8, 4>}, {pipeline_mode = #tpu.pipeline_mode<synchronous>, transform_indices = @transform_10, window_bounds = array<i64: 8, 4>}, {pipeline_mode = #tpu.pipeline_mode<synchronous>, transform_indices = @transform_11, window_bounds = array<i64: 16, 1>}, {pipeline_mode = #tpu.pipeline_mode<synchronous>, transform_indices = @transform_12, window_bounds = array<i64: 16, 1>}, {pipeline_mode = #tpu.pipeline_mode<synchronous>, transform_indices = @transform_13, window_bounds = array<i64: 8, 4>}, {pipeline_mode = #tpu.pipeline_mode<synchronous>, transform_indices = @transform_14, window_bounds = array<i64: 8, 4>}, {pipeline_mode = #tpu.pipeline_mode<synchronous>, transform_indices = @transform_15, window_bounds = array<i64: 8, 4>}, {pipeline_mode = #tpu.pipeline_mode<synchronous>, transform_indices = @transform_16, window_bounds = array<i64: 8, 4>}, {pipeline_mode = #tpu.pipeline_mode<synchronous>, transform_indices = @transform_17, window_bounds = array<i64: 1, 8>}]} {
    %c0 = arith.constant 0 : index
    %c0_0 = arith.constant 0 : index
    %0 = vector.load %arg1[%c0, %c0_0] : memref<16x1xf32, #tpu.memory_space<vmem>>, vector<16x1xf32>
    %c0_1 = arith.constant 0 : index
    %c0_2 = arith.constant 0 : index
    %1 = vector.load %arg2[%c0_1, %c0_2] : memref<16x1xf32, #tpu.memory_space<vmem>>, vector<16x1xf32>
    %cst = arith.constant 1.000000e-10 : f32
    %cst_3 = arith.constant 1.000000e+00 : f32
    %2 = vector.broadcast %cst : f32 to vector<16x1xf32>
    %3 = arith.maximumf %2, %0 : vector<16x1xf32>
    %4 = vector.broadcast %cst_3 : f32 to vector<16x1xf32>
    %5 = arith.minimumf %4, %3 : vector<16x1xf32>
    %6 = math.log %5 : vector<16x1xf32>
    %7 = arith.mulf %1, %6 : vector<16x1xf32>
    %cst_4 = arith.constant 1.000000e+00 : f32
    %8 = vector.broadcast %cst_4 : f32 to vector<16x1xf32>
    %9 = arith.subf %8, %1 : vector<16x1xf32>
    %cst_5 = arith.constant 1.000000e+00 : f32
    %10 = vector.broadcast %cst_5 : f32 to vector<16x1xf32>
    %11 = arith.subf %10, %5 : vector<16x1xf32>
    %12 = math.log %11 : vector<16x1xf32>
    %13 = arith.mulf %9, %12 : vector<16x1xf32>
    %14 = arith.addf %7, %13 : vector<16x1xf32>
    %cst_6 = arith.constant 0.000000e+00 : f32
    %15 = vector.broadcast %cst_6 : f32 to vector<16x1xf32>
    %16 = arith.subf %15, %14 : vector<16x1xf32>
    %cst_7 = arith.constant dense<0.000000e+00> : vector<16xf32>
    %17 = vector.multi_reduction <add>, %16, %cst_7 [1] : vector<16x1xf32> to vector<16xf32>
    %18 = vector.shape_cast %17 : vector<16xf32> to vector<16x1xf32>
    %cst_8 = arith.constant dense<0.000000e+00> : vector<1xf32>
    %19 = vector.multi_reduction <add>, %18, %cst_8 [0] : vector<16x1xf32> to vector<1xf32>
    %20 = vector.shape_cast %19 : vector<1xf32> to vector<1x1xf32>
    %cst_9 = arith.constant 1.600000e+01 : f32
    %21 = vector.broadcast %cst_9 : f32 to vector<1x1xf32>
    %22 = arith.divf %20, %21 : vector<1x1xf32>
    %c0_10 = arith.constant 0 : index
    %c0_11 = arith.constant 0 : index
    %23 = vector.load %arg3[%c0_10, %c0_11] : memref<16x4xf32, #tpu.memory_space<vmem>>, vector<16x4xf32>
    %c0_12 = arith.constant 0 : index
    %c0_13 = arith.constant 0 : index
    %24 = vector.load %arg4[%c0_12, %c0_13] : memref<16x4xf32, #tpu.memory_space<vmem>>, vector<16x4xf32>
    %c0_14 = arith.constant 0 : index
    %c0_15 = arith.constant 0 : index
    %25 = vector.load %arg5[%c0_14, %c0_15] : memref<16x4xf32, #tpu.memory_space<vmem>>, vector<16x4xf32>
    %c0_16 = arith.constant 0 : index
    %c0_17 = arith.constant 0 : index
    %26 = vector.load %arg5[%c0_16, %c0_17] : memref<16x4xf32, #tpu.memory_space<vmem>>, vector<16x4xf32>
    %27 = arith.subf %23, %24 : vector<16x4xf32>
    %28 = arith.mulf %25, %27 : vector<16x4xf32>
    %29 = math.absf %28 : vector<16x4xf32>
    %cst_18 = arith.constant 0.111111112 : f32
    %30 = vector.broadcast %cst_18 : f32 to vector<16x4xf32>
    %31 = arith.cmpf olt, %29, %30 : vector<16x4xf32>
    %32 = arith.extui %31 : vector<16x4xi1> to vector<16x4xi32>
    %33 = arith.sitofp %32 : vector<16x4xi32> to vector<16x4xf32>
    %34 = arith.mulf %28, %28 : vector<16x4xf32>
    %cst_19 = arith.constant 4.500000e+00 : f32
    %35 = vector.broadcast %cst_19 : f32 to vector<16x4xf32>
    %36 = arith.mulf %34, %35 : vector<16x4xf32>
    %37 = arith.mulf %36, %33 : vector<16x4xf32>
    %cst_20 = arith.constant 0.055555556 : f32
    %38 = vector.broadcast %cst_20 : f32 to vector<16x4xf32>
    %39 = arith.subf %29, %38 : vector<16x4xf32>
    %cst_21 = arith.constant 1.000000e+00 : f32
    %40 = vector.broadcast %cst_21 : f32 to vector<16x4xf32>
    %41 = arith.subf %40, %33 : vector<16x4xf32>
    %42 = arith.mulf %39, %41 : vector<16x4xf32>
    %43 = arith.addf %37, %42 : vector<16x4xf32>
    %44 = arith.mulf %26, %43 : vector<16x4xf32>
    %cst_22 = arith.constant dense<0.000000e+00> : vector<16xf32>
    %45 = vector.multi_reduction <add>, %44, %cst_22 [1] : vector<16x4xf32> to vector<16xf32>
    %46 = vector.shape_cast %45 : vector<16xf32> to vector<16x1xf32>
    %cst_23 = arith.constant dense<0.000000e+00> : vector<1xf32>
    %47 = vector.multi_reduction <add>, %46, %cst_23 [0] : vector<16x1xf32> to vector<1xf32>
    %48 = vector.shape_cast %47 : vector<1xf32> to vector<1x1xf32>
    %cst_24 = arith.constant 1.600000e+01 : f32
    %49 = vector.broadcast %cst_24 : f32 to vector<1x1xf32>
    %50 = arith.divf %48, %49 : vector<1x1xf32>
    %c0_25 = arith.constant 0 : index
    %c0_26 = arith.constant 0 : index
    %51 = vector.load %arg6[%c0_25, %c0_26] : memref<8x5xf32, #tpu.memory_space<vmem>>, vector<8x5xf32>
    %c0_27 = arith.constant 0 : index
    %c0_28 = arith.constant 0 : index
    %52 = vector.load %arg7[%c0_27, %c0_28] : memref<8x5xf32, #tpu.memory_space<vmem>>, vector<8x5xf32>
    %cst_29 = arith.constant dense<0xFF800000> : vector<8xf32>
    %53 = vector.multi_reduction <maximumf>, %51, %cst_29 [1] : vector<8x5xf32> to vector<8xf32>
    %54 = vector.shape_cast %53 : vector<8xf32> to vector<8x1xf32>
    %55 = vector.broadcast %54 : vector<8x1xf32> to vector<8x5xf32>
    %56 = arith.subf %51, %55 : vector<8x5xf32>
    %57 = math.exp %56 : vector<8x5xf32>
    %cst_30 = arith.constant dense<0.000000e+00> : vector<8xf32>
    %58 = vector.multi_reduction <add>, %57, %cst_30 [1] : vector<8x5xf32> to vector<8xf32>
    %59 = vector.shape_cast %58 : vector<8xf32> to vector<8x1xf32>
    %60 = math.log %59 : vector<8x1xf32>
    %61 = arith.addf %60, %54 : vector<8x1xf32>
    %62 = vector.broadcast %61 : vector<8x1xf32> to vector<8x5xf32>
    %63 = arith.subf %51, %62 : vector<8x5xf32>
    %64 = arith.mulf %52, %63 : vector<8x5xf32>
    %cst_31 = arith.constant dense<0.000000e+00> : vector<8xf32>
    %65 = vector.multi_reduction <add>, %64, %cst_31 [1] : vector<8x5xf32> to vector<8xf32>
    %66 = vector.shape_cast %65 : vector<8xf32> to vector<8x1xf32>
    %cst_32 = arith.constant 0.000000e+00 : f32
    %67 = vector.broadcast %cst_32 : f32 to vector<8x1xf32>
    %68 = arith.subf %67, %66 : vector<8x1xf32>
    %cst_33 = arith.constant dense<0.000000e+00> : vector<1xf32>
    %69 = vector.multi_reduction <add>, %68, %cst_33 [0] : vector<8x1xf32> to vector<1xf32>
    %70 = vector.shape_cast %69 : vector<1xf32> to vector<1x1xf32>
    %cst_34 = arith.constant 8.000000e+00 : f32
    %71 = vector.broadcast %cst_34 : f32 to vector<1x1xf32>
    %72 = arith.divf %70, %71 : vector<1x1xf32>
    %c0_35 = arith.constant 0 : index
    %c0_36 = arith.constant 0 : index
    %73 = vector.load %arg8[%c0_35, %c0_36] : memref<8x4xf32, #tpu.memory_space<vmem>>, vector<8x4xf32>
    %c0_37 = arith.constant 0 : index
    %c0_38 = arith.constant 0 : index
    %74 = vector.load %arg9[%c0_37, %c0_38] : memref<8x4xf32, #tpu.memory_space<vmem>>, vector<8x4xf32>
    %c0_39 = arith.constant 0 : index
    %c0_40 = arith.constant 0 : index
    %75 = vector.load %arg10[%c0_39, %c0_40] : memref<8x4xf32, #tpu.memory_space<vmem>>, vector<8x4xf32>
    %c0_41 = arith.constant 0 : index
    %c0_42 = arith.constant 0 : index
    %76 = vector.load %arg11[%c0_41, %c0_42] : memref<8x4xf32, #tpu.memory_space<vmem>>, vector<8x4xf32>
    %77 = arith.subf %73, %74 : vector<8x4xf32>
    %78 = arith.mulf %75, %77 : vector<8x4xf32>
    %79 = math.absf %78 : vector<8x4xf32>
    %cst_43 = arith.constant 1.000000e+00 : f32
    %80 = vector.broadcast %cst_43 : f32 to vector<8x4xf32>
    %81 = arith.cmpf olt, %79, %80 : vector<8x4xf32>
    %82 = arith.extui %81 : vector<8x4xi1> to vector<8x4xi32>
    %83 = arith.sitofp %82 : vector<8x4xi32> to vector<8x4xf32>
    %84 = arith.mulf %78, %78 : vector<8x4xf32>
    %cst_44 = arith.constant 5.000000e-01 : f32
    %85 = vector.broadcast %cst_44 : f32 to vector<8x4xf32>
    %86 = arith.mulf %84, %85 : vector<8x4xf32>
    %87 = arith.mulf %86, %83 : vector<8x4xf32>
    %cst_45 = arith.constant 5.000000e-01 : f32
    %88 = vector.broadcast %cst_45 : f32 to vector<8x4xf32>
    %89 = arith.subf %79, %88 : vector<8x4xf32>
    %cst_46 = arith.constant 1.000000e+00 : f32
    %90 = vector.broadcast %cst_46 : f32 to vector<8x4xf32>
    %91 = arith.subf %90, %83 : vector<8x4xf32>
    %92 = arith.mulf %89, %91 : vector<8x4xf32>
    %93 = arith.addf %87, %92 : vector<8x4xf32>
    %94 = arith.mulf %76, %93 : vector<8x4xf32>
    %cst_47 = arith.constant dense<0.000000e+00> : vector<8xf32>
    %95 = vector.multi_reduction <add>, %94, %cst_47 [1] : vector<8x4xf32> to vector<8xf32>
    %96 = vector.shape_cast %95 : vector<8xf32> to vector<8x1xf32>
    %cst_48 = arith.constant dense<0.000000e+00> : vector<1xf32>
    %97 = vector.multi_reduction <add>, %96, %cst_48 [0] : vector<8x1xf32> to vector<1xf32>
    %98 = vector.shape_cast %97 : vector<1xf32> to vector<1x1xf32>
    %cst_49 = arith.constant 8.000000e+00 : f32
    %99 = vector.broadcast %cst_49 : f32 to vector<1x1xf32>
    %100 = arith.divf %98, %99 : vector<1x1xf32>
    %c0_50 = arith.constant 0 : index
    %c0_51 = arith.constant 0 : index
    %101 = vector.load %arg12[%c0_50, %c0_51] : memref<16x1xf32, #tpu.memory_space<vmem>>, vector<16x1xf32>
    %cst_52 = arith.constant 1.000000e-10 : f32
    %cst_53 = arith.constant 1.000000e+00 : f32
    %102 = vector.broadcast %cst_52 : f32 to vector<16x1xf32>
    %103 = arith.maximumf %102, %101 : vector<16x1xf32>
    %104 = vector.broadcast %cst_53 : f32 to vector<16x1xf32>
    %105 = arith.minimumf %104, %103 : vector<16x1xf32>
    %106 = math.log %105 : vector<16x1xf32>
    %cst_54 = arith.constant 0.000000e+00 : f32
    %107 = vector.broadcast %cst_54 : f32 to vector<16x1xf32>
    %108 = arith.subf %107, %106 : vector<16x1xf32>
    %cst_55 = arith.constant dense<0.000000e+00> : vector<16xf32>
    %109 = vector.multi_reduction <add>, %108, %cst_55 [1] : vector<16x1xf32> to vector<16xf32>
    %110 = vector.shape_cast %109 : vector<16xf32> to vector<16x1xf32>
    %cst_56 = arith.constant dense<0.000000e+00> : vector<1xf32>
    %111 = vector.multi_reduction <add>, %110, %cst_56 [0] : vector<16x1xf32> to vector<1xf32>
    %112 = vector.shape_cast %111 : vector<1xf32> to vector<1x1xf32>
    %cst_57 = arith.constant 1.600000e+01 : f32
    %113 = vector.broadcast %cst_57 : f32 to vector<1x1xf32>
    %114 = arith.divf %112, %113 : vector<1x1xf32>
    %c0_58 = arith.constant 0 : index
    %c0_59 = arith.constant 0 : index
    %115 = vector.load %arg14[%c0_58, %c0_59] : memref<8x4xf32, #tpu.memory_space<vmem>>, vector<8x4xf32>
    %c0_60 = arith.constant 0 : index
    %c0_61 = arith.constant 0 : index
    %116 = vector.load %arg15[%c0_60, %c0_61] : memref<8x4xf32, #tpu.memory_space<vmem>>, vector<8x4xf32>
    %cst_62 = arith.constant 1.000000e-10 : f32
    %117 = vector.broadcast %cst_62 : f32 to vector<8x4xf32>
    %118 = arith.addf %115, %117 : vector<8x4xf32>
    %119 = math.log %118 : vector<8x4xf32>
    %120 = arith.mulf %116, %119 : vector<8x4xf32>
    %cst_63 = arith.constant 1.000000e+00 : f32
    %121 = vector.broadcast %cst_63 : f32 to vector<8x4xf32>
    %122 = arith.subf %121, %116 : vector<8x4xf32>
    %cst_64 = arith.constant 1.000000e+00 : f32
    %123 = vector.broadcast %cst_64 : f32 to vector<8x4xf32>
    %124 = arith.subf %123, %115 : vector<8x4xf32>
    %cst_65 = arith.constant 1.000000e-10 : f32
    %125 = vector.broadcast %cst_65 : f32 to vector<8x4xf32>
    %126 = arith.addf %124, %125 : vector<8x4xf32>
    %127 = math.log %126 : vector<8x4xf32>
    %128 = arith.mulf %122, %127 : vector<8x4xf32>
    %129 = arith.addf %120, %128 : vector<8x4xf32>
    %cst_66 = arith.constant 0.000000e+00 : f32
    %130 = vector.broadcast %cst_66 : f32 to vector<8x4xf32>
    %131 = arith.subf %130, %129 : vector<8x4xf32>
    %132 = vector.extract_strided_slice %131 {offsets = [0, 0], sizes = [8, 1], strides = [1, 1]} : vector<8x4xf32> to vector<8x1xf32>
    %cst_67 = arith.constant 5.000000e-01 : f32
    %133 = vector.broadcast %cst_67 : f32 to vector<8x1xf32>
    %134 = arith.cmpf ogt, %132, %133 : vector<8x1xf32>
    %135 = arith.extui %134 : vector<8x1xi1> to vector<8x1xi32>
    %136 = arith.sitofp %135 : vector<8x1xi32> to vector<8x1xf32>
    %137 = tpu.iota {dimensions = array<i32: 1>} : vector<8x4xi32>
    %c0_i32 = arith.constant 0 : i32
    %138 = vector.broadcast %c0_i32 : i32 to vector<8x4xi32>
    %139 = arith.cmpi eq, %137, %138 : vector<8x4xi32>
    %cst_68 = arith.constant 1.000000e+00 : f32
    %140 = vector.shape_cast %136 : vector<8x1xf32> to vector<8x1xf32>
    %141 = vector.broadcast %140 : vector<8x1xf32> to vector<8x4xf32>
    %142 = vector.broadcast %cst_68 : f32 to vector<8x4xf32>
    %143 = arith.select %139, %141, %142 : vector<8x4xi1>, vector<8x4xf32>
    %144 = arith.mulf %131, %143 : vector<8x4xf32>
    %cst_69 = arith.constant dense<0.000000e+00> : vector<8xf32>
    %145 = vector.multi_reduction <add>, %144, %cst_69 [1] : vector<8x4xf32> to vector<8xf32>
    %146 = vector.shape_cast %145 : vector<8xf32> to vector<8x1xf32>
    %cst_70 = arith.constant dense<0.000000e+00> : vector<1xf32>
    %147 = vector.multi_reduction <add>, %146, %cst_70 [0] : vector<8x1xf32> to vector<1xf32>
    %148 = vector.shape_cast %147 : vector<1xf32> to vector<1x1xf32>
    %cst_71 = arith.constant 3.200000e+01 : f32
    %149 = vector.broadcast %cst_71 : f32 to vector<1x1xf32>
    %150 = arith.divf %148, %149 : vector<1x1xf32>
    %c0_72 = arith.constant 0 : index
    %c0_73 = arith.constant 0 : index
    %151 = vector.load %arg13[%c0_72, %c0_73] : memref<16x1xf32, #tpu.memory_space<vmem>>, vector<16x1xf32>
    %cst_74 = arith.constant 1.000000e-10 : f32
    %cst_75 = arith.constant 1.000000e+00 : f32
    %152 = vector.broadcast %cst_74 : f32 to vector<16x1xf32>
    %153 = arith.maximumf %152, %151 : vector<16x1xf32>
    %154 = vector.broadcast %cst_75 : f32 to vector<16x1xf32>
    %155 = arith.minimumf %154, %153 : vector<16x1xf32>
    %cst_76 = arith.constant 1.000000e+00 : f32
    %156 = vector.broadcast %cst_76 : f32 to vector<16x1xf32>
    %157 = arith.subf %156, %155 : vector<16x1xf32>
    %158 = math.log %157 : vector<16x1xf32>
    %cst_77 = arith.constant 0.000000e+00 : f32
    %159 = vector.broadcast %cst_77 : f32 to vector<16x1xf32>
    %160 = arith.subf %159, %158 : vector<16x1xf32>
    %cst_78 = arith.constant dense<0.000000e+00> : vector<16xf32>
    %161 = vector.multi_reduction <add>, %160, %cst_78 [1] : vector<16x1xf32> to vector<16xf32>
    %162 = vector.shape_cast %161 : vector<16xf32> to vector<16x1xf32>
    %cst_79 = arith.constant dense<0.000000e+00> : vector<1xf32>
    %163 = vector.multi_reduction <add>, %162, %cst_79 [0] : vector<16x1xf32> to vector<1xf32>
    %164 = vector.shape_cast %163 : vector<1xf32> to vector<1x1xf32>
    %cst_80 = arith.constant 1.600000e+01 : f32
    %165 = vector.broadcast %cst_80 : f32 to vector<1x1xf32>
    %166 = arith.divf %164, %165 : vector<1x1xf32>
    %c0_81 = arith.constant 0 : index
    %c0_82 = arith.constant 0 : index
    %167 = vector.load %arg16[%c0_81, %c0_82] : memref<8x4xf32, #tpu.memory_space<vmem>>, vector<8x4xf32>
    %c0_83 = arith.constant 0 : index
    %c0_84 = arith.constant 0 : index
    %168 = vector.load %arg17[%c0_83, %c0_84] : memref<8x4xf32, #tpu.memory_space<vmem>>, vector<8x4xf32>
    %cst_85 = arith.constant 1.000000e-10 : f32
    %169 = vector.broadcast %cst_85 : f32 to vector<8x4xf32>
    %170 = arith.addf %167, %169 : vector<8x4xf32>
    %171 = math.log %170 : vector<8x4xf32>
    %172 = arith.mulf %168, %171 : vector<8x4xf32>
    %cst_86 = arith.constant 1.000000e+00 : f32
    %173 = vector.broadcast %cst_86 : f32 to vector<8x4xf32>
    %174 = arith.subf %173, %168 : vector<8x4xf32>
    %cst_87 = arith.constant 1.000000e+00 : f32
    %175 = vector.broadcast %cst_87 : f32 to vector<8x4xf32>
    %176 = arith.subf %175, %167 : vector<8x4xf32>
    %cst_88 = arith.constant 1.000000e-10 : f32
    %177 = vector.broadcast %cst_88 : f32 to vector<8x4xf32>
    %178 = arith.addf %176, %177 : vector<8x4xf32>
    %179 = math.log %178 : vector<8x4xf32>
    %180 = arith.mulf %174, %179 : vector<8x4xf32>
    %181 = arith.addf %172, %180 : vector<8x4xf32>
    %cst_89 = arith.constant 0.000000e+00 : f32
    %182 = vector.broadcast %cst_89 : f32 to vector<8x4xf32>
    %183 = arith.subf %182, %181 : vector<8x4xf32>
    %184 = vector.extract_strided_slice %183 {offsets = [0, 0], sizes = [8, 1], strides = [1, 1]} : vector<8x4xf32> to vector<8x1xf32>
    %cst_90 = arith.constant 5.000000e-01 : f32
    %185 = vector.broadcast %cst_90 : f32 to vector<8x1xf32>
    %186 = arith.cmpf ogt, %184, %185 : vector<8x1xf32>
    %187 = arith.extui %186 : vector<8x1xi1> to vector<8x1xi32>
    %188 = arith.sitofp %187 : vector<8x1xi32> to vector<8x1xf32>
    %189 = tpu.iota {dimensions = array<i32: 1>} : vector<8x4xi32>
    %c0_i32_91 = arith.constant 0 : i32
    %190 = vector.broadcast %c0_i32_91 : i32 to vector<8x4xi32>
    %191 = arith.cmpi eq, %189, %190 : vector<8x4xi32>
    %cst_92 = arith.constant 1.000000e+00 : f32
    %192 = vector.shape_cast %188 : vector<8x1xf32> to vector<8x1xf32>
    %193 = vector.broadcast %192 : vector<8x1xf32> to vector<8x4xf32>
    %194 = vector.broadcast %cst_92 : f32 to vector<8x4xf32>
    %195 = arith.select %191, %193, %194 : vector<8x4xi1>, vector<8x4xf32>
    %196 = arith.mulf %183, %195 : vector<8x4xf32>
    %cst_93 = arith.constant dense<0.000000e+00> : vector<8xf32>
    %197 = vector.multi_reduction <add>, %196, %cst_93 [1] : vector<8x4xf32> to vector<8xf32>
    %198 = vector.shape_cast %197 : vector<8xf32> to vector<8x1xf32>
    %cst_94 = arith.constant dense<0.000000e+00> : vector<1xf32>
    %199 = vector.multi_reduction <add>, %198, %cst_94 [0] : vector<8x1xf32> to vector<1xf32>
    %200 = vector.shape_cast %199 : vector<1xf32> to vector<1x1xf32>
    %cst_95 = arith.constant 3.200000e+01 : f32
    %201 = vector.broadcast %cst_95 : f32 to vector<1x1xf32>
    %202 = arith.divf %200, %201 : vector<1x1xf32>
    %203 = tpu.iota {dimensions = array<i32: 1>} : vector<1x8xi32>
    %cst_96 = arith.constant 0.000000e+00 : f32
    %204 = vector.broadcast %cst_96 : f32 to vector<1x8xf32>
    %c0_i32_97 = arith.constant 0 : i32
    %205 = vector.broadcast %c0_i32_97 : i32 to vector<1x8xi32>
    %206 = arith.cmpi eq, %203, %205 : vector<1x8xi32>
    %cst_98 = arith.constant 0.000000e+00 : f32
    %207 = vector.shape_cast %22 : vector<1x1xf32> to vector<1x1xf32>
    %208 = vector.broadcast %207 : vector<1x1xf32> to vector<1x8xf32>
    %209 = vector.broadcast %cst_98 : f32 to vector<1x8xf32>
    %210 = arith.select %206, %208, %209 : vector<1x8xi1>, vector<1x8xf32>
    %211 = arith.addf %204, %210 : vector<1x8xf32>
    %c1_i32 = arith.constant 1 : i32
    %212 = vector.broadcast %c1_i32 : i32 to vector<1x8xi32>
    %213 = arith.cmpi eq, %203, %212 : vector<1x8xi32>
    %cst_99 = arith.constant 0.000000e+00 : f32
    %214 = vector.shape_cast %50 : vector<1x1xf32> to vector<1x1xf32>
    %215 = vector.broadcast %214 : vector<1x1xf32> to vector<1x8xf32>
    %216 = vector.broadcast %cst_99 : f32 to vector<1x8xf32>
    %217 = arith.select %213, %215, %216 : vector<1x8xi1>, vector<1x8xf32>
    %218 = arith.addf %211, %217 : vector<1x8xf32>
    %c2_i32 = arith.constant 2 : i32
    %219 = vector.broadcast %c2_i32 : i32 to vector<1x8xi32>
    %220 = arith.cmpi eq, %203, %219 : vector<1x8xi32>
    %cst_100 = arith.constant 0.000000e+00 : f32
    %221 = vector.shape_cast %72 : vector<1x1xf32> to vector<1x1xf32>
    %222 = vector.broadcast %221 : vector<1x1xf32> to vector<1x8xf32>
    %223 = vector.broadcast %cst_100 : f32 to vector<1x8xf32>
    %224 = arith.select %220, %222, %223 : vector<1x8xi1>, vector<1x8xf32>
    %225 = arith.addf %218, %224 : vector<1x8xf32>
    %c3_i32 = arith.constant 3 : i32
    %226 = vector.broadcast %c3_i32 : i32 to vector<1x8xi32>
    %227 = arith.cmpi eq, %203, %226 : vector<1x8xi32>
    %cst_101 = arith.constant 0.000000e+00 : f32
    %228 = vector.shape_cast %100 : vector<1x1xf32> to vector<1x1xf32>
    %229 = vector.broadcast %228 : vector<1x1xf32> to vector<1x8xf32>
    %230 = vector.broadcast %cst_101 : f32 to vector<1x8xf32>
    %231 = arith.select %227, %229, %230 : vector<1x8xi1>, vector<1x8xf32>
    %232 = arith.addf %225, %231 : vector<1x8xf32>
    %c4_i32 = arith.constant 4 : i32
    %233 = vector.broadcast %c4_i32 : i32 to vector<1x8xi32>
    %234 = arith.cmpi eq, %203, %233 : vector<1x8xi32>
    %cst_102 = arith.constant 0.000000e+00 : f32
    %235 = vector.shape_cast %114 : vector<1x1xf32> to vector<1x1xf32>
    %236 = vector.broadcast %235 : vector<1x1xf32> to vector<1x8xf32>
    %237 = vector.broadcast %cst_102 : f32 to vector<1x8xf32>
    %238 = arith.select %234, %236, %237 : vector<1x8xi1>, vector<1x8xf32>
    %239 = arith.addf %232, %238 : vector<1x8xf32>
    %c5_i32 = arith.constant 5 : i32
    %240 = vector.broadcast %c5_i32 : i32 to vector<1x8xi32>
    %241 = arith.cmpi eq, %203, %240 : vector<1x8xi32>
    %cst_103 = arith.constant 0.000000e+00 : f32
    %242 = vector.shape_cast %150 : vector<1x1xf32> to vector<1x1xf32>
    %243 = vector.broadcast %242 : vector<1x1xf32> to vector<1x8xf32>
    %244 = vector.broadcast %cst_103 : f32 to vector<1x8xf32>
    %245 = arith.select %241, %243, %244 : vector<1x8xi1>, vector<1x8xf32>
    %246 = arith.addf %239, %245 : vector<1x8xf32>
    %c6_i32 = arith.constant 6 : i32
    %247 = vector.broadcast %c6_i32 : i32 to vector<1x8xi32>
    %248 = arith.cmpi eq, %203, %247 : vector<1x8xi32>
    %cst_104 = arith.constant 0.000000e+00 : f32
    %249 = vector.shape_cast %166 : vector<1x1xf32> to vector<1x1xf32>
    %250 = vector.broadcast %249 : vector<1x1xf32> to vector<1x8xf32>
    %251 = vector.broadcast %cst_104 : f32 to vector<1x8xf32>
    %252 = arith.select %248, %250, %251 : vector<1x8xi1>, vector<1x8xf32>
    %253 = arith.addf %246, %252 : vector<1x8xf32>
    %c7_i32 = arith.constant 7 : i32
    %254 = vector.broadcast %c7_i32 : i32 to vector<1x8xi32>
    %255 = arith.cmpi eq, %203, %254 : vector<1x8xi32>
    %cst_105 = arith.constant 0.000000e+00 : f32
    %256 = vector.shape_cast %202 : vector<1x1xf32> to vector<1x1xf32>
    %257 = vector.broadcast %256 : vector<1x1xf32> to vector<1x8xf32>
    %258 = vector.broadcast %cst_105 : f32 to vector<1x8xf32>
    %259 = arith.select %255, %257, %258 : vector<1x8xi1>, vector<1x8xf32>
    %260 = arith.addf %253, %259 : vector<1x8xf32>
    %c0_106 = arith.constant 0 : index
    %c0_107 = arith.constant 0 : index
    %261 = vector.load %arg18[%c0_106, %c0_107] : memref<1x8xf32, #tpu.memory_space<vmem>>, vector<1x8xf32>
    tpu.vector_store %arg18[%c0_106, %c0_107], %260 {strides = array<i32>} : memref<1x8xf32, #tpu.memory_space<vmem>>, vector<1x8xf32>,
    return
  }
  func.func @transform_0(%arg0: i32) -> (i32, i32) {
    %c0_i32 = arith.constant 0 : i32
    %c0_i32_0 = arith.constant 0 : i32
    %c0_i32_1 = arith.constant 0 : i32
    return %c0_i32, %c0_i32_0 : i32, i32
  }
  func.func @transform_1(%arg0: i32) -> (i32, i32) {
    %c0_i32 = arith.constant 0 : i32
    %c0_i32_0 = arith.constant 0 : i32
    %c0_i32_1 = arith.constant 0 : i32
    return %c0_i32, %c0_i32_0 : i32, i32
  }
  func.func @transform_2(%arg0: i32) -> (i32, i32) {
    %c0_i32 = arith.constant 0 : i32
    %c0_i32_0 = arith.constant 0 : i32
    %c0_i32_1 = arith.constant 0 : i32
    return %c0_i32, %c0_i32_0 : i32, i32
  }
  func.func @transform_3(%arg0: i32) -> (i32, i32) {
    %c0_i32 = arith.constant 0 : i32
    %c0_i32_0 = arith.constant 0 : i32
    %c0_i32_1 = arith.constant 0 : i32
    return %c0_i32, %c0_i32_0 : i32, i32
  }
  func.func @transform_4(%arg0: i32) -> (i32, i32) {
    %c0_i32 = arith.constant 0 : i32
    %c0_i32_0 = arith.constant 0 : i32
    %c0_i32_1 = arith.constant 0 : i32
    return %c0_i32, %c0_i32_0 : i32, i32
  }
  func.func @transform_5(%arg0: i32) -> (i32, i32) {
    %c0_i32 = arith.constant 0 : i32
    %c0_i32_0 = arith.constant 0 : i32
    %c0_i32_1 = arith.constant 0 : i32
    return %c0_i32, %c0_i32_0 : i32, i32
  }
  func.func @transform_6(%arg0: i32) -> (i32, i32) {
    %c0_i32 = arith.constant 0 : i32
    %c0_i32_0 = arith.constant 0 : i32
    %c0_i32_1 = arith.constant 0 : i32
    return %c0_i32, %c0_i32_0 : i32, i32
  }
  func.func @transform_7(%arg0: i32) -> (i32, i32) {
    %c0_i32 = arith.constant 0 : i32
    %c0_i32_0 = arith.constant 0 : i32
    %c0_i32_1 = arith.constant 0 : i32
    return %c0_i32, %c0_i32_0 : i32, i32
  }
  func.func @transform_8(%arg0: i32) -> (i32, i32) {
    %c0_i32 = arith.constant 0 : i32
    %c0_i32_0 = arith.constant 0 : i32
    %c0_i32_1 = arith.constant 0 : i32
    return %c0_i32, %c0_i32_0 : i32, i32
  }
  func.func @transform_9(%arg0: i32) -> (i32, i32) {
    %c0_i32 = arith.constant 0 : i32
    %c0_i32_0 = arith.constant 0 : i32
    %c0_i32_1 = arith.constant 0 : i32
    return %c0_i32, %c0_i32_0 : i32, i32
  }
  func.func @transform_10(%arg0: i32) -> (i32, i32) {
    %c0_i32 = arith.constant 0 : i32
    %c0_i32_0 = arith.constant 0 : i32
    %c0_i32_1 = arith.constant 0 : i32
    return %c0_i32, %c0_i32_0 : i32, i32
  }
  func.func @transform_11(%arg0: i32) -> (i32, i32) {
    %c0_i32 = arith.constant 0 : i32
    %c0_i32_0 = arith.constant 0 : i32
    %c0_i32_1 = arith.constant 0 : i32
    return %c0_i32, %c0_i32_0 : i32, i32
  }
  func.func @transform_12(%arg0: i32) -> (i32, i32) {
    %c0_i32 = arith.constant 0 : i32
    %c0_i32_0 = arith.constant 0 : i32
    %c0_i32_1 = arith.constant 0 : i32
    return %c0_i32, %c0_i32_0 : i32, i32
  }
  func.func @transform_13(%arg0: i32) -> (i32, i32) {
    %c0_i32 = arith.constant 0 : i32
    %c0_i32_0 = arith.constant 0 : i32
    %c0_i32_1 = arith.constant 0 : i32
    return %c0_i32, %c0_i32_0 : i32, i32
  }
  func.func @transform_14(%arg0: i32) -> (i32, i32) {
    %c0_i32 = arith.constant 0 : i32
    %c0_i32_0 = arith.constant 0 : i32
    %c0_i32_1 = arith.constant 0 : i32
    return %c0_i32, %c0_i32_0 : i32, i32
  }
  func.func @transform_15(%arg0: i32) -> (i32, i32) {
    %c0_i32 = arith.constant 0 : i32
    %c0_i32_0 = arith.constant 0 : i32
    %c0_i32_1 = arith.constant 0 : i32
    return %c0_i32, %c0_i32_0 : i32, i32
  }
  func.func @transform_16(%arg0: i32) -> (i32, i32) {
    %c0_i32 = arith.constant 0 : i32
    %c0_i32_0 = arith.constant 0 : i32
    %c0_i32_1 = arith.constant 0 : i32
    return %c0_i32, %c0_i32_0 : i32, i32
  }
  func.func @transform_17(%arg0: i32) -> (i32, i32) {
    %c0_i32 = arith.constant 0 : i32
    %c0_i32_0 = arith.constant 0 : i32
    %c0_i32_1 = arith.constant 0 : i32
    return %c0_i32, %c0_i32_0 : i32, i32
  }
}

</mosaic_0001>

<llo_original>
// kernel: faster_rcnn_forward.4
$region0: #{faster_rcnn_forward.4}
  #allocation0 [shape = 'u32[]', space=smem, size = 0x4, offset = 0x4, fixed_abs, tag = 'smem constant byte address 0x4 - core index']
  #allocation1 [shape = 'u32[144,128]{1,0:T(1,128)}', space=vmem, size = 0x12000, scoped, tag = 'internal scratch']
  %s0 = inlined_call_operand.vmem [shape: bf16[2,16,768], index: 0, kind: input, shape index: {}]
  %s1 = inlined_call_operand.vmem [shape: bf16[768,128], index: 1, kind: input, shape index: {}]
  %s2 = inlined_call_operand.vmem [shape: f32[1,128], index: 2, kind: input, shape index: {}]
  %s3 = inlined_call_operand.vmem [shape: bf16[128,32], index: 3, kind: input, shape index: {}]
  %s4 = inlined_call_operand.vmem [shape: f32[1,32], index: 4, kind: input, shape index: {}]
  %s5 = inlined_call_operand.vmem [shape: bf16[32,128], index: 5, kind: input, shape index: {}]
  %s6 = inlined_call_operand.vmem [shape: f32[1,128], index: 6, kind: input, shape index: {}]
  %s7 = inlined_call_operand.vmem [shape: f32[2,16,128], index: 7, kind: output, shape index: {0}]
  %s8 = inlined_call_operand.vmem [shape: f32[2,16,128], index: 8, kind: output, shape index: {1}]
  %9 = xla_tuple %s7, %s8
  %s10 = sld [smem:[#allocation0]]
  $region69: #{faster_rcnn_forward.4} parent=0
    _
  %s12 = ssub.s32 1, %s10
  %s13 = scalar_select 0, %s12, %s10
  loop: start=0, step=1, limit=4
  $region2: #{faster_rcnn_forward.4} parent=0 // loop_pre_header
    _
  $region3: #{faster_rcnn_forward.4} parent=0 // loop_header
    %s15 = sphi 0, %s19
    %p16 = scmp.ge.s32.totalorder %s15, 4
    %s25 = sphi 0, %s27
    %s28 = sphi 0, %s25
    %s29 = sphi 0, %s28
    %s45 = sphi 0, %s29
    %s49 = sphi 0, %s49
    %s51 = sphi 0, %s49
    %s52 = sphi 0, %s51
    %s66 = sphi 0, %s52
    %s70 = sphi 0, %s70
    %s72 = sphi 0, %s70
    %s73 = sphi 0, %s72
    %s87 = sphi 0, %s73
    %s91 = sphi 0, %s91
    %s93 = sphi 0, %s91
    %s94 = sphi 0, %s93
    %s108 = sphi 0, %s94
    %s112 = sphi 0, %s112
    %s114 = sphi 0, %s112
    %s115 = sphi 0, %s114
    %s129 = sphi 0, %s115
    %s133 = sphi 0, %s133
    %s135 = sphi 0, %s133
    %s136 = sphi 0, %s135
    %s150 = sphi 0, %s136
    %s154 = sphi 0, %s154
    %s156 = sphi 0, %s154
    %s157 = sphi 0, %s156
    %s171 = sphi 0, %s157
    %s177 = sphi 0, %s179
    %s180 = sphi 0, %s177
    %s181 = sphi 0, %s180
    %s197 = sphi 0, %s181
    %s203 = sphi 0, %s205
    %s206 = sphi 0, %s203
    %s207 = sphi 0, %s206
    %s223 = sphi 0, %s207
  $region4: #{faster_rcnn_forward.4} parent=0 // loop_header_branch
    %18 = sbr.rel (%p16) target = $region8
  $region5: #{faster_rcnn_forward.4} parent=0 // loop_body
    %s20 = ssub.s32 %s15, 1
    %s21 = ssub.s32 %s15, 2
    %s22 = sadd.s32 %s15, 1
    %s23 = ssub.s32 %s15, %s22
    %p24 = scmp.eq.s32.totalorder %s23, 0
    %s26 = sadd.s32 %s25, 1
    %s27 = scalar_select %p24, %s25, %s26
    %p30 = pneg %p24
    %p31 = scmp.eq.s32.totalorder %s15, 1
    %p32 = por %p30, %p31
    %p33 = scmp.ne.s32.totalorder %s25, %s28
    %p34 = scmp.eq.s32.totalorder %s15, 0
    %p35 = por %p33, %p34
    %p36 = scmp.ne.s32.totalorder %s25, %s28
    %p37 = scmp.eq.s32.totalorder %s20, 1
    %p38 = por %p36, %p37
    %p39 = scmp.ne.s32.totalorder %s28, %s29
    %p40 = scmp.eq.s32.totalorder %s20, 0
    %p41 = por %p39, %p40
    %p42 = scmp.ne.s32.totalorder %s28, %s29
    %p43 = scmp.eq.s32.totalorder %s21, 1
    %p44 = por %p42, %p43
    %p46 = scmp.ne.s32.totalorder %s29, %s45
    %p47 = scmp.eq.s32.totalorder %s21, 0
    %p48 = por %p46, %p47
    %s50 = sadd.s32 %s49, 1
    %p53 = scmp.eq.s32.totalorder %s15, 1
    %p54 = scmp.ne.s32.totalorder %s49, %s51
    %p55 = scmp.eq.s32.totalorder %s15, 0
    %p56 = por %p54, %p55
    %p57 = scmp.ne.s32.totalorder %s49, %s51
    %p58 = scmp.eq.s32.totalorder %s20, 1
    %p59 = por %p57, %p58
    %p60 = scmp.ne.s32.totalorder %s51, %s52
    %p61 = scmp.eq.s32.totalorder %s20, 0
    %p62 = por %p60, %p61
    %p63 = scmp.ne.s32.totalorder %s51, %s52
    %p64 = scmp.eq.s32.totalorder %s21, 1
    %p65 = por %p63, %p64
    %p67 = scmp.ne.s32.totalorder %s52, %s66
    %p68 = scmp.eq.s32.totalorder %s21, 0
    %p69 = por %p67, %p68
    %s71 = sadd.s32 %s70, 1
    %p74 = scmp.eq.s32.totalorder %s15, 1
    %p75 = scmp.ne.s32.totalorder %s70, %s72
    %p76 = scmp.eq.s32.totalorder %s15, 0
    %p77 = por %p75, %p76
    %p78 = scmp.ne.s32.totalorder %s70, %s72
    %p79 = scmp.eq.s32.totalorder %s20, 1
    %p80 = por %p78, %p79
    %p81 = scmp.ne.s32.totalorder %s72, %s73
    %p82 = scmp.eq.s32.totalorder %s20, 0
    %p83 = por %p81, %p82
    %p84 = scmp.ne.s32.totalorder %s72, %s73
    %p85 = scmp.eq.s32.totalorder %s21, 1
    %p86 = por %p84, %p85
    %p88 = scmp.ne.s32.totalorder %s73, %s87
    %p89 = scmp.eq.s32.totalorder %s21, 0
    %p90 = por %p88, %p89
    %s92 = sadd.s32 %s91, 1
    %p95 = scmp.eq.s32.totalorder %s15, 1
    %p96 = scmp.ne.s32.totalorder %s91, %s93
    %p97 = scmp.eq.s32.totalorder %s15, 0
    %p98 = por %p96, %p97
    %p99 = scmp.ne.s32.totalorder %s91, %s93
    %p100 = scmp.eq.s32.totalorder %s20, 1
    %p101 = por %p99, %p100
    %p102 = scmp.ne.s32.totalorder %s93, %s94
    %p103 = scmp.eq.s32.totalorder %s20, 0
    %p104 = por %p102, %p103
    %p105 = scmp.ne.s32.totalorder %s93, %s94
    %p106 = scmp.eq.s32.totalorder %s21, 1
    %p107 = por %p105, %p106
    %p109 = scmp.ne.s32.totalorder %s94, %s108
    %p110 = scmp.eq.s32.totalorder %s21, 0
    %p111 = por %p109, %p110
    %s113 = sadd.s32 %s112, 1
    %p116 = scmp.eq.s32.totalorder %s15, 1
    %p117 = scmp.ne.s32.totalorder %s112, %s114
    %p118 = scmp.eq.s32.totalorder %s15, 0
    %p119 = por %p117, %p118
    %p120 = scmp.ne.s32.totalorder %s112, %s114
    %p121 = scmp.eq.s32.totalorder %s20, 1
    %p122 = por %p120, %p121
    %p123 = scmp.ne.s32.totalorder %s114, %s115
    %p124 = scmp.eq.s32.totalorder %s20, 0
    %p125 = por %p123, %p124
    %p126 = scmp.ne.s32.totalorder %s114, %s115
    %p127 = scmp.eq.s32.totalorder %s21, 1
    %p128 = por %p126, %p127
    %p130 = scmp.ne.s32.totalorder %s115, %s129
    %p131 = scmp.eq.s32.totalorder %s21, 0
    %p132 = por %p130, %p131
    %s134 = sadd.s32 %s133, 1
    %p137 = scmp.eq.s32.totalorder %s15, 1
    %p138 = scmp.ne.s32.totalorder %s133, %s135
    %p139 = scmp.eq.s32.totalorder %s15, 0
    %p140 = por %p138, %p139
    %p141 = scmp.ne.s32.totalorder %s133, %s135
    %p142 = scmp.eq.s32.totalorder %s20, 1
    %p143 = por %p141, %p142
    %p144 = scmp.ne.s32.totalorder %s135, %s136
    %p145 = scmp.eq.s32.totalorder %s20, 0
    %p146 = por %p144, %p145
    %p147 = scmp.ne.s32.totalorder %s135, %s136
    %p148 = scmp.eq.s32.totalorder %s21, 1
    %p149 = por %p147, %p148
    %p151 = scmp.ne.s32.totalorder %s136, %s150
    %p152 = scmp.eq.s32.totalorder %s21, 0
    %p153 = por %p151, %p152
    %s155 = sadd.s32 %s154, 1
    %p158 = scmp.eq.s32.totalorder %s15, 1
    %p159 = scmp.ne.s32.totalorder %s154, %s156
    %p160 = scmp.eq.s32.totalorder %s15, 0
    %p161 = por %p159, %p160
    %p162 = scmp.ne.s32.totalorder %s154, %s156
    %p163 = scmp.eq.s32.totalorder %s20, 1
    %p164 = por %p162, %p163
    %p165 = scmp.ne.s32.totalorder %s156, %s157
    %p166 = scmp.eq.s32.totalorder %s20, 0
    %p167 = por %p165, %p166
    %p168 = scmp.ne.s32.totalorder %s156, %s157
    %p169 = scmp.eq.s32.totalorder %s21, 1
    %p170 = por %p168, %p169
    %p172 = scmp.ne.s32.totalorder %s157, %s171
    %p173 = scmp.eq.s32.totalorder %s21, 0
    %p174 = por %p172, %p173
    %s175 = ssub.s32 %s15, %s22
    %p176 = scmp.eq.s32.totalorder %s175, 0
    %s178 = sadd.s32 %s177, 1
    %s179 = scalar_select %p176, %s177, %s178
    %p182 = pneg %p176
    %p183 = scmp.eq.s32.totalorder %s15, 1
    %p184 = por %p182, %p183
    %p185 = scmp.ne.s32.totalorder %s177, %s180
    %p186 = scmp.eq.s32.totalorder %s15, 0
    %p187 = por %p185, %p186
    %p188 = scmp.ne.s32.totalorder %s177, %s180
    %p189 = scmp.eq.s32.totalorder %s20, 1
    %p190 = por %p188, %p189
    %p191 = scmp.ne.s32.totalorder %s180, %s181
    %p192 = scmp.eq.s32.totalorder %s20, 0
    %p193 = por %p191, %p192
    %p194 = scmp.ne.s32.totalorder %s180, %s181
    %p195 = scmp.eq.s32.totalorder %s21, 1
    %p196 = por %p194, %p195
    %p198 = scmp.ne.s32.totalorder %s181, %s197
    %p199 = scmp.eq.s32.totalorder %s21, 0
    %p200 = por %p198, %p199
    %s201 = ssub.s32 %s15, %s22
    %p202 = scmp.eq.s32.totalorder %s201, 0
    %s204 = sadd.s32 %s203, 1
    %s205 = scalar_select %p202, %s203, %s204
    %p208 = pneg %p202
    %p209 = scmp.eq.s32.totalorder %s15, 1
    %p210 = por %p208, %p209
    %p211 = scmp.ne.s32.totalorder %s203, %s206
    %p212 = scmp.eq.s32.totalorder %s15, 0
    %p213 = por %p211, %p212
    %p214 = scmp.ne.s32.totalorder %s203, %s206
    %p215 = scmp.eq.s32.totalorder %s20, 1
    %p216 = por %p214, %p215
    %p217 = scmp.ne.s32.totalorder %s206, %s207
    %p218 = scmp.eq.s32.totalorder %s20, 0
    %p219 = por %p217, %p218
    %p220 = scmp.ne.s32.totalorder %s206, %s207
    %p221 = scmp.eq.s32.totalorder %s21, 1
    %p222 = por %p220, %p221
    %p224 = scmp.ne.s32.totalorder %s207, %s223
    %p225 = scmp.eq.s32.totalorder %s21, 0
    %p226 = por %p224, %p225
    %p227 = scmp.le.s32.totalorder 1, %s15
    %p228 = scmp.lt.s32.totalorder %s15, 3
    %p229 = pnand %p227, %p228
    %p230 = pneg %p229
    // Predicated region
    $region9: #{faster_rcnn_forward.4} parent=5 // pred_check
      _
    $region10: #{faster_rcnn_forward.4} parent=5 // pred_check_branch
      %232 = sbr.rel (%p229) target = $region12
    $region11: #{faster_rcnn_forward.4} parent=5 // pred_region
      %s233 = ssub.s32 %s15, 1
      // Predicated region
      $region13: #{faster_rcnn_forward.4} parent=11 // pred_check
        %p234 = pneg %p62
      $region14: #{faster_rcnn_forward.4} parent=11 // pred_check_branch
        %236 = sbr.rel (%p234) target = $region16
      $region15: #{faster_rcnn_forward.4} parent=11 // pred_region
        _
      $region16: #{faster_rcnn_forward.4} parent=11 // pred_fallthru
        _
      // Predicated region
      $region17: #{faster_rcnn_forward.4} parent=11 // pred_check
        %p237 = pneg %p83
      $region18: #{faster_rcnn_forward.4} parent=11 // pred_check_branch
        %239 = sbr.rel (%p237) target = $region20
      $region19: #{faster_rcnn_forward.4} parent=11 // pred_region
        _
      $region20: #{faster_rcnn_forward.4} parent=11 // pred_fallthru
        _
      // Predicated region
      $region21: #{faster_rcnn_forward.4} parent=11 // pred_check
        %p240 = pneg %p104
      $region22: #{faster_rcnn_forward.4} parent=11 // pred_check_branch
        %242 = sbr.rel (%p240) target = $region24
      $region23: #{faster_rcnn_forward.4} parent=11 // pred_region
        _
      $region24: #{faster_rcnn_forward.4} parent=11 // pred_fallthru
        _
      // Predicated region
      $region25: #{faster_rcnn_forward.4} parent=11 // pred_check
        %p243 = pneg %p125
      $region26: #{faster_rcnn_forward.4} parent=11 // pred_check_branch
        %245 = sbr.rel (%p243) target = $region28
      $region27: #{faster_rcnn_forward.4} parent=11 // pred_region
        _
      $region28: #{faster_rcnn_forward.4} parent=11 // pred_fallthru
        _
      // Predicated region
      $region29: #{faster_rcnn_forward.4} parent=11 // pred_check
        %p246 = pneg %p146
      $region30: #{faster_rcnn_forward.4} parent=11 // pred_check_branch
        %248 = sbr.rel (%p246) target = $region32
      $region31: #{faster_rcnn_forward.4} parent=11 // pred_region
        _
      $region32: #{faster_rcnn_forward.4} parent=11 // pred_fallthru
        _
      // Predicated region
      $region33: #{faster_rcnn_forward.4} parent=11 // pred_check
        %p249 = pneg %p167
      $region34: #{faster_rcnn_forward.4} parent=11 // pred_check_branch
        %251 = sbr.rel (%p249) target = $region36
      $region35: #{faster_rcnn_forward.4} parent=11 // pred_region
        _
      $region36: #{faster_rcnn_forward.4} parent=11 // pred_fallthru
        _
    $region12: #{faster_rcnn_forward.4} parent=5 // pred_fallthru
      _
    %p252 = scmp.lt.s32.totalorder %s15, 2
    // Predicated region
    $region37: #{faster_rcnn_forward.4} parent=5 // pred_check
      %p253 = pneg %p252
    $region38: #{faster_rcnn_forward.4} parent=5 // pred_check_branch
      %255 = sbr.rel (%p253) target = $region40
    $region39: #{faster_rcnn_forward.4} parent=5 // pred_region
      // Predicated region
      $region41: #{faster_rcnn_forward.4} parent=39 // pred_check
        %p256 = pneg %p35
      $region42: #{faster_rcnn_forward.4} parent=39 // pred_check_branch
        %258 = sbr.rel (%p256) target = $region44
      $region43: #{faster_rcnn_forward.4} parent=39 // pred_region
        %p259 = scmp.lt.s32.totalorder %s15, 1
        %s260 = scalar_select %p259, %s15, 1
        %s261 = smul.addr %s260, 12
        %s262 = smul.addr %s261, 4
        %s263 = scalar_lea.vmem %s0, %s262
      $region44: #{faster_rcnn_forward.4} parent=39 // pred_fallthru
        _
    $region40: #{faster_rcnn_forward.4} parent=5 // pred_fallthru
      _
    %p264 = scmp.le.s32.totalorder 1, %s15
    %p265 = scmp.lt.s32.totalorder %s15, 3
    %p266 = pnand %p264, %p265
    %p267 = pneg %p266
    // Predicated region
    $region45: #{faster_rcnn_forward.4} parent=5 // pred_check
      _
    $region46: #{faster_rcnn_forward.4} parent=5 // pred_check_branch
      %269 = sbr.rel (%p266) target = $region48
    $region47: #{faster_rcnn_forward.4} parent=5 // pred_region
      %s270 = ssub.s32 %s15, 1
      %p271 = scmp.lt.s32.totalorder %s20, 1
      %s272 = scalar_select %p271, %s20, 1
      %s273 = smul.addr %s272, 12
      %s274 = smul.addr %s273, 4
      %s275 = scalar_lea.vmem %s0, %s274
      %p276 = pneg %p41
      %p277 = pneg %p38
      %p278 = pneg %p62
      %p279 = pneg %p59
      %p280 = pneg %p83
      %p281 = pneg %p80
      %p282 = pneg %p104
      %p283 = pneg %p101
      %p284 = pneg %p125
      %p285 = pneg %p122
      %p286 = pneg %p146
      %p287 = pneg %p143
      %p288 = pneg %p167
      %p289 = pneg %p164
      %p290 = pneg %p193
      %p291 = pneg %p190
      %p292 = scmp.lt.s32.totalorder %s20, 1
      %s293 = scalar_select %p292, %s20, 1
      %s294 = smul.addr %s293, 2
      %s295 = smul.addr %s294, 8
      %s296 = scalar_lea.vmem %s7, %s295
      %p297 = pneg %p219
      %p298 = pneg %p216
      %p299 = scmp.lt.s32.totalorder %s20, 1
      %s300 = scalar_select %p299, %s20, 1
      %s301 = smul.addr %s300, 2
      %s302 = smul.addr %s301, 8
      %s303 = scalar_lea.vmem %s8, %s302
      %p304 = scmp.lt.s32.totalorder %s20, 1
      %s305 = scalar_select %p304, %s20, 1
      %s306 = smul.addr %s305, 12
      %s307 = smul.addr %s306, 4
      %s308 = scalar_lea.vmem %s0, %s307
      %p309 = scmp.lt.s32.totalorder %s20, 1
      %s310 = scalar_select %p309, %s20, 1
      %s311 = smul.addr %s310, 2
      %s312 = smul.addr %s311, 8
      %s313 = scalar_lea.vmem %s7, %s312
      %p314 = scmp.lt.s32.totalorder %s20, 1
      %s315 = scalar_select %p314, %s20, 1
      %s316 = smul.addr %s315, 2
      %s317 = smul.addr %s316, 8
      %s318 = scalar_lea.vmem %s8, %s317
      %v320 = vld [vmem:[%s308] sm:$0xff]
      %v321 = vld [vmem:[%s308 + $0x8] sm:$0xff]
      %v322 = vld [vmem:[%s308 + $0x10] sm:$0xff]
      %v323 = vld [vmem:[%s308 + $0x18] sm:$0xff]
      %v324 = vld [vmem:[%s308 + $0x20] sm:$0xff]
      %v325 = vld [vmem:[%s308 + $0x28] sm:$0xff]
      %v326 = vld [vmem:[%s1] sm:$0xf]
      %v327 = vld [vmem:[%s1 + $0x4] sm:$0xf]
      %v328 = vld [vmem:[%s1 + $0x8] sm:$0xf]
      %v329 = vld [vmem:[%s1 + $0xc] sm:$0xf]
      %v330 = vld [vmem:[%s1 + $0x10] sm:$0xf]
      %v331 = vld [vmem:[%s1 + $0x14] sm:$0xf]
      %v332 = vld [vmem:[%s1 + $0x18] sm:$0xf]
      %v333 = vld [vmem:[%s1 + $0x1c] sm:$0xf]
      %v334 = vld [vmem:[%s1 + $0x20] sm:$0xf]
      %v335 = vld [vmem:[%s1 + $0x24] sm:$0xf]
      %v336 = vld [vmem:[%s1 + $0x28] sm:$0xf]
      %v337 = vld [vmem:[%s1 + $0x2c] sm:$0xf]
      %v338 = vld [vmem:[%s1 + $0x30] sm:$0xf]
      %v339 = vld [vmem:[%s1 + $0x34] sm:$0xf]
      %v340 = vld [vmem:[%s1 + $0x38] sm:$0xf]
      %v341 = vld [vmem:[%s1 + $0x3c] sm:$0xf]
      %v342 = vld [vmem:[%s1 + $0x40] sm:$0xf]
      %v343 = vld [vmem:[%s1 + $0x44] sm:$0xf]
      %v344 = vld [vmem:[%s1 + $0x48] sm:$0xf]
      %v345 = vld [vmem:[%s1 + $0x4c] sm:$0xf]
      %v346 = vld [vmem:[%s1 + $0x50] sm:$0xf]
      %v347 = vld [vmem:[%s1 + $0x54] sm:$0xf]
      %v348 = vld [vmem:[%s1 + $0x58] sm:$0xf]
      %v349 = vld [vmem:[%s1 + $0x5c] sm:$0xf]
      %v350 = vld [vmem:[%s1 + $0x60] sm:$0xf]
      %v351 = vld [vmem:[%s1 + $0x64] sm:$0xf]
      %v352 = vld [vmem:[%s1 + $0x68] sm:$0xf]
      %v353 = vld [vmem:[%s1 + $0x6c] sm:$0xf]
      %v354 = vld [vmem:[%s1 + $0x70] sm:$0xf]
      %v355 = vld [vmem:[%s1 + $0x74] sm:$0xf]
      %v356 = vld [vmem:[%s1 + $0x78] sm:$0xf]
      %v357 = vld [vmem:[%s1 + $0x7c] sm:$0xf]
      %v358 = vld [vmem:[%s1 + $0x80] sm:$0xf]
      %v359 = vld [vmem:[%s1 + $0x84] sm:$0xf]
      %v360 = vld [vmem:[%s1 + $0x88] sm:$0xf]
      %v361 = vld [vmem:[%s1 + $0x8c] sm:$0xf]
      %v362 = vld [vmem:[%s1 + $0x90] sm:$0xf]
      %v363 = vld [vmem:[%s1 + $0x94] sm:$0xf]
      %v364 = vld [vmem:[%s1 + $0x98] sm:$0xf]
      %v365 = vld [vmem:[%s1 + $0x9c] sm:$0xf]
      %v366 = vld [vmem:[%s1 + $0xa0] sm:$0xf]
      %v367 = vld [vmem:[%s1 + $0xa4] sm:$0xf]
      %v368 = vld [vmem:[%s1 + $0xa8] sm:$0xf]
      %v369 = vld [vmem:[%s1 + $0xac] sm:$0xf]
      %v370 = vld [vmem:[%s1 + $0xb0] sm:$0xf]
      %v371 = vld [vmem:[%s1 + $0xb4] sm:$0xf]
      %v372 = vld [vmem:[%s1 + $0xb8] sm:$0xf]
      %v373 = vld [vmem:[%s1 + $0xbc] sm:$0xf]
      %v374 = vld [vmem:[%s1 + $0xc0] sm:$0xf]
      %v375 = vld [vmem:[%s1 + $0xc4] sm:$0xf]
      %v376 = vld [vmem:[%s1 + $0xc8] sm:$0xf]
      %v377 = vld [vmem:[%s1 + $0xcc] sm:$0xf]
      %v378 = vld [vmem:[%s1 + $0xd0] sm:$0xf]
      %v379 = vld [vmem:[%s1 + $0xd4] sm:$0xf]
      %v380 = vld [vmem:[%s1 + $0xd8] sm:$0xf]
      %v381 = vld [vmem:[%s1 + $0xdc] sm:$0xf]
      %v382 = vld [vmem:[%s1 + $0xe0] sm:$0xf]
      %v383 = vld [vmem:[%s1 + $0xe4] sm:$0xf]
      %v384 = vld [vmem:[%s1 + $0xe8] sm:$0xf]
      %v385 = vld [vmem:[%s1 + $0xec] sm:$0xf]
      %v386 = vld [vmem:[%s1 + $0xf0] sm:$0xf]
      %v387 = vld [vmem:[%s1 + $0xf4] sm:$0xf]
      %v388 = vld [vmem:[%s1 + $0xf8] sm:$0xf]
      %v389 = vld [vmem:[%s1 + $0xfc] sm:$0xf]
      %v390 = vld [vmem:[%s1 + $0x100] sm:$0xf]
      %v391 = vld [vmem:[%s1 + $0x104] sm:$0xf]
      %v392 = vld [vmem:[%s1 + $0x108] sm:$0xf]
      %v393 = vld [vmem:[%s1 + $0x10c] sm:$0xf]
      %v394 = vld [vmem:[%s1 + $0x110] sm:$0xf]
      %v395 = vld [vmem:[%s1 + $0x114] sm:$0xf]
      %v396 = vld [vmem:[%s1 + $0x118] sm:$0xf]
      %v397 = vld [vmem:[%s1 + $0x11c] sm:$0xf]
      %v398 = vld [vmem:[%s1 + $0x120] sm:$0xf]
      %v399 = vld [vmem:[%s1 + $0x124] sm:$0xf]
      %v400 = vld [vmem:[%s1 + $0x128] sm:$0xf]
      %v401 = vld [vmem:[%s1 + $0x12c] sm:$0xf]
      %v402 = vld [vmem:[%s1 + $0x130] sm:$0xf]
      %v403 = vld [vmem:[%s1 + $0x134] sm:$0xf]
      %v404 = vld [vmem:[%s1 + $0x138] sm:$0xf]
      %v405 = vld [vmem:[%s1 + $0x13c] sm:$0xf]
      %v406 = vld [vmem:[%s1 + $0x140] sm:$0xf]
      %v407 = vld [vmem:[%s1 + $0x144] sm:$0xf]
      %v408 = vld [vmem:[%s1 + $0x148] sm:$0xf]
      %v409 = vld [vmem:[%s1 + $0x14c] sm:$0xf]
      %v410 = vld [vmem:[%s1 + $0x150] sm:$0xf]
      %v411 = vld [vmem:[%s1 + $0x154] sm:$0xf]
      %v412 = vld [vmem:[%s1 + $0x158] sm:$0xf]
      %v413 = vld [vmem:[%s1 + $0x15c] sm:$0xf]
      %v414 = vld [vmem:[%s1 + $0x160] sm:$0xf]
      %v415 = vld [vmem:[%s1 + $0x164] sm:$0xf]
      %v416 = vld [vmem:[%s1 + $0x168] sm:$0xf]
      %v417 = vld [vmem:[%s1 + $0x16c] sm:$0xf]
      %v418 = vld [vmem:[%s1 + $0x170] sm:$0xf]
      %v419 = vld [vmem:[%s1 + $0x174] sm:$0xf]
      %v420 = vld [vmem:[%s1 + $0x178] sm:$0xf]
      %v421 = vld [vmem:[%s1 + $0x17c] sm:$0xf]
      %v422 = vld [vmem:[%s2] sm:$0x1]
      %v424 = vlaneseq
      %v425 = vshrl.u32 %v424, 7
      %v426 = vsub.s32 0, %v425
      %v427 = vrot.slane %v422, %v426
      %v435 = vunpack.c.l.b16 %v320
      %v436 = vunpack.c.h.b16 %v320
      %v437 = vunpack.c.l.b16 %v321
      %v438 = vunpack.c.h.b16 %v321
      %v439 = vunpack.c.l.b16 %v322
      %v440 = vunpack.c.h.b16 %v322
      %v441 = vunpack.c.l.b16 %v323
      %v442 = vunpack.c.h.b16 %v323
      %v443 = vunpack.c.l.b16 %v324
      %v444 = vunpack.c.h.b16 %v324
      %v445 = vunpack.c.l.b16 %v325
      %v446 = vunpack.c.h.b16 %v325
      %v447 = vpack.c.b16 %v441, %v435
      %v448 = vpack.c.b16 %v442, %v436
      %v449 = vpack.c.b16 %v443, %v437
      %v450 = vpack.c.b16 %v444, %v438
      %v451 = vpack.c.b16 %v445, %v439
      %v452 = vpack.c.b16 %v446, %v440
      %v555 = vunpack.c.l.b16 %v326
      %v556 = vunpack.c.l.b16 %v327
      %v557 = vunpack.c.l.b16 %v328
      %v558 = vunpack.c.l.b16 %v329
      %v559 = vunpack.c.l.b16 %v330
      %v560 = vunpack.c.l.b16 %v331
      %v561 = vunpack.c.l.b16 %v332
      %v562 = vunpack.c.l.b16 %v333
      %v563 = vunpack.c.l.b16 %v334
      %v564 = vunpack.c.l.b16 %v335
      %v565 = vunpack.c.l.b16 %v336
      %v566 = vunpack.c.l.b16 %v337
      %v567 = vunpack.c.l.b16 %v338
      %v568 = vunpack.c.l.b16 %v339
      %v569 = vunpack.c.l.b16 %v340
      %v570 = vunpack.c.l.b16 %v341
      %v571 = vunpack.c.l.b16 %v342
      %v572 = vunpack.c.l.b16 %v343
      %v573 = vunpack.c.l.b16 %v344
      %v574 = vunpack.c.l.b16 %v345
      %v575 = vunpack.c.l.b16 %v346
      %v576 = vunpack.c.l.b16 %v347
      %v577 = vunpack.c.l.b16 %v348
      %v578 = vunpack.c.l.b16 %v349
      %v579 = vunpack.c.l.b16 %v350
      %v580 = vunpack.c.l.b16 %v351
      %v581 = vunpack.c.l.b16 %v352
      %v582 = vunpack.c.l.b16 %v353
      %v583 = vunpack.c.l.b16 %v354
      %v584 = vunpack.c.l.b16 %v355
      %v585 = vunpack.c.l.b16 %v356
      %v586 = vunpack.c.l.b16 %v357
      %v587 = vunpack.c.l.b16 %v358
      %v588 = vunpack.c.l.b16 %v359
      %v589 = vunpack.c.l.b16 %v360
      %v590 = vunpack.c.l.b16 %v361
      %v591 = vunpack.c.l.b16 %v362
      %v592 = vunpack.c.l.b16 %v363
      %v593 = vunpack.c.l.b16 %v364
      %v594 = vunpack.c.l.b16 %v365
      %v595 = vunpack.c.l.b16 %v366
      %v596 = vunpack.c.l.b16 %v367
      %v597 = vunpack.c.l.b16 %v368
      %v598 = vunpack.c.l.b16 %v369
      %v599 = vunpack.c.l.b16 %v370
      %v600 = vunpack.c.l.b16 %v371
      %v601 = vunpack.c.l.b16 %v372
      %v602 = vunpack.c.l.b16 %v373
      %v603 = vunpack.c.l.b16 %v374
      %v604 = vunpack.c.l.b16 %v375
      %v605 = vunpack.c.l.b16 %v376
      %v606 = vunpack.c.l.b16 %v377
      %v607 = vunpack.c.l.b16 %v378
      %v608 = vunpack.c.l.b16 %v379
      %v609 = vunpack.c.l.b16 %v380
      %v610 = vunpack.c.l.b16 %v381
      %v611 = vunpack.c.l.b16 %v382
      %v612 = vunpack.c.l.b16 %v383
      %v613 = vunpack.c.l.b16 %v384
      %v614 = vunpack.c.l.b16 %v385
      %v615 = vunpack.c.l.b16 %v386
      %v616 = vunpack.c.l.b16 %v387
      %v617 = vunpack.c.l.b16 %v388
      %v618 = vunpack.c.l.b16 %v389
      %v619 = vunpack.c.l.b16 %v390
      %v620 = vunpack.c.l.b16 %v391
      %v621 = vunpack.c.l.b16 %v392
      %v622 = vunpack.c.l.b16 %v393
      %v623 = vunpack.c.l.b16 %v394
      %v624 = vunpack.c.l.b16 %v395
      %v625 = vunpack.c.l.b16 %v396
      %v626 = vunpack.c.l.b16 %v397
      %v627 = vunpack.c.l.b16 %v398
      %v628 = vunpack.c.l.b16 %v399
      %v629 = vunpack.c.l.b16 %v400
      %v630 = vunpack.c.l.b16 %v401
      %v631 = vunpack.c.l.b16 %v402
      %v632 = vunpack.c.l.b16 %v403
      %v633 = vunpack.c.l.b16 %v404
      %v634 = vunpack.c.l.b16 %v405
      %v635 = vunpack.c.l.b16 %v406
      %v636 = vunpack.c.l.b16 %v407
      %v637 = vunpack.c.l.b16 %v408
      %v638 = vunpack.c.l.b16 %v409
      %v639 = vunpack.c.l.b16 %v410
      %v640 = vunpack.c.l.b16 %v411
      %v641 = vunpack.c.l.b16 %v412
      %v642 = vunpack.c.l.b16 %v413
      %v643 = vunpack.c.l.b16 %v414
      %v644 = vunpack.c.l.b16 %v415
      %v645 = vunpack.c.l.b16 %v416
      %v646 = vunpack.c.l.b16 %v417
      %v647 = vunpack.c.l.b16 %v418
      %v648 = vunpack.c.l.b16 %v419
      %v649 = vunpack.c.l.b16 %v420
      %v650 = vunpack.c.l.b16 %v421
      %v651 = vpack.c.b16 %v556, %v555
      %v652 = vpack.c.b16 %v558, %v557
      %v653 = vpack.c.b16 %v560, %v559
      %v654 = vpack.c.b16 %v562, %v561
      %v655 = vpack.c.b16 %v564, %v563
      %v656 = vpack.c.b16 %v566, %v565
      %v657 = vpack.c.b16 %v568, %v567
      %v658 = vpack.c.b16 %v570, %v569
      %v659 = vpack.c.b16 %v572, %v571
      %v660 = vpack.c.b16 %v574, %v573
      %v661 = vpack.c.b16 %v576, %v575
      %v662 = vpack.c.b16 %v578, %v577
      %v663 = vpack.c.b16 %v580, %v579
      %v664 = vpack.c.b16 %v582, %v581
      %v665 = vpack.c.b16 %v584, %v583
      %v666 = vpack.c.b16 %v586, %v585
      %v667 = vpack.c.b16 %v588, %v587
      %v668 = vpack.c.b16 %v590, %v589
      %v669 = vpack.c.b16 %v592, %v591
      %v670 = vpack.c.b16 %v594, %v593
      %v671 = vpack.c.b16 %v596, %v595
      %v672 = vpack.c.b16 %v598, %v597
      %v673 = vpack.c.b16 %v600, %v599
      %v674 = vpack.c.b16 %v602, %v601
      %v675 = vpack.c.b16 %v604, %v603
      %v676 = vpack.c.b16 %v606, %v605
      %v677 = vpack.c.b16 %v608, %v607
      %v678 = vpack.c.b16 %v610, %v609
      %v679 = vpack.c.b16 %v612, %v611
      %v680 = vpack.c.b16 %v614, %v613
      %v681 = vpack.c.b16 %v616, %v615
      %v682 = vpack.c.b16 %v618, %v617
      %v683 = vpack.c.b16 %v620, %v619
      %v684 = vpack.c.b16 %v622, %v621
      %v685 = vpack.c.b16 %v624, %v623
      %v686 = vpack.c.b16 %v626, %v625
      %v687 = vpack.c.b16 %v628, %v627
      %v688 = vpack.c.b16 %v630, %v629
      %v689 = vpack.c.b16 %v632, %v631
      %v690 = vpack.c.b16 %v634, %v633
      %v691 = vpack.c.b16 %v636, %v635
      %v692 = vpack.c.b16 %v638, %v637
      %v693 = vpack.c.b16 %v640, %v639
      %v694 = vpack.c.b16 %v642, %v641
      %v695 = vpack.c.b16 %v644, %v643
      %v696 = vpack.c.b16 %v646, %v645
      %v697 = vpack.c.b16 %v648, %v647
      %v698 = vpack.c.b16 %v650, %v649
      %747 = vmatprep.subr.bf16.mxu0 0
      %748 = vmatpush1.bf16.msra.mxu0 %v651
      %749 = vmatprep.subr.bf16.mxu0 0
      %750 = vmatpush1.bf16.msra.mxu0 %v652
      %751 = vmatprep.subr.bf16.mxu0 0
      %752 = vmatpush1.bf16.msra.mxu0 %v653
      %753 = vmatprep.subr.bf16.mxu0 0
      %754 = vmatpush1.bf16.msra.mxu0 %v654
      %755 = vmatprep.subr.bf16.mxu0 0
      %756 = vmatpush1.bf16.msra.mxu0 %v655
      %757 = vmatprep.subr.bf16.mxu0 0
      %758 = vmatpush1.bf16.msra.mxu0 %v656
      %759 = vmatprep.subr.bf16.mxu0 0
      %760 = vmatpush1.bf16.msra.mxu0 %v657
      %761 = vmatprep.subr.bf16.mxu0 0
      %762 = vmatpush1.bf16.msra.mxu0 %v658
      %763 = vmatprep.subr.bf16.mxu0 0
      %764 = vmatpush1.bf16.msra.mxu0 %v659
      %765 = vmatprep.subr.bf16.mxu0 0
      %766 = vmatpush1.bf16.msra.mxu0 %v660
      %767 = vmatprep.subr.bf16.mxu0 0
      %768 = vmatpush1.bf16.msra.mxu0 %v661
      %769 = vmatprep.subr.bf16.mxu0 0
      %770 = vmatpush1.bf16.msra.mxu0 %v662
      %771 = vmatprep.subr.bf16.mxu0 0
      %772 = vmatpush1.bf16.msra.mxu0 %v663
      %773 = vmatprep.subr.bf16.mxu0 0
      %774 = vmatpush1.bf16.msra.mxu0 %v664
      %775 = vmatprep.subr.bf16.mxu0 0
      %776 = vmatpush1.bf16.msra.mxu0 %v665
      %777 = vmatprep.subr.bf16.mxu0 0
      %778 = vmatpush1.bf16.msra.mxu0 %v666
      %779 = vmatprep.mubr.bf16.mxu0 %v448
      %780 = vmatmul.mubr.bf16.gmra.mrb[0].mxu0 %v447
      %v781 = vpop.f32.mrb[0].mxu0
      %v782 = vadd.f32 %v427, %v781
      %v783 = vpop.f32.mrb[0].mxu0
      %v784 = vpop.f32.mrb[0].mxu0
      %v785 = vadd.f32 %v427, %v784
      %v786 = vpop.f32.mrb[0].mxu0
      %787 = vdwg.mxu0
      %788 = vmatprep.subr.bf16.mxu0 0
      %789 = vmatpush1.bf16.msra.mxu0 %v667
      %790 = vmatprep.subr.bf16.mxu0 0
      %791 = vmatpush1.bf16.msra.mxu0 %v668
      %792 = vmatprep.subr.bf16.mxu0 0
      %793 = vmatpush1.bf16.msra.mxu0 %v669
      %794 = vmatprep.subr.bf16.mxu0 0
      %795 = vmatpush1.bf16.msra.mxu0 %v670
      %796 = vmatprep.subr.bf16.mxu0 0
      %797 = vmatpush1.bf16.msra.mxu0 %v671
      %798 = vmatprep.subr.bf16.mxu0 0
      %799 = vmatpush1.bf16.msra.mxu0 %v672
      %800 = vmatprep.subr.bf16.mxu0 0
      %801 = vmatpush1.bf16.msra.mxu0 %v673
      %802 = vmatprep.subr.bf16.mxu0 0
      %803 = vmatpush1.bf16.msra.mxu0 %v674
      %804 = vmatprep.subr.bf16.mxu0 0
      %805 = vmatpush1.bf16.msra.mxu0 %v675
      %806 = vmatprep.subr.bf16.mxu0 0
      %807 = vmatpush1.bf16.msra.mxu0 %v676
      %808 = vmatprep.subr.bf16.mxu0 0
      %809 = vmatpush1.bf16.msra.mxu0 %v677
      %810 = vmatprep.subr.bf16.mxu0 0
      %811 = vmatpush1.bf16.msra.mxu0 %v678
      %812 = vmatprep.subr.bf16.mxu0 0
      %813 = vmatpush1.bf16.msra.mxu0 %v679
      %814 = vmatprep.subr.bf16.mxu0 0
      %815 = vmatpush1.bf16.msra.mxu0 %v680
      %816 = vmatprep.subr.bf16.mxu0 0
      %817 = vmatpush1.bf16.msra.mxu0 %v681
      %818 = vmatprep.subr.bf16.mxu0 0
      %819 = vmatpush1.bf16.msra.mxu0 %v682
      %820 = vmatprep.mubr.bf16.mxu0 %v450
      %821 = vmatmul.mubr.bf16.gmra.mrb[0].mxu0 %v449
      %v822 = vpop.f32.mrb[0].mxu0
      %v823 = vadd.f32 %v782, %v822
      %v824 = vpop.f32.mrb[0].mxu0
      %v825 = vpop.f32.mrb[0].mxu0
      %v826 = vadd.f32 %v785, %v825
      %v827 = vpop.f32.mrb[0].mxu0
      %828 = vdwg.mxu0
      %829 = vmatprep.subr.bf16.mxu0 0
      %830 = vmatpush1.bf16.msra.mxu0 %v683
      %831 = vmatprep.subr.bf16.mxu0 0
      %832 = vmatpush1.bf16.msra.mxu0 %v684
      %833 = vmatprep.subr.bf16.mxu0 0
      %834 = vmatpush1.bf16.msra.mxu0 %v685
      %835 = vmatprep.subr.bf16.mxu0 0
      %836 = vmatpush1.bf16.msra.mxu0 %v686
      %837 = vmatprep.subr.bf16.mxu0 0
      %838 = vmatpush1.bf16.msra.mxu0 %v687
      %839 = vmatprep.subr.bf16.mxu0 0
      %840 = vmatpush1.bf16.msra.mxu0 %v688
      %841 = vmatprep.subr.bf16.mxu0 0
      %842 = vmatpush1.bf16.msra.mxu0 %v689
      %843 = vmatprep.subr.bf16.mxu0 0
      %844 = vmatpush1.bf16.msra.mxu0 %v690
      %845 = vmatprep.subr.bf16.mxu0 0
      %846 = vmatpush1.bf16.msra.mxu0 %v691
      %847 = vmatprep.subr.bf16.mxu0 0
      %848 = vmatpush1.bf16.msra.mxu0 %v692
      %849 = vmatprep.subr.bf16.mxu0 0
      %850 = vmatpush1.bf16.msra.mxu0 %v693
      %851 = vmatprep.subr.bf16.mxu0 0
      %852 = vmatpush1.bf16.msra.mxu0 %v694
      %853 = vmatprep.subr.bf16.mxu0 0
      %854 = vmatpush1.bf16.msra.mxu0 %v695
      %855 = vmatprep.subr.bf16.mxu0 0
      %856 = vmatpush1.bf16.msra.mxu0 %v696
      %857 = vmatprep.subr.bf16.mxu0 0
      %858 = vmatpush1.bf16.msra.mxu0 %v697
      %859 = vmatprep.subr.bf16.mxu0 0
      %860 = vmatpush1.bf16.msra.mxu0 %v698
      %861 = vmatprep.mubr.bf16.mxu0 %v452
      %862 = vmatmul.mubr.bf16.gmra.mrb[0].mxu0 %v451
      %v863 = vpop.f32.mrb[0].mxu0
      %v864 = vadd.f32 %v823, %v863
      %v865 = vpop.f32.mrb[0].mxu0
      %v866 = vpop.f32.mrb[0].mxu0
      %v867 = vadd.f32 %v826, %v866
      %v868 = vpop.f32.mrb[0].mxu0
      %869 = vdwg.mxu0
      %v870 = vmax.f32 %v864, 0.0
      %v871 = vmax.f32 %v867, 0.0
      %872 = vst [vmem:[%s313] sm:$0xff] %v870
      %873 = vst [vmem:[%s313 + $0x8] sm:$0xff] %v871
      %v874 = vpack.c.bf16 %v871, %v870
      %v875 = vld [vmem:[%s3] sm:$0xf]
      %v876 = vld [vmem:[%s3 + $0x4] sm:$0xf]
      %v877 = vld [vmem:[%s3 + $0x8] sm:$0xf]
      %v878 = vld [vmem:[%s3 + $0xc] sm:$0xf]
      %v879 = vld [vmem:[%s3 + $0x10] sm:$0xf]
      %v880 = vld [vmem:[%s3 + $0x14] sm:$0xf]
      %v881 = vld [vmem:[%s3 + $0x18] sm:$0xf]
      %v882 = vld [vmem:[%s3 + $0x1c] sm:$0xf]
      %v883 = vld [vmem:[%s3 + $0x20] sm:$0xf]
      %v884 = vld [vmem:[%s3 + $0x24] sm:$0xf]
      %v885 = vld [vmem:[%s3 + $0x28] sm:$0xf]
      %v886 = vld [vmem:[%s3 + $0x2c] sm:$0xf]
      %v887 = vld [vmem:[%s3 + $0x30] sm:$0xf]
      %v888 = vld [vmem:[%s3 + $0x34] sm:$0xf]
      %v889 = vld [vmem:[%s3 + $0x38] sm:$0xf]
      %v890 = vld [vmem:[%s3 + $0x3c] sm:$0xf]
      %v891 = vld [vmem:[%s4] sm:$0x1]
      %v893 = vlaneseq
      %v894 = vshrl.u32 %v893, 7
      %v895 = vsub.s32 0, %v894
      %v896 = vrot.slane %v891, %v895
      %v914 = vunpack.c.l.b16 %v875
      %v915 = vunpack.c.l.b16 %v876
      %v916 = vunpack.c.l.b16 %v877
      %v917 = vunpack.c.l.b16 %v878
      %v918 = vunpack.c.l.b16 %v879
      %v919 = vunpack.c.l.b16 %v880
      %v920 = vunpack.c.l.b16 %v881
      %v921 = vunpack.c.l.b16 %v882
      %v922 = vunpack.c.l.b16 %v883
      %v923 = vunpack.c.l.b16 %v884
      %v924 = vunpack.c.l.b16 %v885
      %v925 = vunpack.c.l.b16 %v886
      %v926 = vunpack.c.l.b16 %v887
      %v927 = vunpack.c.l.b16 %v888
      %v928 = vunpack.c.l.b16 %v889
      %v929 = vunpack.c.l.b16 %v890
      %v930 = vpack.c.b16 %v915, %v914
      %v931 = vpack.c.b16 %v917, %v916
      %v932 = vpack.c.b16 %v919, %v918
      %v933 = vpack.c.b16 %v921, %v920
      %v934 = vpack.c.b16 %v923, %v922
      %v935 = vpack.c.b16 %v925, %v924
      %v936 = vpack.c.b16 %v927, %v926
      %v937 = vpack.c.b16 %v929, %v928
      %946 = vmatprep.subr.bf16.mxu0 0
      %947 = vmatpush1.bf16.msra.mxu0 %v930
      %948 = vmatprep.subr.bf16.mxu0 0
      %949 = vmatpush1.bf16.msra.mxu0 %v931
      %950 = vmatprep.subr.bf16.mxu0 0
      %951 = vmatpush1.bf16.msra.mxu0 %v932
      %952 = vmatprep.subr.bf16.mxu0 0
      %953 = vmatpush1.bf16.msra.mxu0 %v933
      %954 = vmatprep.subr.bf16.mxu0 0
      %955 = vmatpush1.bf16.msra.mxu0 %v934
      %956 = vmatprep.subr.bf16.mxu0 0
      %957 = vmatpush1.bf16.msra.mxu0 %v935
      %958 = vmatprep.subr.bf16.mxu0 0
      %959 = vmatpush1.bf16.msra.mxu0 %v936
      %960 = vmatprep.subr.bf16.mxu0 0
      %961 = vmatpush1.bf16.msra.mxu0 %v937
      %962 = vmatprep.subr.bf16.mxu0 0
      %963 = vmatpush1.bf16.msra.mxu0 0
      %964 = vmatprep.subr.bf16.mxu0 0
      %965 = vmatpush1.bf16.msra.mxu0 0
      %966 = vmatprep.subr.bf16.mxu0 0
      %967 = vmatpush1.bf16.msra.mxu0 0
      %968 = vmatprep.subr.bf16.mxu0 0
      %969 = vmatpush1.bf16.msra.mxu0 0
      %970 = vmatprep.subr.bf16.mxu0 0
      %971 = vmatpush1.bf16.msra.mxu0 0
      %972 = vmatprep.subr.bf16.mxu0 0
      %973 = vmatpush1.bf16.msra.mxu0 0
      %974 = vmatprep.subr.bf16.mxu0 0
      %975 = vmatpush1.bf16.msra.mxu0 0
      %976 = vmatprep.subr.bf16.mxu0 0
      %977 = vmatpush1.bf16.msra.mxu0 0
      %978 = vmatprep.mubr.bf16.mxu0 0
      %979 = vmatmul.mubr.bf16.gmra.mrb[0].mxu0 %v874
      %v980 = vpop.f32.mrb[0].mxu0
      %v981 = vadd.f32 %v896, %v980
      %v982 = vpop.f32.mrb[0].mxu0
      %v983 = vpop.f32.mrb[0].mxu0
      %v984 = vadd.f32 %v896, %v983
      %v985 = vpop.f32.mrb[0].mxu0
      %986 = vdwg.mxu0
      %v987 = vmax.f32 %v981, 0.0
      %v988 = vmax.f32 %v984, 0.0
      %v989 = vpack.c.bf16 %v988, %v987
      %v990 = vld [vmem:[%s5] sm:$0xf]
      %v991 = vld [vmem:[%s5 + $0x4] sm:$0xf]
      %v992 = vld [vmem:[%s5 + $0x8] sm:$0xf]
      %v993 = vld [vmem:[%s5 + $0xc] sm:$0xf]
      %v994 = vld [vmem:[%s6] sm:$0x1]
      %v996 = vlaneseq
      %v997 = vshrl.u32 %v996, 7
      %v998 = vsub.s32 0, %v997
      %v999 = vrot.slane %v994, %v998
      %v1005 = vunpack.c.l.b16 %v990
      %v1006 = vunpack.c.l.b16 %v991
      %v1007 = vunpack.c.l.b16 %v992
      %v1008 = vunpack.c.l.b16 %v993
      %v1009 = vpack.c.b16 %v1006, %v1005
      %v1010 = vpack.c.b16 %v1008, %v1007
      %vm1013 = vcmask 261120
      %v1015 = vsel %vm1013, %v989, 0
      %1017 = vmatprep.subr.bf16.mxu0 0
      %1018 = vmatpush1.bf16.msra.mxu0 %v1009
      %1019 = vmatprep.subr.bf16.mxu0 0
      %1020 = vmatpush1.bf16.msra.mxu0 %v1010
      %1021 = vmatprep.subr.bf16.mxu0 0
      %1022 = vmatpush1.bf16.msra.mxu0 0
      %1023 = vmatprep.subr.bf16.mxu0 0
      %1024 = vmatpush1.bf16.msra.mxu0 0
      %1025 = vmatprep.subr.bf16.mxu0 0
      %1026 = vmatpush1.bf16.msra.mxu0 0
      %1027 = vmatprep.subr.bf16.mxu0 0
      %1028 = vmatpush1.bf16.msra.mxu0 0
      %1029 = vmatprep.subr.bf16.mxu0 0
      %1030 = vmatpush1.bf16.msra.mxu0 0
      %1031 = vmatprep.subr.bf16.mxu0 0
      %1032 = vmatpush1.bf16.msra.mxu0 0
      %1033 = vmatprep.subr.bf16.mxu0 0
      %1034 = vmatpush1.bf16.msra.mxu0 0
      %1035 = vmatprep.subr.bf16.mxu0 0
      %1036 = vmatpush1.bf16.msra.mxu0 0
      %1037 = vmatprep.subr.bf16.mxu0 0
      %1038 = vmatpush1.bf16.msra.mxu0 0
      %1039 = vmatprep.subr.bf16.mxu0 0
      %1040 = vmatpush1.bf16.msra.mxu0 0
      %1041 = vmatprep.subr.bf16.mxu0 0
      %1042 = vmatpush1.bf16.msra.mxu0 0
      %1043 = vmatprep.subr.bf16.mxu0 0
      %1044 = vmatpush1.bf16.msra.mxu0 0
      %1045 = vmatprep.subr.bf16.mxu0 0
      %1046 = vmatpush1.bf16.msra.mxu0 0
      %1047 = vmatprep.subr.bf16.mxu0 0
      %1048 = vmatpush1.bf16.msra.mxu0 0
      %1049 = vmatprep.mubr.bf16.mxu0 0
      %1050 = vmatmul.mubr.bf16.gmra.mrb[0].mxu0 %v1015
      %v1051 = vpop.f32.mrb[0].mxu0
      %v1052 = vadd.f32 %v999, %v1051
      %v1053 = vpop.f32.mrb[0].mxu0
      %v1054 = vpop.f32.mrb[0].mxu0
      %v1055 = vadd.f32 %v999, %v1054
      %v1056 = vpop.f32.mrb[0].mxu0
      %1057 = vdwg.mxu0
      %v1058 = vxor.u32 %v1052, 2147483648
      %v1059 = vxor.u32 %v1055, 2147483648
      %v1060 = vmul.f32 %v1058, 1.442695
      %v1061 = vpow.pop %v1060
      %v1062 = vmul.f32 %v1059, 1.442695
      %v1063 = vpow.pop %v1062
      %v1064 = vadd.f32 %v1061, 1.0
      %v1065 = vadd.f32 %v1063, 1.0
      %v1066 = vrcp.pop %v1064
      %v1067 = vmul.f32 1.0, %v1066
      %v1068 = vrcp.pop %v1065
      %v1069 = vmul.f32 1.0, %v1068
      %1070 = vst [vmem:[%s318] sm:$0xff] %v1067
      %1071 = vst [vmem:[%s318 + $0x8] sm:$0xff] %v1069
      %p1072 = scmp.lt.s32.totalorder %s20, 1
      %s1073 = scalar_select %p1072, %s20, 1
      %s1074 = smul.addr %s1073, 2
      %s1075 = smul.addr %s1074, 8
      %s1076 = scalar_lea.vmem %s7, %s1075
      %p1077 = scmp.lt.s32.totalorder %s20, 1
      %s1078 = scalar_select %p1077, %s20, 1
      %s1079 = smul.addr %s1078, 2
      %s1080 = smul.addr %s1079, 8
      %s1081 = scalar_lea.vmem %s8, %s1080
      // Predicated region
      $region49: #{faster_rcnn_forward.4} parent=47 // pred_check
        %p1082 = pneg %p190
      $region50: #{faster_rcnn_forward.4} parent=47 // pred_check_branch
        %1084 = sbr.rel (%p1082) target = $region52
      $region51: #{faster_rcnn_forward.4} parent=47 // pred_region
        _
      $region52: #{faster_rcnn_forward.4} parent=47 // pred_fallthru
        _
      // Predicated region
      $region53: #{faster_rcnn_forward.4} parent=47 // pred_check
        %p1085 = pneg %p216
      $region54: #{faster_rcnn_forward.4} parent=47 // pred_check_branch
        %1087 = sbr.rel (%p1085) target = $region56
      $region55: #{faster_rcnn_forward.4} parent=47 // pred_region
        _
      $region56: #{faster_rcnn_forward.4} parent=47 // pred_fallthru
        _
    $region48: #{faster_rcnn_forward.4} parent=5 // pred_fallthru
      _
    %p1088 = scmp.le.s32.totalorder 2, %s15
    // Predicated region
    $region57: #{faster_rcnn_forward.4} parent=5 // pred_check
      %p1089 = pneg %p1088
    $region58: #{faster_rcnn_forward.4} parent=5 // pred_check_branch
      %1091 = sbr.rel (%p1089) target = $region60
    $region59: #{faster_rcnn_forward.4} parent=5 // pred_region
      %s1092 = ssub.s32 %s15, 2
      // Predicated region
      $region61: #{faster_rcnn_forward.4} parent=59 // pred_check
        %p1093 = pneg %p196
      $region62: #{faster_rcnn_forward.4} parent=59 // pred_check_branch
        %1095 = sbr.rel (%p1093) target = $region64
      $region63: #{faster_rcnn_forward.4} parent=59 // pred_region
        %p1096 = scmp.lt.s32.totalorder %s21, 1
        %s1097 = scalar_select %p1096, %s21, 1
        %s1098 = smul.addr %s1097, 2
        %s1099 = smul.addr %s1098, 8
        %s1100 = scalar_lea.vmem %s7, %s1099
      $region64: #{faster_rcnn_forward.4} parent=59 // pred_fallthru
        _
      // Predicated region
      $region65: #{faster_rcnn_forward.4} parent=59 // pred_check
        %p1101 = pneg %p222
      $region66: #{faster_rcnn_forward.4} parent=59 // pred_check_branch
        %1103 = sbr.rel (%p1101) target = $region68
      $region67: #{faster_rcnn_forward.4} parent=59 // pred_region
        %p1104 = scmp.lt.s32.totalorder %s21, 1
        %s1105 = scalar_select %p1104, %s21, 1
        %s1106 = smul.addr %s1105, 2
        %s1107 = smul.addr %s1106, 8
        %s1108 = scalar_lea.vmem %s8, %s1107
      $region68: #{faster_rcnn_forward.4} parent=59 // pred_fallthru
        _
    $region60: #{faster_rcnn_forward.4} parent=5 // pred_fallthru
      _
  $region6: #{faster_rcnn_forward.4} parent=0 // loop_footer
    %s19 = sadd.s32 1, %s15
  $region7: #{faster_rcnn_forward.4} parent=0 // loop_footer_branch
    %14 = sbr.rel target = $region3
  $region8: #{faster_rcnn_forward.4} parent=0 // loop_exit
    _

// kernel: faster_rcnn_forward.5
$region0: #{faster_rcnn_forward.5}
  #allocation0 [shape = 'u32[]', space=smem, size = 0x4, offset = 0x4, fixed_abs, tag = 'smem constant byte address 0x4 - core index']
  #allocation1 [shape = 'u32[144,128]{1,0:T(1,128)}', space=vmem, size = 0x12000, scoped, tag = 'internal scratch']
  %s0 = inlined_call_operand.vmem [shape: bf16[2,16,144], index: 0, kind: input, shape index: {}]
  %s1 = inlined_call_operand.vmem [shape: bf16[144,16], index: 1, kind: input, shape index: {}]
  %s2 = inlined_call_operand.vmem [shape: f32[1,16], index: 2, kind: input, shape index: {}]
  %s3 = inlined_call_operand.vmem [shape: bf16[16,128], index: 3, kind: input, shape index: {}]
  %s4 = inlined_call_operand.vmem [shape: f32[1,128], index: 4, kind: input, shape index: {}]
  %s5 = inlined_call_operand.vmem [shape: f32[2,16,128], index: 5, kind: output, shape index: {}]
  %s6 = sld [smem:[#allocation0]]
  $region53: #{faster_rcnn_forward.5} parent=0
    _
  %s8 = ssub.s32 1, %s6
  %s9 = scalar_select 0, %s8, %s6
  loop: start=0, step=1, limit=4
  $region2: #{faster_rcnn_forward.5} parent=0 // loop_pre_header
    _
  $region3: #{faster_rcnn_forward.5} parent=0 // loop_header
    %s11 = sphi 0, %s15
    %p12 = scmp.ge.s32.totalorder %s11, 4
    %s21 = sphi 0, %s23
    %s24 = sphi 0, %s21
    %s25 = sphi 0, %s24
    %s41 = sphi 0, %s25
    %s45 = sphi 0, %s45
    %s47 = sphi 0, %s45
    %s48 = sphi 0, %s47
    %s62 = sphi 0, %s48
    %s66 = sphi 0, %s66
    %s68 = sphi 0, %s66
    %s69 = sphi 0, %s68
    %s83 = sphi 0, %s69
    %s87 = sphi 0, %s87
    %s89 = sphi 0, %s87
    %s90 = sphi 0, %s89
    %s104 = sphi 0, %s90
    %s108 = sphi 0, %s108
    %s110 = sphi 0, %s108
    %s111 = sphi 0, %s110
    %s125 = sphi 0, %s111
    %s131 = sphi 0, %s133
    %s134 = sphi 0, %s131
    %s135 = sphi 0, %s134
    %s151 = sphi 0, %s135
  $region4: #{faster_rcnn_forward.5} parent=0 // loop_header_branch
    %14 = sbr.rel (%p12) target = $region8
  $region5: #{faster_rcnn_forward.5} parent=0 // loop_body
    %s16 = ssub.s32 %s11, 1
    %s17 = ssub.s32 %s11, 2
    %s18 = sadd.s32 %s11, 1
    %s19 = ssub.s32 %s11, %s18
    %p20 = scmp.eq.s32.totalorder %s19, 0
    %s22 = sadd.s32 %s21, 1
    %s23 = scalar_select %p20, %s21, %s22
    %p26 = pneg %p20
    %p27 = scmp.eq.s32.totalorder %s11, 1
    %p28 = por %p26, %p27
    %p29 = scmp.ne.s32.totalorder %s21, %s24
    %p30 = scmp.eq.s32.totalorder %s11, 0
    %p31 = por %p29, %p30
    %p32 = scmp.ne.s32.totalorder %s21, %s24
    %p33 = scmp.eq.s32.totalorder %s16, 1
    %p34 = por %p32, %p33
    %p35 = scmp.ne.s32.totalorder %s24, %s25
    %p36 = scmp.eq.s32.totalorder %s16, 0
    %p37 = por %p35, %p36
    %p38 = scmp.ne.s32.totalorder %s24, %s25
    %p39 = scmp.eq.s32.totalorder %s17, 1
    %p40 = por %p38, %p39
    %p42 = scmp.ne.s32.totalorder %s25, %s41
    %p43 = scmp.eq.s32.totalorder %s17, 0
    %p44 = por %p42, %p43
    %s46 = sadd.s32 %s45, 1
    %p49 = scmp.eq.s32.totalorder %s11, 1
    %p50 = scmp.ne.s32.totalorder %s45, %s47
    %p51 = scmp.eq.s32.totalorder %s11, 0
    %p52 = por %p50, %p51
    %p53 = scmp.ne.s32.totalorder %s45, %s47
    %p54 = scmp.eq.s32.totalorder %s16, 1
    %p55 = por %p53, %p54
    %p56 = scmp.ne.s32.totalorder %s47, %s48
    %p57 = scmp.eq.s32.totalorder %s16, 0
    %p58 = por %p56, %p57
    %p59 = scmp.ne.s32.totalorder %s47, %s48
    %p60 = scmp.eq.s32.totalorder %s17, 1
    %p61 = por %p59, %p60
    %p63 = scmp.ne.s32.totalorder %s48, %s62
    %p64 = scmp.eq.s32.totalorder %s17, 0
    %p65 = por %p63, %p64
    %s67 = sadd.s32 %s66, 1
    %p70 = scmp.eq.s32.totalorder %s11, 1
    %p71 = scmp.ne.s32.totalorder %s66, %s68
    %p72 = scmp.eq.s32.totalorder %s11, 0
    %p73 = por %p71, %p72
    %p74 = scmp.ne.s32.totalorder %s66, %s68
    %p75 = scmp.eq.s32.totalorder %s16, 1
    %p76 = por %p74, %p75
    %p77 = scmp.ne.s32.totalorder %s68, %s69
    %p78 = scmp.eq.s32.totalorder %s16, 0
    %p79 = por %p77, %p78
    %p80 = scmp.ne.s32.totalorder %s68, %s69
    %p81 = scmp.eq.s32.totalorder %s17, 1
    %p82 = por %p80, %p81
    %p84 = scmp.ne.s32.totalorder %s69, %s83
    %p85 = scmp.eq.s32.totalorder %s17, 0
    %p86 = por %p84, %p85
    %s88 = sadd.s32 %s87, 1
    %p91 = scmp.eq.s32.totalorder %s11, 1
    %p92 = scmp.ne.s32.totalorder %s87, %s89
    %p93 = scmp.eq.s32.totalorder %s11, 0
    %p94 = por %p92, %p93
    %p95 = scmp.ne.s32.totalorder %s87, %s89
    %p96 = scmp.eq.s32.totalorder %s16, 1
    %p97 = por %p95, %p96
    %p98 = scmp.ne.s32.totalorder %s89, %s90
    %p99 = scmp.eq.s32.totalorder %s16, 0
    %p100 = por %p98, %p99
    %p101 = scmp.ne.s32.totalorder %s89, %s90
    %p102 = scmp.eq.s32.totalorder %s17, 1
    %p103 = por %p101, %p102
    %p105 = scmp.ne.s32.totalorder %s90, %s104
    %p106 = scmp.eq.s32.totalorder %s17, 0
    %p107 = por %p105, %p106
    %s109 = sadd.s32 %s108, 1
    %p112 = scmp.eq.s32.totalorder %s11, 1
    %p113 = scmp.ne.s32.totalorder %s108, %s110
    %p114 = scmp.eq.s32.totalorder %s11, 0
    %p115 = por %p113, %p114
    %p116 = scmp.ne.s32.totalorder %s108, %s110
    %p117 = scmp.eq.s32.totalorder %s16, 1
    %p118 = por %p116, %p117
    %p119 = scmp.ne.s32.totalorder %s110, %s111
    %p120 = scmp.eq.s32.totalorder %s16, 0
    %p121 = por %p119, %p120
    %p122 = scmp.ne.s32.totalorder %s110, %s111
    %p123 = scmp.eq.s32.totalorder %s17, 1
    %p124 = por %p122, %p123
    %p126 = scmp.ne.s32.totalorder %s111, %s125
    %p127 = scmp.eq.s32.totalorder %s17, 0
    %p128 = por %p126, %p127
    %s129 = ssub.s32 %s11, %s18
    %p130 = scmp.eq.s32.totalorder %s129, 0
    %s132 = sadd.s32 %s131, 1
    %s133 = scalar_select %p130, %s131, %s132
    %p136 = pneg %p130
    %p137 = scmp.eq.s32.totalorder %s11, 1
    %p138 = por %p136, %p137
    %p139 = scmp.ne.s32.totalorder %s131, %s134
    %p140 = scmp.eq.s32.totalorder %s11, 0
    %p141 = por %p139, %p140
    %p142 = scmp.ne.s32.totalorder %s131, %s134
    %p143 = scmp.eq.s32.totalorder %s16, 1
    %p144 = por %p142, %p143
    %p145 = scmp.ne.s32.totalorder %s134, %s135
    %p146 = scmp.eq.s32.totalorder %s16, 0
    %p147 = por %p145, %p146
    %p148 = scmp.ne.s32.totalorder %s134, %s135
    %p149 = scmp.eq.s32.totalorder %s17, 1
    %p150 = por %p148, %p149
    %p152 = scmp.ne.s32.totalorder %s135, %s151
    %p153 = scmp.eq.s32.totalorder %s17, 0
    %p154 = por %p152, %p153
    %p155 = scmp.le.s32.totalorder 1, %s11
    %p156 = scmp.lt.s32.totalorder %s11, 3
    %p157 = pnand %p155, %p156
    %p158 = pneg %p157
    // Predicated region
    $region9: #{faster_rcnn_forward.5} parent=5 // pred_check
      _
    $region10: #{faster_rcnn_forward.5} parent=5 // pred_check_branch
      %160 = sbr.rel (%p157) target = $region12
    $region11: #{faster_rcnn_forward.5} parent=5 // pred_region
      %s161 = ssub.s32 %s11, 1
      // Predicated region
      $region13: #{faster_rcnn_forward.5} parent=11 // pred_check
        %p162 = pneg %p58
      $region14: #{faster_rcnn_forward.5} parent=11 // pred_check_branch
        %164 = sbr.rel (%p162) target = $region16
      $region15: #{faster_rcnn_forward.5} parent=11 // pred_region
        _
      $region16: #{faster_rcnn_forward.5} parent=11 // pred_fallthru
        _
      // Predicated region
      $region17: #{faster_rcnn_forward.5} parent=11 // pred_check
        %p165 = pneg %p79
      $region18: #{faster_rcnn_forward.5} parent=11 // pred_check_branch
        %167 = sbr.rel (%p165) target = $region20
      $region19: #{faster_rcnn_forward.5} parent=11 // pred_region
        _
      $region20: #{faster_rcnn_forward.5} parent=11 // pred_fallthru
        _
      // Predicated region
      $region21: #{faster_rcnn_forward.5} parent=11 // pred_check
        %p168 = pneg %p100
      $region22: #{faster_rcnn_forward.5} parent=11 // pred_check_branch
        %170 = sbr.rel (%p168) target = $region24
      $region23: #{faster_rcnn_forward.5} parent=11 // pred_region
        _
      $region24: #{faster_rcnn_forward.5} parent=11 // pred_fallthru
        _
      // Predicated region
      $region25: #{faster_rcnn_forward.5} parent=11 // pred_check
        %p171 = pneg %p121
      $region26: #{faster_rcnn_forward.5} parent=11 // pred_check_branch
        %173 = sbr.rel (%p171) target = $region28
      $region27: #{faster_rcnn_forward.5} parent=11 // pred_region
        _
      $region28: #{faster_rcnn_forward.5} parent=11 // pred_fallthru
        _
    $region12: #{faster_rcnn_forward.5} parent=5 // pred_fallthru
      _
    %p174 = scmp.lt.s32.totalorder %s11, 2
    // Predicated region
    $region29: #{faster_rcnn_forward.5} parent=5 // pred_check
      %p175 = pneg %p174
    $region30: #{faster_rcnn_forward.5} parent=5 // pred_check_branch
      %177 = sbr.rel (%p175) target = $region32
    $region31: #{faster_rcnn_forward.5} parent=5 // pred_region
      // Predicated region
      $region33: #{faster_rcnn_forward.5} parent=31 // pred_check
        %p178 = pneg %p31
      $region34: #{faster_rcnn_forward.5} parent=31 // pred_check_branch
        %180 = sbr.rel (%p178) target = $region36
      $region35: #{faster_rcnn_forward.5} parent=31 // pred_region
        %p181 = scmp.lt.s32.totalorder %s11, 1
        %s182 = scalar_select %p181, %s11, 1
        %s183 = smul.addr %s182, 4
        %s184 = smul.addr %s183, 4
        %s185 = scalar_lea.vmem %s0, %s184
      $region36: #{faster_rcnn_forward.5} parent=31 // pred_fallthru
        _
    $region32: #{faster_rcnn_forward.5} parent=5 // pred_fallthru
      _
    %p186 = scmp.le.s32.totalorder 1, %s11
    %p187 = scmp.lt.s32.totalorder %s11, 3
    %p188 = pnand %p186, %p187
    %p189 = pneg %p188
    // Predicated region
    $region37: #{faster_rcnn_forward.5} parent=5 // pred_check
      _
    $region38: #{faster_rcnn_forward.5} parent=5 // pred_check_branch
      %191 = sbr.rel (%p188) target = $region40
    $region39: #{faster_rcnn_forward.5} parent=5 // pred_region
      %s192 = ssub.s32 %s11, 1
      %p193 = scmp.lt.s32.totalorder %s16, 1
      %s194 = scalar_select %p193, %s16, 1
      %s195 = smul.addr %s194, 4
      %s196 = smul.addr %s195, 4
      %s197 = scalar_lea.vmem %s0, %s196
      %p198 = pneg %p37
      %p199 = pneg %p34
      %p200 = pneg %p58
      %p201 = pneg %p55
      %p202 = pneg %p79
      %p203 = pneg %p76
      %p204 = pneg %p100
      %p205 = pneg %p97
      %p206 = pneg %p121
      %p207 = pneg %p118
      %p208 = pneg %p147
      %p209 = pneg %p144
      %p210 = scmp.lt.s32.totalorder %s16, 1
      %s211 = scalar_select %p210, %s16, 1
      %s212 = smul.addr %s211, 2
      %s213 = smul.addr %s212, 8
      %s214 = scalar_lea.vmem %s5, %s213
      %p215 = scmp.lt.s32.totalorder %s16, 1
      %s216 = scalar_select %p215, %s16, 1
      %s217 = smul.addr %s216, 4
      %s218 = smul.addr %s217, 4
      %s219 = scalar_lea.vmem %s0, %s218
      %p220 = scmp.lt.s32.totalorder %s16, 1
      %s221 = scalar_select %p220, %s16, 1
      %s222 = smul.addr %s221, 2
      %s223 = smul.addr %s222, 8
      %s224 = scalar_lea.vmem %s5, %s223
      %v226 = vld [vmem:[%s219] sm:$0xff]
      %v227 = vld [vmem:[%s219 + $0x8] sm:$0xff]
      %v228 = vld [vmem:[%s1] sm:$0xf]
      %v229 = vld [vmem:[%s1 + $0x4] sm:$0xf]
      %v230 = vld [vmem:[%s1 + $0x8] sm:$0xf]
      %v231 = vld [vmem:[%s1 + $0xc] sm:$0xf]
      %v232 = vld [vmem:[%s1 + $0x10] sm:$0xf]
      %v233 = vld [vmem:[%s1 + $0x14] sm:$0xf]
      %v234 = vld [vmem:[%s1 + $0x18] sm:$0xf]
      %v235 = vld [vmem:[%s1 + $0x1c] sm:$0xf]
      %v236 = vld [vmem:[%s1 + $0x20] sm:$0xf]
      %v237 = vld [vmem:[%s1 + $0x24] sm:$0xf]
      %v238 = vld [vmem:[%s1 + $0x28] sm:$0xf]
      %v239 = vld [vmem:[%s1 + $0x2c] sm:$0xf]
      %v240 = vld [vmem:[%s1 + $0x30] sm:$0xf]
      %v241 = vld [vmem:[%s1 + $0x34] sm:$0xf]
      %v242 = vld [vmem:[%s1 + $0x38] sm:$0xf]
      %v243 = vld [vmem:[%s1 + $0x3c] sm:$0xf]
      %v244 = vld [vmem:[%s1 + $0x40] sm:$0xf]
      %v245 = vld [vmem:[%s1 + $0x44] sm:$0xf]
      %v246 = vld [vmem:[%s2] sm:$0x1]
      %v248 = vlaneseq
      %v249 = vshrl.u32 %v248, 7
      %v250 = vsub.s32 0, %v249
      %v251 = vrot.slane %v246, %v250
      %v255 = vunpack.c.l.b16 %v226
      %v256 = vunpack.c.h.b16 %v226
      %v257 = vunpack.c.l.b16 %v227
      %v258 = vunpack.c.h.b16 %v227
      %v259 = vpack.c.b16 %v257, %v255
      %v260 = vpack.c.b16 %v258, %v256
      %v280 = vunpack.c.l.b16 %v228
      %v281 = vunpack.c.l.b16 %v229
      %v282 = vunpack.c.l.b16 %v230
      %v283 = vunpack.c.l.b16 %v231
      %v284 = vunpack.c.l.b16 %v232
      %v285 = vunpack.c.l.b16 %v233
      %v286 = vunpack.c.l.b16 %v234
      %v287 = vunpack.c.l.b16 %v235
      %v288 = vunpack.c.l.b16 %v236
      %v289 = vunpack.c.l.b16 %v237
      %v290 = vunpack.c.l.b16 %v238
      %v291 = vunpack.c.l.b16 %v239
      %v292 = vunpack.c.l.b16 %v240
      %v293 = vunpack.c.l.b16 %v241
      %v294 = vunpack.c.l.b16 %v242
      %v295 = vunpack.c.l.b16 %v243
      %v296 = vunpack.c.l.b16 %v244
      %v297 = vunpack.c.l.b16 %v245
      %v298 = vpack.c.b16 %v281, %v280
      %v299 = vpack.c.b16 %v283, %v282
      %v300 = vpack.c.b16 %v285, %v284
      %v301 = vpack.c.b16 %v287, %v286
      %v302 = vpack.c.b16 %v289, %v288
      %v303 = vpack.c.b16 %v291, %v290
      %v304 = vpack.c.b16 %v293, %v292
      %v305 = vpack.c.b16 %v295, %v294
      %v306 = vpack.c.b16 %v297, %v296
      %vm316 = vcmask 130048
      %v318 = vsel %vm316, %v260, 0
      %320 = vmatprep.subr.bf16.mxu0 0
      %321 = vmatpush1.bf16.msra.mxu0 %v298
      %322 = vmatprep.subr.bf16.mxu0 0
      %323 = vmatpush1.bf16.msra.mxu0 %v299
      %324 = vmatprep.subr.bf16.mxu0 0
      %325 = vmatpush1.bf16.msra.mxu0 %v300
      %326 = vmatprep.subr.bf16.mxu0 0
      %327 = vmatpush1.bf16.msra.mxu0 %v301
      %328 = vmatprep.subr.bf16.mxu0 0
      %329 = vmatpush1.bf16.msra.mxu0 %v302
      %330 = vmatprep.subr.bf16.mxu0 0
      %331 = vmatpush1.bf16.msra.mxu0 %v303
      %332 = vmatprep.subr.bf16.mxu0 0
      %333 = vmatpush1.bf16.msra.mxu0 %v304
      %334 = vmatprep.subr.bf16.mxu0 0
      %335 = vmatpush1.bf16.msra.mxu0 %v305
      %336 = vmatprep.subr.bf16.mxu0 0
      %337 = vmatpush1.bf16.msra.mxu0 %v306
      %338 = vmatprep.subr.bf16.mxu0 0
      %339 = vmatpush1.bf16.msra.mxu0 0
      %340 = vmatprep.subr.bf16.mxu0 0
      %341 = vmatpush1.bf16.msra.mxu0 0
      %342 = vmatprep.subr.bf16.mxu0 0
      %343 = vmatpush1.bf16.msra.mxu0 0
      %344 = vmatprep.subr.bf16.mxu0 0
      %345 = vmatpush1.bf16.msra.mxu0 0
      %346 = vmatprep.subr.bf16.mxu0 0
      %347 = vmatpush1.bf16.msra.mxu0 0
      %348 = vmatprep.subr.bf16.mxu0 0
      %349 = vmatpush1.bf16.msra.mxu0 0
      %350 = vmatprep.subr.bf16.mxu0 0
      %351 = vmatpush1.bf16.msra.mxu0 0
      %352 = vmatprep.mubr.bf16.mxu0 %v318
      %353 = vmatmul.mubr.bf16.gmra.mrb[0].mxu0 %v259
      %v354 = vpop.f32.mrb[0].mxu0
      %v355 = vadd.f32 %v251, %v354
      %v356 = vpop.f32.mrb[0].mxu0
      %v357 = vpop.f32.mrb[0].mxu0
      %v358 = vadd.f32 %v251, %v357
      %v359 = vpop.f32.mrb[0].mxu0
      %360 = vdwg.mxu0
      %v361 = vmax.f32 %v355, 0.0
      %v362 = vmax.f32 %v358, 0.0
      %v363 = vpack.c.bf16 %v362, %v361
      %v364 = vld [vmem:[%s3] sm:$0xf]
      %v365 = vld [vmem:[%s3 + $0x4] sm:$0xf]
      %v366 = vld [vmem:[%s4] sm:$0x1]
      %v368 = vlaneseq
      %v369 = vshrl.u32 %v368, 7
      %v370 = vsub.s32 0, %v369
      %v371 = vrot.slane %v366, %v370
      %v375 = vunpack.c.l.b16 %v364
      %v376 = vunpack.c.l.b16 %v365
      %v377 = vpack.c.b16 %v376, %v375
      %v380 = vsel %vm316, %v363, 0
      %382 = vmatprep.subr.bf16.mxu0 0
      %383 = vmatpush1.bf16.msra.mxu0 %v377
      %384 = vmatprep.subr.bf16.mxu0 0
      %385 = vmatpush1.bf16.msra.mxu0 0
      %386 = vmatprep.subr.bf16.mxu0 0
      %387 = vmatpush1.bf16.msra.mxu0 0
      %388 = vmatprep.subr.bf16.mxu0 0
      %389 = vmatpush1.bf16.msra.mxu0 0
      %390 = vmatprep.subr.bf16.mxu0 0
      %391 = vmatpush1.bf16.msra.mxu0 0
      %392 = vmatprep.subr.bf16.mxu0 0
      %393 = vmatpush1.bf16.msra.mxu0 0
      %394 = vmatprep.subr.bf16.mxu0 0
      %395 = vmatpush1.bf16.msra.mxu0 0
      %396 = vmatprep.subr.bf16.mxu0 0
      %397 = vmatpush1.bf16.msra.mxu0 0
      %398 = vmatprep.subr.bf16.mxu0 0
      %399 = vmatpush1.bf16.msra.mxu0 0
      %400 = vmatprep.subr.bf16.mxu0 0
      %401 = vmatpush1.bf16.msra.mxu0 0
      %402 = vmatprep.subr.bf16.mxu0 0
      %403 = vmatpush1.bf16.msra.mxu0 0
      %404 = vmatprep.subr.bf16.mxu0 0
      %405 = vmatpush1.bf16.msra.mxu0 0
      %406 = vmatprep.subr.bf16.mxu0 0
      %407 = vmatpush1.bf16.msra.mxu0 0
      %408 = vmatprep.subr.bf16.mxu0 0
      %409 = vmatpush1.bf16.msra.mxu0 0
      %410 = vmatprep.subr.bf16.mxu0 0
      %411 = vmatpush1.bf16.msra.mxu0 0
      %412 = vmatprep.subr.bf16.mxu0 0
      %413 = vmatpush1.bf16.msra.mxu0 0
      %414 = vmatprep.mubr.bf16.mxu0 0
      %415 = vmatmul.mubr.bf16.gmra.mrb[0].mxu0 %v380
      %v416 = vpop.f32.mrb[0].mxu0
      %v417 = vadd.f32 %v371, %v416
      %v418 = vpop.f32.mrb[0].mxu0
      %v419 = vpop.f32.mrb[0].mxu0
      %v420 = vadd.f32 %v371, %v419
      %v421 = vpop.f32.mrb[0].mxu0
      %422 = vdwg.mxu0
      %v423 = vlaneseq
      %v424 = vand.u32 %v423, 127
      %vm425 = vcmp.eq.s32.totalorder %v424, 0
      %v426 = vxor.u32 %v417, 2147483648
      %v427 = vxor.u32 %v420, 2147483648
      %v428 = vmul.f32 %v426, 1.442695
      %v429 = vpow.pop %v428
      %v430 = vmul.f32 %v427, 1.442695
      %v431 = vpow.pop %v430
      %v432 = vadd.f32 %v429, 1.0
      %v433 = vadd.f32 %v431, 1.0
      %v434 = vrcp.pop %v432
      %v435 = vmul.f32 1.0, %v434
      %v436 = vrcp.pop %v433
      %v437 = vmul.f32 1.0, %v436
      %v438 = vsel %vm425, %v435, %v417
      %v439 = vsel %vm425, %v437, %v420
      %440 = vst [vmem:[%s224] sm:$0xff] %v438
      %441 = vst [vmem:[%s224 + $0x8] sm:$0xff] %v439
      %p442 = scmp.lt.s32.totalorder %s16, 1
      %s443 = scalar_select %p442, %s16, 1
      %s444 = smul.addr %s443, 2
      %s445 = smul.addr %s444, 8
      %s446 = scalar_lea.vmem %s5, %s445
      // Predicated region
      $region41: #{faster_rcnn_forward.5} parent=39 // pred_check
        %p447 = pneg %p144
      $region42: #{faster_rcnn_forward.5} parent=39 // pred_check_branch
        %449 = sbr.rel (%p447) target = $region44
      $region43: #{faster_rcnn_forward.5} parent=39 // pred_region
        _
      $region44: #{faster_rcnn_forward.5} parent=39 // pred_fallthru
        _
    $region40: #{faster_rcnn_forward.5} parent=5 // pred_fallthru
      _
    %p450 = scmp.le.s32.totalorder 2, %s11
    // Predicated region
    $region45: #{faster_rcnn_forward.5} parent=5 // pred_check
      %p451 = pneg %p450
    $region46: #{faster_rcnn_forward.5} parent=5 // pred_check_branch
      %453 = sbr.rel (%p451) target = $region48
    $region47: #{faster_rcnn_forward.5} parent=5 // pred_region
      %s454 = ssub.s32 %s11, 2
      // Predicated region
      $region49: #{faster_rcnn_forward.5} parent=47 // pred_check
        %p455 = pneg %p150
      $region50: #{faster_rcnn_forward.5} parent=47 // pred_check_branch
        %457 = sbr.rel (%p455) target = $region52
      $region51: #{faster_rcnn_forward.5} parent=47 // pred_region
        %p458 = scmp.lt.s32.totalorder %s17, 1
        %s459 = scalar_select %p458, %s17, 1
        %s460 = smul.addr %s459, 2
        %s461 = smul.addr %s460, 8
        %s462 = scalar_lea.vmem %s5, %s461
      $region52: #{faster_rcnn_forward.5} parent=47 // pred_fallthru
        _
    $region48: #{faster_rcnn_forward.5} parent=5 // pred_fallthru
      _
  $region6: #{faster_rcnn_forward.5} parent=0 // loop_footer
    %s15 = sadd.s32 1, %s11
  $region7: #{faster_rcnn_forward.5} parent=0 // loop_footer_branch
    %10 = sbr.rel target = $region3
  $region8: #{faster_rcnn_forward.5} parent=0 // loop_exit
    _

// kernel: squeeze.137
$region0: #{squeeze.137}
  %s0 = inlined_call_operand.vmem [shape: f32[1,8,20], index: 0, kind: input, shape index: {}]
  %s1 = inlined_call_operand.vmem [shape: f32[8,5,4], index: 1, kind: output, shape index: {}]
  $region1: #{squeeze.137} parent=0
    #allocation0 [shape = 'u8[20480]{0}', space=vmem, size = 0x5000, scoped, tag = 'scoped mem for output reshape']
    %v2 = vld [vmem:[%s0] sm:$0xff]
    %vm3 = vcmask 64512
    %4 = vst.msk [vmem:[#allocation0] sm:$0xf] %vm3, %v2
    %s5 = scalar_lea.vmem [#allocation0], 4
    %6 = vst.msk [vmem:[%s5] sm:$0xf0] %vm3, %v2
    %s7 = scalar_lea.vmem %s0, 8
    %v8 = vld [vmem:[%s7] sm:$0xff]
    %vm9 = vcmask 64512
    %s10 = scalar_lea.vmem [#allocation0], 16
    %11 = vst.msk [vmem:[%s10] sm:$0xf] %vm9, %v8
    %s12 = scalar_lea.vmem [#allocation0], 20
    %13 = vst.msk [vmem:[%s12] sm:$0xf0] %vm9, %v8
    %s14 = scalar_lea.vmem %s0, 16
    %v15 = vld [vmem:[%s14] sm:$0xf]
    %vm16 = vcmask 64512
    %s17 = scalar_lea.vmem [#allocation0], 32
    %18 = vst.msk [vmem:[%s17] sm:$0xf] %vm16, %v15
    %s20 = sshllo.u32 0, 4
    %v22 = vld [vmem:[#allocation0] sm:%s20]
    %s23 = sshllo.u32 0, 4
    %24 = vst [vmem:[%s1] sm:%s23] %v22
    %s25 = scalar_lea.vmem [#allocation0], 8
    %v26 = vld [vmem:[%s25] sm:%s20]
    %s27 = sshllo.u32 0, 4
    %s28 = scalar_lea.vmem %s1, 4
    %29 = vst [vmem:[%s28] sm:%s27] %v26
    %s30 = scalar_lea.vmem [#allocation0], 16
    %v31 = vld [vmem:[%s30] sm:%s20]
    %s32 = sshllo.u32 0, 4
    %s33 = smul.addr 4, 2
    %s34 = scalar_lea.vmem %s1, %s33
    %35 = vst [vmem:[%s34] sm:%s32] %v31
    %s36 = scalar_lea.vmem [#allocation0], 24
    %v37 = vld [vmem:[%s36] sm:%s20]
    %s38 = sshllo.u32 0, 4
    %s39 = smul.addr 4, 3
    %s40 = scalar_lea.vmem %s1, %s39
    %41 = vst [vmem:[%s40] sm:%s38] %v37
    %s42 = scalar_lea.vmem [#allocation0], 32
    %v43 = vld [vmem:[%s42] sm:%s20]
    %s44 = sshllo.u32 0, 4
    %s45 = smul.addr 4, 4
    %s46 = scalar_lea.vmem %s1, %s45
    %47 = vst [vmem:[%s46] sm:%s44] %v43

// kernel: mul.178
$region0: #{mul.178}
  #allocation0 [shape = 's32[1]{0}', space=sflag, size = 0x4, scoped, tag = 'scoped memory for mul.178']
  %s0 = inlined_call_operand.vmem [shape: f32[8], index: 0, kind: input, shape index: {}]
  %s1 = inlined_call_operand.vmem [shape: f32[8,4], index: 1, kind: output, shape index: {}]
  // Predicated region
  $region2: #{mul.178} parent=0 // pred_check
    _
  $region3: #{mul.178} parent=0 // pred_check_branch
    %3 = sbr.rel (0) target = $region5
  $region4: #{mul.178} parent=0 // pred_region
    _
  $region5: #{mul.178} parent=0 // pred_fallthru
    _
  %v4 = vld [vmem:[%s0] ss:$0 sm:$0xff]
  %6 = vbcast.lane.b32.xlu0 %v4, 256
  %v7 = vpop.permute.xlu0 %6
  %8 = vst [vmem:[%s1] sm:$0xff] %v7

// kernel: faster_rcnn_forward.6
$region0: #{faster_rcnn_forward.6}
  #allocation0 [shape = 'u32[]', space=smem, size = 0x4, offset = 0x4, fixed_abs, tag = 'smem constant byte address 0x4 - core index']
  #allocation1 [shape = 'u32[144,128]{1,0:T(1,128)}', space=vmem, size = 0x12000, scoped, tag = 'internal scratch']
  %s0 = inlined_call_operand.vmem [shape: bf16[2,8,64], index: 0, kind: input, shape index: {}]
  %s1 = inlined_call_operand.vmem [shape: bf16[64,32], index: 1, kind: input, shape index: {}]
  %s2 = inlined_call_operand.vmem [shape: f32[1,32], index: 2, kind: input, shape index: {}]
  %s3 = inlined_call_operand.vmem [shape: bf16[32,128], index: 3, kind: input, shape index: {}]
  %s4 = inlined_call_operand.vmem [shape: f32[1,128], index: 4, kind: input, shape index: {}]
  %s5 = inlined_call_operand.vmem [shape: bf16[32,32], index: 5, kind: input, shape index: {}]
  %s6 = inlined_call_operand.vmem [shape: f32[1,32], index: 6, kind: input, shape index: {}]
  %s7 = inlined_call_operand.vmem [shape: bf16[32,128], index: 7, kind: input, shape index: {}]
  %s8 = inlined_call_operand.vmem [shape: f32[1,128], index: 8, kind: input, shape index: {}]
  %s9 = inlined_call_operand.vmem [shape: f32[2,8,128], index: 9, kind: output, shape index: {0}]
  %s10 = inlined_call_operand.vmem [shape: f32[2,8,128], index: 10, kind: output, shape index: {1}]
  %s11 = inlined_call_operand.vmem [shape: f32[2,8,128], index: 11, kind: output, shape index: {2}]
  %12 = xla_tuple %s9, %s10, %s11
  %s13 = sld [smem:[#allocation0]]
  $region85: #{faster_rcnn_forward.6} parent=0
    _
  %s15 = ssub.s32 1, %s13
  %s16 = scalar_select 0, %s15, %s13
  loop: start=0, step=1, limit=4
  $region2: #{faster_rcnn_forward.6} parent=0 // loop_pre_header
    _
  $region3: #{faster_rcnn_forward.6} parent=0 // loop_header
    %s18 = sphi 0, %s22
    %p19 = scmp.ge.s32.totalorder %s18, 4
    %s28 = sphi 0, %s30
    %s31 = sphi 0, %s28
    %s32 = sphi 0, %s31
    %s48 = sphi 0, %s32
    %s52 = sphi 0, %s52
    %s54 = sphi 0, %s52
    %s55 = sphi 0, %s54
    %s69 = sphi 0, %s55
    %s73 = sphi 0, %s73
    %s75 = sphi 0, %s73
    %s76 = sphi 0, %s75
    %s90 = sphi 0, %s76
    %s94 = sphi 0, %s94
    %s96 = sphi 0, %s94
    %s97 = sphi 0, %s96
    %s111 = sphi 0, %s97
    %s115 = sphi 0, %s115
    %s117 = sphi 0, %s115
    %s118 = sphi 0, %s117
    %s132 = sphi 0, %s118
    %s136 = sphi 0, %s136
    %s138 = sphi 0, %s136
    %s139 = sphi 0, %s138
    %s153 = sphi 0, %s139
    %s157 = sphi 0, %s157
    %s159 = sphi 0, %s157
    %s160 = sphi 0, %s159
    %s174 = sphi 0, %s160
    %s178 = sphi 0, %s178
    %s180 = sphi 0, %s178
    %s181 = sphi 0, %s180
    %s195 = sphi 0, %s181
    %s199 = sphi 0, %s199
    %s201 = sphi 0, %s199
    %s202 = sphi 0, %s201
    %s216 = sphi 0, %s202
    %s222 = sphi 0, %s224
    %s225 = sphi 0, %s222
    %s226 = sphi 0, %s225
    %s242 = sphi 0, %s226
    %s248 = sphi 0, %s250
    %s251 = sphi 0, %s248
    %s252 = sphi 0, %s251
    %s268 = sphi 0, %s252
    %s274 = sphi 0, %s276
    %s277 = sphi 0, %s274
    %s278 = sphi 0, %s277
    %s294 = sphi 0, %s278
  $region4: #{faster_rcnn_forward.6} parent=0 // loop_header_branch
    %21 = sbr.rel (%p19) target = $region8
  $region5: #{faster_rcnn_forward.6} parent=0 // loop_body
    %s23 = ssub.s32 %s18, 1
    %s24 = ssub.s32 %s18, 2
    %s25 = sadd.s32 %s18, 1
    %s26 = ssub.s32 %s18, %s25
    %p27 = scmp.eq.s32.totalorder %s26, 0
    %s29 = sadd.s32 %s28, 1
    %s30 = scalar_select %p27, %s28, %s29
    %p33 = pneg %p27
    %p34 = scmp.eq.s32.totalorder %s18, 1
    %p35 = por %p33, %p34
    %p36 = scmp.ne.s32.totalorder %s28, %s31
    %p37 = scmp.eq.s32.totalorder %s18, 0
    %p38 = por %p36, %p37
    %p39 = scmp.ne.s32.totalorder %s28, %s31
    %p40 = scmp.eq.s32.totalorder %s23, 1
    %p41 = por %p39, %p40
    %p42 = scmp.ne.s32.totalorder %s31, %s32
    %p43 = scmp.eq.s32.totalorder %s23, 0
    %p44 = por %p42, %p43
    %p45 = scmp.ne.s32.totalorder %s31, %s32
    %p46 = scmp.eq.s32.totalorder %s24, 1
    %p47 = por %p45, %p46
    %p49 = scmp.ne.s32.totalorder %s32, %s48
    %p50 = scmp.eq.s32.totalorder %s24, 0
    %p51 = por %p49, %p50
    %s53 = sadd.s32 %s52, 1
    %p56 = scmp.eq.s32.totalorder %s18, 1
    %p57 = scmp.ne.s32.totalorder %s52, %s54
    %p58 = scmp.eq.s32.totalorder %s18, 0
    %p59 = por %p57, %p58
    %p60 = scmp.ne.s32.totalorder %s52, %s54
    %p61 = scmp.eq.s32.totalorder %s23, 1
    %p62 = por %p60, %p61
    %p63 = scmp.ne.s32.totalorder %s54, %s55
    %p64 = scmp.eq.s32.totalorder %s23, 0
    %p65 = por %p63, %p64
    %p66 = scmp.ne.s32.totalorder %s54, %s55
    %p67 = scmp.eq.s32.totalorder %s24, 1
    %p68 = por %p66, %p67
    %p70 = scmp.ne.s32.totalorder %s55, %s69
    %p71 = scmp.eq.s32.totalorder %s24, 0
    %p72 = por %p70, %p71
    %s74 = sadd.s32 %s73, 1
    %p77 = scmp.eq.s32.totalorder %s18, 1
    %p78 = scmp.ne.s32.totalorder %s73, %s75
    %p79 = scmp.eq.s32.totalorder %s18, 0
    %p80 = por %p78, %p79
    %p81 = scmp.ne.s32.totalorder %s73, %s75
    %p82 = scmp.eq.s32.totalorder %s23, 1
    %p83 = por %p81, %p82
    %p84 = scmp.ne.s32.totalorder %s75, %s76
    %p85 = scmp.eq.s32.totalorder %s23, 0
    %p86 = por %p84, %p85
    %p87 = scmp.ne.s32.totalorder %s75, %s76
    %p88 = scmp.eq.s32.totalorder %s24, 1
    %p89 = por %p87, %p88
    %p91 = scmp.ne.s32.totalorder %s76, %s90
    %p92 = scmp.eq.s32.totalorder %s24, 0
    %p93 = por %p91, %p92
    %s95 = sadd.s32 %s94, 1
    %p98 = scmp.eq.s32.totalorder %s18, 1
    %p99 = scmp.ne.s32.totalorder %s94, %s96
    %p100 = scmp.eq.s32.totalorder %s18, 0
    %p101 = por %p99, %p100
    %p102 = scmp.ne.s32.totalorder %s94, %s96
    %p103 = scmp.eq.s32.totalorder %s23, 1
    %p104 = por %p102, %p103
    %p105 = scmp.ne.s32.totalorder %s96, %s97
    %p106 = scmp.eq.s32.totalorder %s23, 0
    %p107 = por %p105, %p106
    %p108 = scmp.ne.s32.totalorder %s96, %s97
    %p109 = scmp.eq.s32.totalorder %s24, 1
    %p110 = por %p108, %p109
    %p112 = scmp.ne.s32.totalorder %s97, %s111
    %p113 = scmp.eq.s32.totalorder %s24, 0
    %p114 = por %p112, %p113
    %s116 = sadd.s32 %s115, 1
    %p119 = scmp.eq.s32.totalorder %s18, 1
    %p120 = scmp.ne.s32.totalorder %s115, %s117
    %p121 = scmp.eq.s32.totalorder %s18, 0
    %p122 = por %p120, %p121
    %p123 = scmp.ne.s32.totalorder %s115, %s117
    %p124 = scmp.eq.s32.totalorder %s23, 1
    %p125 = por %p123, %p124
    %p126 = scmp.ne.s32.totalorder %s117, %s118
    %p127 = scmp.eq.s32.totalorder %s23, 0
    %p128 = por %p126, %p127
    %p129 = scmp.ne.s32.totalorder %s117, %s118
    %p130 = scmp.eq.s32.totalorder %s24, 1
    %p131 = por %p129, %p130
    %p133 = scmp.ne.s32.totalorder %s118, %s132
    %p134 = scmp.eq.s32.totalorder %s24, 0
    %p135 = por %p133, %p134
    %s137 = sadd.s32 %s136, 1
    %p140 = scmp.eq.s32.totalorder %s18, 1
    %p141 = scmp.ne.s32.totalorder %s136, %s138
    %p142 = scmp.eq.s32.totalorder %s18, 0
    %p143 = por %p141, %p142
    %p144 = scmp.ne.s32.totalorder %s136, %s138
    %p145 = scmp.eq.s32.totalorder %s23, 1
    %p146 = por %p144, %p145
    %p147 = scmp.ne.s32.totalorder %s138, %s139
    %p148 = scmp.eq.s32.totalorder %s23, 0
    %p149 = por %p147, %p148
    %p150 = scmp.ne.s32.totalorder %s138, %s139
    %p151 = scmp.eq.s32.totalorder %s24, 1
    %p152 = por %p150, %p151
    %p154 = scmp.ne.s32.totalorder %s139, %s153
    %p155 = scmp.eq.s32.totalorder %s24, 0
    %p156 = por %p154, %p155
    %s158 = sadd.s32 %s157, 1
    %p161 = scmp.eq.s32.totalorder %s18, 1
    %p162 = scmp.ne.s32.totalorder %s157, %s159
    %p163 = scmp.eq.s32.totalorder %s18, 0
    %p164 = por %p162, %p163
    %p165 = scmp.ne.s32.totalorder %s157, %s159
    %p166 = scmp.eq.s32.totalorder %s23, 1
    %p167 = por %p165, %p166
    %p168 = scmp.ne.s32.totalorder %s159, %s160
    %p169 = scmp.eq.s32.totalorder %s23, 0
    %p170 = por %p168, %p169
    %p171 = scmp.ne.s32.totalorder %s159, %s160
    %p172 = scmp.eq.s32.totalorder %s24, 1
    %p173 = por %p171, %p172
    %p175 = scmp.ne.s32.totalorder %s160, %s174
    %p176 = scmp.eq.s32.totalorder %s24, 0
    %p177 = por %p175, %p176
    %s179 = sadd.s32 %s178, 1
    %p182 = scmp.eq.s32.totalorder %s18, 1
    %p183 = scmp.ne.s32.totalorder %s178, %s180
    %p184 = scmp.eq.s32.totalorder %s18, 0
    %p185 = por %p183, %p184
    %p186 = scmp.ne.s32.totalorder %s178, %s180
    %p187 = scmp.eq.s32.totalorder %s23, 1
    %p188 = por %p186, %p187
    %p189 = scmp.ne.s32.totalorder %s180, %s181
    %p190 = scmp.eq.s32.totalorder %s23, 0
    %p191 = por %p189, %p190
    %p192 = scmp.ne.s32.totalorder %s180, %s181
    %p193 = scmp.eq.s32.totalorder %s24, 1
    %p194 = por %p192, %p193
    %p196 = scmp.ne.s32.totalorder %s181, %s195
    %p197 = scmp.eq.s32.totalorder %s24, 0
    %p198 = por %p196, %p197
    %s200 = sadd.s32 %s199, 1
    %p203 = scmp.eq.s32.totalorder %s18, 1
    %p204 = scmp.ne.s32.totalorder %s199, %s201
    %p205 = scmp.eq.s32.totalorder %s18, 0
    %p206 = por %p204, %p205
    %p207 = scmp.ne.s32.totalorder %s199, %s201
    %p208 = scmp.eq.s32.totalorder %s23, 1
    %p209 = por %p207, %p208
    %p210 = scmp.ne.s32.totalorder %s201, %s202
    %p211 = scmp.eq.s32.totalorder %s23, 0
    %p212 = por %p210, %p211
    %p213 = scmp.ne.s32.totalorder %s201, %s202
    %p214 = scmp.eq.s32.totalorder %s24, 1
    %p215 = por %p213, %p214
    %p217 = scmp.ne.s32.totalorder %s202, %s216
    %p218 = scmp.eq.s32.totalorder %s24, 0
    %p219 = por %p217, %p218
    %s220 = ssub.s32 %s18, %s25
    %p221 = scmp.eq.s32.totalorder %s220, 0
    %s223 = sadd.s32 %s222, 1
    %s224 = scalar_select %p221, %s222, %s223
    %p227 = pneg %p221
    %p228 = scmp.eq.s32.totalorder %s18, 1
    %p229 = por %p227, %p228
    %p230 = scmp.ne.s32.totalorder %s222, %s225
    %p231 = scmp.eq.s32.totalorder %s18, 0
    %p232 = por %p230, %p231
    %p233 = scmp.ne.s32.totalorder %s222, %s225
    %p234 = scmp.eq.s32.totalorder %s23, 1
    %p235 = por %p233, %p234
    %p236 = scmp.ne.s32.totalorder %s225, %s226
    %p237 = scmp.eq.s32.totalorder %s23, 0
    %p238 = por %p236, %p237
    %p239 = scmp.ne.s32.totalorder %s225, %s226
    %p240 = scmp.eq.s32.totalorder %s24, 1
    %p241 = por %p239, %p240
    %p243 = scmp.ne.s32.totalorder %s226, %s242
    %p244 = scmp.eq.s32.totalorder %s24, 0
    %p245 = por %p243, %p244
    %s246 = ssub.s32 %s18, %s25
    %p247 = scmp.eq.s32.totalorder %s246, 0
    %s249 = sadd.s32 %s248, 1
    %s250 = scalar_select %p247, %s248, %s249
    %p253 = pneg %p247
    %p254 = scmp.eq.s32.totalorder %s18, 1
    %p255 = por %p253, %p254
    %p256 = scmp.ne.s32.totalorder %s248, %s251
    %p257 = scmp.eq.s32.totalorder %s18, 0
    %p258 = por %p256, %p257
    %p259 = scmp.ne.s32.totalorder %s248, %s251
    %p260 = scmp.eq.s32.totalorder %s23, 1
    %p261 = por %p259, %p260
    %p262 = scmp.ne.s32.totalorder %s251, %s252
    %p263 = scmp.eq.s32.totalorder %s23, 0
    %p264 = por %p262, %p263
    %p265 = scmp.ne.s32.totalorder %s251, %s252
    %p266 = scmp.eq.s32.totalorder %s24, 1
    %p267 = por %p265, %p266
    %p269 = scmp.ne.s32.totalorder %s252, %s268
    %p270 = scmp.eq.s32.totalorder %s24, 0
    %p271 = por %p269, %p270
    %s272 = ssub.s32 %s18, %s25
    %p273 = scmp.eq.s32.totalorder %s272, 0
    %s275 = sadd.s32 %s274, 1
    %s276 = scalar_select %p273, %s274, %s275
    %p279 = pneg %p273
    %p280 = scmp.eq.s32.totalorder %s18, 1
    %p281 = por %p279, %p280
    %p282 = scmp.ne.s32.totalorder %s274, %s277
    %p283 = scmp.eq.s32.totalorder %s18, 0
    %p284 = por %p282, %p283
    %p285 = scmp.ne.s32.totalorder %s274, %s277
    %p286 = scmp.eq.s32.totalorder %s23, 1
    %p287 = por %p285, %p286
    %p288 = scmp.ne.s32.totalorder %s277, %s278
    %p289 = scmp.eq.s32.totalorder %s23, 0
    %p290 = por %p288, %p289
    %p291 = scmp.ne.s32.totalorder %s277, %s278
    %p292 = scmp.eq.s32.totalorder %s24, 1
    %p293 = por %p291, %p292
    %p295 = scmp.ne.s32.totalorder %s278, %s294
    %p296 = scmp.eq.s32.totalorder %s24, 0
    %p297 = por %p295, %p296
    %p298 = scmp.le.s32.totalorder 1, %s18
    %p299 = scmp.lt.s32.totalorder %s18, 3
    %p300 = pnand %p298, %p299
    %p301 = pneg %p300
    // Predicated region
    $region9: #{faster_rcnn_forward.6} parent=5 // pred_check
      _
    $region10: #{faster_rcnn_forward.6} parent=5 // pred_check_branch
      %303 = sbr.rel (%p300) target = $region12
    $region11: #{faster_rcnn_forward.6} parent=5 // pred_region
      %s304 = ssub.s32 %s18, 1
      // Predicated region
      $region13: #{faster_rcnn_forward.6} parent=11 // pred_check
        %p305 = pneg %p65
      $region14: #{faster_rcnn_forward.6} parent=11 // pred_check_branch
        %307 = sbr.rel (%p305) target = $region16
      $region15: #{faster_rcnn_forward.6} parent=11 // pred_region
        _
      $region16: #{faster_rcnn_forward.6} parent=11 // pred_fallthru
        _
      // Predicated region
      $region17: #{faster_rcnn_forward.6} parent=11 // pred_check
        %p308 = pneg %p86
      $region18: #{faster_rcnn_forward.6} parent=11 // pred_check_branch
        %310 = sbr.rel (%p308) target = $region20
      $region19: #{faster_rcnn_forward.6} parent=11 // pred_region
        _
      $region20: #{faster_rcnn_forward.6} parent=11 // pred_fallthru
        _
      // Predicated region
      $region21: #{faster_rcnn_forward.6} parent=11 // pred_check
        %p311 = pneg %p107
      $region22: #{faster_rcnn_forward.6} parent=11 // pred_check_branch
        %313 = sbr.rel (%p311) target = $region24
      $region23: #{faster_rcnn_forward.6} parent=11 // pred_region
        _
      $region24: #{faster_rcnn_forward.6} parent=11 // pred_fallthru
        _
      // Predicated region
      $region25: #{faster_rcnn_forward.6} parent=11 // pred_check
        %p314 = pneg %p128
      $region26: #{faster_rcnn_forward.6} parent=11 // pred_check_branch
        %316 = sbr.rel (%p314) target = $region28
      $region27: #{faster_rcnn_forward.6} parent=11 // pred_region
        _
      $region28: #{faster_rcnn_forward.6} parent=11 // pred_fallthru
        _
      // Predicated region
      $region29: #{faster_rcnn_forward.6} parent=11 // pred_check
        %p317 = pneg %p149
      $region30: #{faster_rcnn_forward.6} parent=11 // pred_check_branch
        %319 = sbr.rel (%p317) target = $region32
      $region31: #{faster_rcnn_forward.6} parent=11 // pred_region
        _
      $region32: #{faster_rcnn_forward.6} parent=11 // pred_fallthru
        _
      // Predicated region
      $region33: #{faster_rcnn_forward.6} parent=11 // pred_check
        %p320 = pneg %p170
      $region34: #{faster_rcnn_forward.6} parent=11 // pred_check_branch
        %322 = sbr.rel (%p320) target = $region36
      $region35: #{faster_rcnn_forward.6} parent=11 // pred_region
        _
      $region36: #{faster_rcnn_forward.6} parent=11 // pred_fallthru
        _
      // Predicated region
      $region37: #{faster_rcnn_forward.6} parent=11 // pred_check
        %p323 = pneg %p191
      $region38: #{faster_rcnn_forward.6} parent=11 // pred_check_branch
        %325 = sbr.rel (%p323) target = $region40
      $region39: #{faster_rcnn_forward.6} parent=11 // pred_region
        _
      $region40: #{faster_rcnn_forward.6} parent=11 // pred_fallthru
        _
      // Predicated region
      $region41: #{faster_rcnn_forward.6} parent=11 // pred_check
        %p326 = pneg %p212
      $region42: #{faster_rcnn_forward.6} parent=11 // pred_check_branch
        %328 = sbr.rel (%p326) target = $region44
      $region43: #{faster_rcnn_forward.6} parent=11 // pred_region
        _
      $region44: #{faster_rcnn_forward.6} parent=11 // pred_fallthru
        _
    $region12: #{faster_rcnn_forward.6} parent=5 // pred_fallthru
      _
    %p329 = scmp.lt.s32.totalorder %s18, 2
    // Predicated region
    $region45: #{faster_rcnn_forward.6} parent=5 // pred_check
      %p330 = pneg %p329
    $region46: #{faster_rcnn_forward.6} parent=5 // pred_check_branch
      %332 = sbr.rel (%p330) target = $region48
    $region47: #{faster_rcnn_forward.6} parent=5 // pred_region
      // Predicated region
      $region49: #{faster_rcnn_forward.6} parent=47 // pred_check
        %p333 = pneg %p38
      $region50: #{faster_rcnn_forward.6} parent=47 // pred_check_branch
        %335 = sbr.rel (%p333) target = $region52
      $region51: #{faster_rcnn_forward.6} parent=47 // pred_region
        %p336 = scmp.lt.s32.totalorder %s18, 1
        %s337 = scalar_select %p336, %s18, 1
        %s338 = smul.addr %s337, 4
        %s339 = scalar_lea.vmem %s0, %s338
      $region52: #{faster_rcnn_forward.6} parent=47 // pred_fallthru
        _
    $region48: #{faster_rcnn_forward.6} parent=5 // pred_fallthru
      _
    %p340 = scmp.le.s32.totalorder 1, %s18
    %p341 = scmp.lt.s32.totalorder %s18, 3
    %p342 = pnand %p340, %p341
    %p343 = pneg %p342
    // Predicated region
    $region53: #{faster_rcnn_forward.6} parent=5 // pred_check
      _
    $region54: #{faster_rcnn_forward.6} parent=5 // pred_check_branch
      %345 = sbr.rel (%p342) target = $region56
    $region55: #{faster_rcnn_forward.6} parent=5 // pred_region
      %s346 = ssub.s32 %s18, 1
      %p347 = scmp.lt.s32.totalorder %s23, 1
      %s348 = scalar_select %p347, %s23, 1
      %s349 = smul.addr %s348, 4
      %s350 = scalar_lea.vmem %s0, %s349
      %p351 = pneg %p44
      %p352 = pneg %p41
      %p353 = pneg %p65
      %p354 = pneg %p62
      %p355 = pneg %p86
      %p356 = pneg %p83
      %p357 = pneg %p107
      %p358 = pneg %p104
      %p359 = pneg %p128
      %p360 = pneg %p125
      %p361 = pneg %p149
      %p362 = pneg %p146
      %p363 = pneg %p170
      %p364 = pneg %p167
      %p365 = pneg %p191
      %p366 = pneg %p188
      %p367 = pneg %p212
      %p368 = pneg %p209
      %p369 = pneg %p238
      %p370 = pneg %p235
      %p371 = scmp.lt.s32.totalorder %s23, 1
      %s372 = scalar_select %p371, %s23, 1
      %s373 = smul.addr %s372, 8
      %s374 = scalar_lea.vmem %s9, %s373
      %p375 = pneg %p264
      %p376 = pneg %p261
      %p377 = scmp.lt.s32.totalorder %s23, 1
      %s378 = scalar_select %p377, %s23, 1
      %s379 = smul.addr %s378, 8
      %s380 = scalar_lea.vmem %s10, %s379
      %p381 = pneg %p290
      %p382 = pneg %p287
      %p383 = scmp.lt.s32.totalorder %s23, 1
      %s384 = scalar_select %p383, %s23, 1
      %s385 = smul.addr %s384, 8
      %s386 = scalar_lea.vmem %s11, %s385
      %p387 = scmp.lt.s32.totalorder %s23, 1
      %s388 = scalar_select %p387, %s23, 1
      %s389 = smul.addr %s388, 4
      %s390 = scalar_lea.vmem %s0, %s389
      %p391 = scmp.lt.s32.totalorder %s23, 1
      %s392 = scalar_select %p391, %s23, 1
      %s393 = smul.addr %s392, 8
      %s394 = scalar_lea.vmem %s9, %s393
      %p395 = scmp.lt.s32.totalorder %s23, 1
      %s396 = scalar_select %p395, %s23, 1
      %s397 = smul.addr %s396, 8
      %s398 = scalar_lea.vmem %s10, %s397
      %p399 = scmp.lt.s32.totalorder %s23, 1
      %s400 = scalar_select %p399, %s23, 1
      %s401 = smul.addr %s400, 8
      %s402 = scalar_lea.vmem %s11, %s401
      %v404 = vld [vmem:[%s390] sm:$0xf]
      %v405 = vld [vmem:[%s1] sm:$0xf]
      %v406 = vld [vmem:[%s1 + $0x4] sm:$0xf]
      %v407 = vld [vmem:[%s1 + $0x8] sm:$0xf]
      %v408 = vld [vmem:[%s1 + $0xc] sm:$0xf]
      %v409 = vld [vmem:[%s1 + $0x10] sm:$0xf]
      %v410 = vld [vmem:[%s1 + $0x14] sm:$0xf]
      %v411 = vld [vmem:[%s1 + $0x18] sm:$0xf]
      %v412 = vld [vmem:[%s1 + $0x1c] sm:$0xf]
      %v413 = vld [vmem:[%s2] sm:$0x1]
      %v415 = vlaneseq
      %v416 = vshrl.u32 %v415, 7
      %v417 = vsub.s32 0, %v416
      %v418 = vrot.slane %v413, %v417
      %v428 = vunpack.c.l.b16 %v405
      %v429 = vunpack.c.l.b16 %v406
      %v430 = vunpack.c.l.b16 %v407
      %v431 = vunpack.c.l.b16 %v408
      %v432 = vunpack.c.l.b16 %v409
      %v433 = vunpack.c.l.b16 %v410
      %v434 = vunpack.c.l.b16 %v411
      %v435 = vunpack.c.l.b16 %v412
      %v436 = vpack.c.b16 %v429, %v428
      %v437 = vpack.c.b16 %v431, %v430
      %v438 = vpack.c.b16 %v433, %v432
      %v439 = vpack.c.b16 %v435, %v434
      %vm444 = vcmask 523264
      %v446 = vsel %vm444, %v404, 0
      %448 = vmatprep.subr.bf16.mxu0 0
      %449 = vmatpush1.bf16.msra.mxu0 %v436
      %450 = vmatprep.subr.bf16.mxu0 0
      %451 = vmatpush1.bf16.msra.mxu0 %v437
      %452 = vmatprep.subr.bf16.mxu0 0
      %453 = vmatpush1.bf16.msra.mxu0 %v438
      %454 = vmatprep.subr.bf16.mxu0 0
      %455 = vmatpush1.bf16.msra.mxu0 %v439
      %456 = vmatprep.subr.bf16.mxu0 0
      %457 = vmatpush1.bf16.msra.mxu0 0
      %458 = vmatprep.subr.bf16.mxu0 0
      %459 = vmatpush1.bf16.msra.mxu0 0
      %460 = vmatprep.subr.bf16.mxu0 0
      %461 = vmatpush1.bf16.msra.mxu0 0
      %462 = vmatprep.subr.bf16.mxu0 0
      %463 = vmatpush1.bf16.msra.mxu0 0
      %464 = vmatprep.subr.bf16.mxu0 0
      %465 = vmatpush1.bf16.msra.mxu0 0
      %466 = vmatprep.subr.bf16.mxu0 0
      %467 = vmatpush1.bf16.msra.mxu0 0
      %468 = vmatprep.subr.bf16.mxu0 0
      %469 = vmatpush1.bf16.msra.mxu0 0
      %470 = vmatprep.subr.bf16.mxu0 0
      %471 = vmatpush1.bf16.msra.mxu0 0
      %472 = vmatprep.subr.bf16.mxu0 0
      %473 = vmatpush1.bf16.msra.mxu0 0
      %474 = vmatprep.subr.bf16.mxu0 0
      %475 = vmatpush1.bf16.msra.mxu0 0
      %476 = vmatprep.subr.bf16.mxu0 0
      %477 = vmatpush1.bf16.msra.mxu0 0
      %478 = vmatprep.subr.bf16.mxu0 0
      %479 = vmatpush1.bf16.msra.mxu0 0
      %480 = vmatprep.mubr.bf16.mxu0 0
      %481 = vmatmul.mubr.bf16.gmra.mrb[0].mxu0 %v446
      %v482 = vpop.f32.mrb[0].mxu0
      %v483 = vadd.f32 %v418, %v482
      %v484 = vpop.f32.mrb[0].mxu0
      %v485 = vpop.f32.mrb[0].mxu0
      %v486 = vpop.f32.mrb[0].mxu0
      %487 = vdwg.mxu0
      %v488 = vmax.f32 %v483, 0.0
      %v489 = vpack.c.bf16 %v488, %v488
      %v490 = vld [vmem:[%s3] sm:$0xf]
      %v491 = vld [vmem:[%s3 + $0x4] sm:$0xf]
      %v492 = vld [vmem:[%s3 + $0x8] sm:$0xf]
      %v493 = vld [vmem:[%s3 + $0xc] sm:$0xf]
      %v494 = vld [vmem:[%s4] sm:$0x1]
      %v496 = vlaneseq
      %v497 = vshrl.u32 %v496, 7
      %v498 = vsub.s32 0, %v497
      %v499 = vrot.slane %v494, %v498
      %v505 = vunpack.c.l.b16 %v490
      %v506 = vunpack.c.l.b16 %v491
      %v507 = vunpack.c.l.b16 %v492
      %v508 = vunpack.c.l.b16 %v493
      %v509 = vpack.c.b16 %v506, %v505
      %v510 = vpack.c.b16 %v508, %v507
      %vm513 = vcmask 261120
      %v515 = vsel %vm513, %v489, 0
      %517 = vmatprep.subr.bf16.mxu0 0
      %518 = vmatpush1.bf16.msra.mxu0 %v509
      %519 = vmatprep.subr.bf16.mxu0 0
      %520 = vmatpush1.bf16.msra.mxu0 %v510
      %521 = vmatprep.subr.bf16.mxu0 0
      %522 = vmatpush1.bf16.msra.mxu0 0
      %523 = vmatprep.subr.bf16.mxu0 0
      %524 = vmatpush1.bf16.msra.mxu0 0
      %525 = vmatprep.subr.bf16.mxu0 0
      %526 = vmatpush1.bf16.msra.mxu0 0
      %527 = vmatprep.subr.bf16.mxu0 0
      %528 = vmatpush1.bf16.msra.mxu0 0
      %529 = vmatprep.subr.bf16.mxu0 0
      %530 = vmatpush1.bf16.msra.mxu0 0
      %531 = vmatprep.subr.bf16.mxu0 0
      %532 = vmatpush1.bf16.msra.mxu0 0
      %533 = vmatprep.subr.bf16.mxu0 0
      %534 = vmatpush1.bf16.msra.mxu0 0
      %535 = vmatprep.subr.bf16.mxu0 0
      %536 = vmatpush1.bf16.msra.mxu0 0
      %537 = vmatprep.subr.bf16.mxu0 0
      %538 = vmatpush1.bf16.msra.mxu0 0
      %539 = vmatprep.subr.bf16.mxu0 0
      %540 = vmatpush1.bf16.msra.mxu0 0
      %541 = vmatprep.subr.bf16.mxu0 0
      %542 = vmatpush1.bf16.msra.mxu0 0
      %543 = vmatprep.subr.bf16.mxu0 0
      %544 = vmatpush1.bf16.msra.mxu0 0
      %545 = vmatprep.subr.bf16.mxu0 0
      %546 = vmatpush1.bf16.msra.mxu0 0
      %547 = vmatprep.subr.bf16.mxu0 0
      %548 = vmatpush1.bf16.msra.mxu0 0
      %549 = vmatprep.mubr.bf16.mxu0 0
      %550 = vmatmul.mubr.bf16.gmra.mrb[0].mxu0 %v515
      %v551 = vpop.f32.mrb[0].mxu0
      %v552 = vadd.f32 %v499, %v551
      %v553 = vpop.f32.mrb[0].mxu0
      %v554 = vpop.f32.mrb[0].mxu0
      %v555 = vpop.f32.mrb[0].mxu0
      %556 = vdwg.mxu0
      %557 = vst [vmem:[%s394] sm:$0xff] %v552
      %v558 = vlaneseq
      %v559 = vand.u32 %v558, 127
      %vm560 = vcmp.lt.s32.totalorder %v559, 5
      %v561 = vsel %vm560, %v552, -1e+30
      %562 = vmax.xlane.f32.xlu0 %v561
      %v563 = vpop.xlane.xlu0 %562
      %v564 = vsub.f32 %v561, %v563
      %v565 = vmul.f32 %v564, 1.442695
      %v566 = vpow.pop %v565
      %567 = vadd.xlane.f32.xlu0 %v566
      %v568 = vpop.xlane.xlu0 %567
      %v569 = vrcp.pop %v568
      %v570 = vmul.f32 %v566, %v569
      %571 = vst [vmem:[%s398] sm:$0xff] %v570
      %v572 = vld [vmem:[%s5] sm:$0xf]
      %v573 = vld [vmem:[%s5 + $0x4] sm:$0xf]
      %v574 = vld [vmem:[%s5 + $0x8] sm:$0xf]
      %v575 = vld [vmem:[%s5 + $0xc] sm:$0xf]
      %v576 = vld [vmem:[%s6] sm:$0x1]
      %v578 = vlaneseq
      %v579 = vshrl.u32 %v578, 7
      %v580 = vsub.s32 0, %v579
      %v581 = vrot.slane %v576, %v580
      %v587 = vunpack.c.l.b16 %v572
      %v588 = vunpack.c.l.b16 %v573
      %v589 = vunpack.c.l.b16 %v574
      %v590 = vunpack.c.l.b16 %v575
      %v591 = vpack.c.b16 %v588, %v587
      %v592 = vpack.c.b16 %v590, %v589
      %595 = vmatprep.subr.bf16.mxu0 0
      %596 = vmatpush1.bf16.msra.mxu0 %v591
      %597 = vmatprep.subr.bf16.mxu0 0
      %598 = vmatpush1.bf16.msra.mxu0 %v592
      %599 = vmatprep.subr.bf16.mxu0 0
      %600 = vmatpush1.bf16.msra.mxu0 0
      %601 = vmatprep.subr.bf16.mxu0 0
      %602 = vmatpush1.bf16.msra.mxu0 0
      %603 = vmatprep.subr.bf16.mxu0 0
      %604 = vmatpush1.bf16.msra.mxu0 0
      %605 = vmatprep.subr.bf16.mxu0 0
      %606 = vmatpush1.bf16.msra.mxu0 0
      %607 = vmatprep.subr.bf16.mxu0 0
      %608 = vmatpush1.bf16.msra.mxu0 0
      %609 = vmatprep.subr.bf16.mxu0 0
      %610 = vmatpush1.bf16.msra.mxu0 0
      %611 = vmatprep.subr.bf16.mxu0 0
      %612 = vmatpush1.bf16.msra.mxu0 0
      %613 = vmatprep.subr.bf16.mxu0 0
      %614 = vmatpush1.bf16.msra.mxu0 0
      %615 = vmatprep.subr.bf16.mxu0 0
      %616 = vmatpush1.bf16.msra.mxu0 0
      %617 = vmatprep.subr.bf16.mxu0 0
      %618 = vmatpush1.bf16.msra.mxu0 0
      %619 = vmatprep.subr.bf16.mxu0 0
      %620 = vmatpush1.bf16.msra.mxu0 0
      %621 = vmatprep.subr.bf16.mxu0 0
      %622 = vmatpush1.bf16.msra.mxu0 0
      %623 = vmatprep.subr.bf16.mxu0 0
      %624 = vmatpush1.bf16.msra.mxu0 0
      %625 = vmatprep.subr.bf16.mxu0 0
      %626 = vmatpush1.bf16.msra.mxu0 0
      %627 = vmatprep.mubr.bf16.mxu0 0
      %628 = vmatmul.mubr.bf16.gmra.mrb[0].mxu0 %v515
      %v629 = vpop.f32.mrb[0].mxu0
      %v630 = vadd.f32 %v581, %v629
      %v631 = vpop.f32.mrb[0].mxu0
      %v632 = vpop.f32.mrb[0].mxu0
      %v633 = vpop.f32.mrb[0].mxu0
      %634 = vdwg.mxu0
      %v635 = vmax.f32 %v630, 0.0
      %v636 = vpack.c.bf16 %v635, %v635
      %v637 = vld [vmem:[%s7] sm:$0xf]
      %v638 = vld [vmem:[%s7 + $0x4] sm:$0xf]
      %v639 = vld [vmem:[%s7 + $0x8] sm:$0xf]
      %v640 = vld [vmem:[%s7 + $0xc] sm:$0xf]
      %v641 = vld [vmem:[%s8] sm:$0x1]
      %v643 = vlaneseq
      %v644 = vshrl.u32 %v643, 7
      %v645 = vsub.s32 0, %v644
      %v646 = vrot.slane %v641, %v645
      %v652 = vunpack.c.l.b16 %v637
      %v653 = vunpack.c.l.b16 %v638
      %v654 = vunpack.c.l.b16 %v639
      %v655 = vunpack.c.l.b16 %v640
      %v656 = vpack.c.b16 %v653, %v652
      %v657 = vpack.c.b16 %v655, %v654
      %v661 = vsel %vm513, %v636, 0
      %663 = vmatprep.subr.bf16.mxu0 0
      %664 = vmatpush1.bf16.msra.mxu0 %v656
      %665 = vmatprep.subr.bf16.mxu0 0
      %666 = vmatpush1.bf16.msra.mxu0 %v657
      %667 = vmatprep.subr.bf16.mxu0 0
      %668 = vmatpush1.bf16.msra.mxu0 0
      %669 = vmatprep.subr.bf16.mxu0 0
      %670 = vmatpush1.bf16.msra.mxu0 0
      %671 = vmatprep.subr.bf16.mxu0 0
      %672 = vmatpush1.bf16.msra.mxu0 0
      %673 = vmatprep.subr.bf16.mxu0 0
      %674 = vmatpush1.bf16.msra.mxu0 0
      %675 = vmatprep.subr.bf16.mxu0 0
      %676 = vmatpush1.bf16.msra.mxu0 0
      %677 = vmatprep.subr.bf16.mxu0 0
      %678 = vmatpush1.bf16.msra.mxu0 0
      %679 = vmatprep.subr.bf16.mxu0 0
      %680 = vmatpush1.bf16.msra.mxu0 0
      %681 = vmatprep.subr.bf16.mxu0 0
      %682 = vmatpush1.bf16.msra.mxu0 0
      %683 = vmatprep.subr.bf16.mxu0 0
      %684 = vmatpush1.bf16.msra.mxu0 0
      %685 = vmatprep.subr.bf16.mxu0 0
      %686 = vmatpush1.bf16.msra.mxu0 0
      %687 = vmatprep.subr.bf16.mxu0 0
      %688 = vmatpush1.bf16.msra.mxu0 0
      %689 = vmatprep.subr.bf16.mxu0 0
      %690 = vmatpush1.bf16.msra.mxu0 0
      %691 = vmatprep.subr.bf16.mxu0 0
      %692 = vmatpush1.bf16.msra.mxu0 0
      %693 = vmatprep.subr.bf16.mxu0 0
      %694 = vmatpush1.bf16.msra.mxu0 0
      %695 = vmatprep.mubr.bf16.mxu0 0
      %696 = vmatmul.mubr.bf16.gmra.mrb[0].mxu0 %v661
      %v697 = vpop.f32.mrb[0].mxu0
      %v698 = vadd.f32 %v646, %v697
      %v699 = vpop.f32.mrb[0].mxu0
      %v700 = vpop.f32.mrb[0].mxu0
      %v701 = vpop.f32.mrb[0].mxu0
      %702 = vdwg.mxu0
      %v703 = vxor.u32 %v698, 2147483648
      %v704 = vmul.f32 %v703, 1.442695
      %v705 = vpow.pop %v704
      %v706 = vadd.f32 %v705, 1.0
      %v707 = vrcp.pop %v706
      %v708 = vmul.f32 1.0, %v707
      %709 = vst [vmem:[%s402] sm:$0xff] %v708
      %p710 = scmp.lt.s32.totalorder %s23, 1
      %s711 = scalar_select %p710, %s23, 1
      %s712 = smul.addr %s711, 8
      %s713 = scalar_lea.vmem %s9, %s712
      %p714 = scmp.lt.s32.totalorder %s23, 1
      %s715 = scalar_select %p714, %s23, 1
      %s716 = smul.addr %s715, 8
      %s717 = scalar_lea.vmem %s10, %s716
      %p718 = scmp.lt.s32.totalorder %s23, 1
      %s719 = scalar_select %p718, %s23, 1
      %s720 = smul.addr %s719, 8
      %s721 = scalar_lea.vmem %s11, %s720
      // Predicated region
      $region57: #{faster_rcnn_forward.6} parent=55 // pred_check
        %p722 = pneg %p235
      $region58: #{faster_rcnn_forward.6} parent=55 // pred_check_branch
        %724 = sbr.rel (%p722) target = $region60
      $region59: #{faster_rcnn_forward.6} parent=55 // pred_region
        _
      $region60: #{faster_rcnn_forward.6} parent=55 // pred_fallthru
        _
      // Predicated region
      $region61: #{faster_rcnn_forward.6} parent=55 // pred_check
        %p725 = pneg %p261
      $region62: #{faster_rcnn_forward.6} parent=55 // pred_check_branch
        %727 = sbr.rel (%p725) target = $region64
      $region63: #{faster_rcnn_forward.6} parent=55 // pred_region
        _
      $region64: #{faster_rcnn_forward.6} parent=55 // pred_fallthru
        _
      // Predicated region
      $region65: #{faster_rcnn_forward.6} parent=55 // pred_check
        %p728 = pneg %p287
      $region66: #{faster_rcnn_forward.6} parent=55 // pred_check_branch
        %730 = sbr.rel (%p728) target = $region68
      $region67: #{faster_rcnn_forward.6} parent=55 // pred_region
        _
      $region68: #{faster_rcnn_forward.6} parent=55 // pred_fallthru
        _
    $region56: #{faster_rcnn_forward.6} parent=5 // pred_fallthru
      _
    %p731 = scmp.le.s32.totalorder 2, %s18
    // Predicated region
    $region69: #{faster_rcnn_forward.6} parent=5 // pred_check
      %p732 = pneg %p731
    $region70: #{faster_rcnn_forward.6} parent=5 // pred_check_branch
      %734 = sbr.rel (%p732) target = $region72
    $region71: #{faster_rcnn_forward.6} parent=5 // pred_region
      %s735 = ssub.s32 %s18, 2
      // Predicated region
      $region73: #{faster_rcnn_forward.6} parent=71 // pred_check
        %p736 = pneg %p241
      $region74: #{faster_rcnn_forward.6} parent=71 // pred_check_branch
        %738 = sbr.rel (%p736) target = $region76
      $region75: #{faster_rcnn_forward.6} parent=71 // pred_region
        %p739 = scmp.lt.s32.totalorder %s24, 1
        %s740 = scalar_select %p739, %s24, 1
        %s741 = smul.addr %s740, 8
        %s742 = scalar_lea.vmem %s9, %s741
      $region76: #{faster_rcnn_forward.6} parent=71 // pred_fallthru
        _
      // Predicated region
      $region77: #{faster_rcnn_forward.6} parent=71 // pred_check
        %p743 = pneg %p267
      $region78: #{faster_rcnn_forward.6} parent=71 // pred_check_branch
        %745 = sbr.rel (%p743) target = $region80
      $region79: #{faster_rcnn_forward.6} parent=71 // pred_region
        %p746 = scmp.lt.s32.totalorder %s24, 1
        %s747 = scalar_select %p746, %s24, 1
        %s748 = smul.addr %s747, 8
        %s749 = scalar_lea.vmem %s10, %s748
      $region80: #{faster_rcnn_forward.6} parent=71 // pred_fallthru
        _
      // Predicated region
      $region81: #{faster_rcnn_forward.6} parent=71 // pred_check
        %p750 = pneg %p293
      $region82: #{faster_rcnn_forward.6} parent=71 // pred_check_branch
        %752 = sbr.rel (%p750) target = $region84
      $region83: #{faster_rcnn_forward.6} parent=71 // pred_region
        %p753 = scmp.lt.s32.totalorder %s24, 1
        %s754 = scalar_select %p753, %s24, 1
        %s755 = smul.addr %s754, 8
        %s756 = scalar_lea.vmem %s11, %s755
      $region84: #{faster_rcnn_forward.6} parent=71 // pred_fallthru
        _
    $region72: #{faster_rcnn_forward.6} parent=5 // pred_fallthru
      _
  $region6: #{faster_rcnn_forward.6} parent=0 // loop_footer
    %s22 = sadd.s32 1, %s18
  $region7: #{faster_rcnn_forward.6} parent=0 // loop_footer_branch
    %17 = sbr.rel target = $region3
  $region8: #{faster_rcnn_forward.6} parent=0 // loop_exit
    _

// kernel: faster_rcnn_forward.7
$region0: #{faster_rcnn_forward.7}
  #allocation0 [shape = 'u32[]', space=smem, size = 0x4, offset = 0x4, fixed_abs, tag = 'smem constant byte address 0x4 - core index']
  #allocation1 [shape = 'u32[144,128]{1,0:T(1,128)}', space=vmem, size = 0x12000, scoped, tag = 'internal scratch']
  %s0 = inlined_call_operand.vmem [shape: f32[16,1], index: 0, kind: input, shape index: {}]
  %s1 = inlined_call_operand.vmem [shape: f32[16,1], index: 1, kind: input, shape index: {}]
  %s2 = inlined_call_operand.vmem [shape: f32[16,4], index: 2, kind: input, shape index: {}]
  %s3 = inlined_call_operand.vmem [shape: f32[16,4], index: 3, kind: input, shape index: {}]
  %s4 = inlined_call_operand.vmem [shape: f32[16,4], index: 4, kind: input, shape index: {}]
  %s5 = inlined_call_operand.vmem [shape: f32[8,5], index: 5, kind: input, shape index: {}]
  %s6 = inlined_call_operand.vmem [shape: f32[8,5], index: 6, kind: input, shape index: {}]
  %s7 = inlined_call_operand.vmem [shape: f32[8,4], index: 7, kind: input, shape index: {}]
  %s8 = inlined_call_operand.vmem [shape: f32[8,4], index: 8, kind: input, shape index: {}]
  %s9 = inlined_call_operand.vmem [shape: f32[8,4], index: 9, kind: input, shape index: {}, may-alias: {9,10}]
  %s10 = inlined_call_operand.vmem [shape: f32[8,4], index: 10, kind: input, shape index: {}, may-alias: {9,10}]
  %s11 = inlined_call_operand.vmem [shape: f32[16,1], index: 11, kind: input, shape index: {}]
  %s12 = inlined_call_operand.vmem [shape: f32[16,1], index: 12, kind: input, shape index: {}]
  %s13 = inlined_call_operand.vmem [shape: f32[8,4], index: 13, kind: input, shape index: {}]
  %s14 = inlined_call_operand.vmem [shape: f32[8,4], index: 14, kind: input, shape index: {}]
  %s15 = inlined_call_operand.vmem [shape: f32[8,4], index: 15, kind: input, shape index: {}]
  %s16 = inlined_call_operand.vmem [shape: f32[8,4], index: 16, kind: input, shape index: {}]
  %s17 = inlined_call_operand.vmem [shape: f32[1,8], index: 17, kind: output, shape index: {}]
  %s18 = sld [smem:[#allocation0]]
  $region78: #{faster_rcnn_forward.7} parent=0
    _
  %s20 = ssub.s32 1, %s18
  %s21 = scalar_select 0, %s20, %s18
  // Predicated region
  $region2: #{faster_rcnn_forward.7} parent=0 // pred_check
    _
  $region3: #{faster_rcnn_forward.7} parent=0 // pred_check_branch
    %23 = sbr.rel (0) target = $region5
  $region4: #{faster_rcnn_forward.7} parent=0 // pred_region
    _
  $region5: #{faster_rcnn_forward.7} parent=0 // pred_fallthru
    _
  // Predicated region
  $region6: #{faster_rcnn_forward.7} parent=0 // pred_check
    _
  $region7: #{faster_rcnn_forward.7} parent=0 // pred_check_branch
    %25 = sbr.rel (0) target = $region9
  $region8: #{faster_rcnn_forward.7} parent=0 // pred_region
    _
  $region9: #{faster_rcnn_forward.7} parent=0 // pred_fallthru
    _
  // Predicated region
  $region10: #{faster_rcnn_forward.7} parent=0 // pred_check
    _
  $region11: #{faster_rcnn_forward.7} parent=0 // pred_check_branch
    %27 = sbr.rel (0) target = $region13
  $region12: #{faster_rcnn_forward.7} parent=0 // pred_region
    _
  $region13: #{faster_rcnn_forward.7} parent=0 // pred_fallthru
    _
  // Predicated region
  $region14: #{faster_rcnn_forward.7} parent=0 // pred_check
    _
  $region15: #{faster_rcnn_forward.7} parent=0 // pred_check_branch
    %29 = sbr.rel (0) target = $region17
  $region16: #{faster_rcnn_forward.7} parent=0 // pred_region
    _
  $region17: #{faster_rcnn_forward.7} parent=0 // pred_fallthru
    _
  // Predicated region
  $region18: #{faster_rcnn_forward.7} parent=0 // pred_check
    _
  $region19: #{faster_rcnn_forward.7} parent=0 // pred_check_branch
    %31 = sbr.rel (0) target = $region21
  $region20: #{faster_rcnn_forward.7} parent=0 // pred_region
    _
  $region21: #{faster_rcnn_forward.7} parent=0 // pred_fallthru
    _
  // Predicated region
  $region22: #{faster_rcnn_forward.7} parent=0 // pred_check
    _
  $region23: #{faster_rcnn_forward.7} parent=0 // pred_check_branch
    %33 = sbr.rel (0) target = $region25
  $region24: #{faster_rcnn_forward.7} parent=0 // pred_region
    _
  $region25: #{faster_rcnn_forward.7} parent=0 // pred_fallthru
    _
  // Predicated region
  $region26: #{faster_rcnn_forward.7} parent=0 // pred_check
    _
  $region27: #{faster_rcnn_forward.7} parent=0 // pred_check_branch
    %35 = sbr.rel (0) target = $region29
  $region28: #{faster_rcnn_forward.7} parent=0 // pred_region
    _
  $region29: #{faster_rcnn_forward.7} parent=0 // pred_fallthru
    _
  // Predicated region
  $region30: #{faster_rcnn_forward.7} parent=0 // pred_check
    _
  $region31: #{faster_rcnn_forward.7} parent=0 // pred_check_branch
    %37 = sbr.rel (0) target = $region33
  $region32: #{faster_rcnn_forward.7} parent=0 // pred_region
    _
  $region33: #{faster_rcnn_forward.7} parent=0 // pred_fallthru
    _
  // Predicated region
  $region34: #{faster_rcnn_forward.7} parent=0 // pred_check
    _
  $region35: #{faster_rcnn_forward.7} parent=0 // pred_check_branch
    %39 = sbr.rel (0) target = $region37
  $region36: #{faster_rcnn_forward.7} parent=0 // pred_region
    _
  $region37: #{faster_rcnn_forward.7} parent=0 // pred_fallthru
    _
  // Predicated region
  $region38: #{faster_rcnn_forward.7} parent=0 // pred_check
    _
  $region39: #{faster_rcnn_forward.7} parent=0 // pred_check_branch
    %41 = sbr.rel (0) target = $region41
  $region40: #{faster_rcnn_forward.7} parent=0 // pred_region
    _
  $region41: #{faster_rcnn_forward.7} parent=0 // pred_fallthru
    _
  // Predicated region
  $region42: #{faster_rcnn_forward.7} parent=0 // pred_check
    _
  $region43: #{faster_rcnn_forward.7} parent=0 // pred_check_branch
    %43 = sbr.rel (0) target = $region45
  $region44: #{faster_rcnn_forward.7} parent=0 // pred_region
    _
  $region45: #{faster_rcnn_forward.7} parent=0 // pred_fallthru
    _
  // Predicated region
  $region46: #{faster_rcnn_forward.7} parent=0 // pred_check
    _
  $region47: #{faster_rcnn_forward.7} parent=0 // pred_check_branch
    %45 = sbr.rel (0) target = $region49
  $region48: #{faster_rcnn_forward.7} parent=0 // pred_region
    _
  $region49: #{faster_rcnn_forward.7} parent=0 // pred_fallthru
    _
  // Predicated region
  $region50: #{faster_rcnn_forward.7} parent=0 // pred_check
    _
  $region51: #{faster_rcnn_forward.7} parent=0 // pred_check_branch
    %47 = sbr.rel (0) target = $region53
  $region52: #{faster_rcnn_forward.7} parent=0 // pred_region
    _
  $region53: #{faster_rcnn_forward.7} parent=0 // pred_fallthru
    _
  // Predicated region
  $region54: #{faster_rcnn_forward.7} parent=0 // pred_check
    _
  $region55: #{faster_rcnn_forward.7} parent=0 // pred_check_branch
    %49 = sbr.rel (0) target = $region57
  $region56: #{faster_rcnn_forward.7} parent=0 // pred_region
    _
  $region57: #{faster_rcnn_forward.7} parent=0 // pred_fallthru
    _
  // Predicated region
  $region58: #{faster_rcnn_forward.7} parent=0 // pred_check
    _
  $region59: #{faster_rcnn_forward.7} parent=0 // pred_check_branch
    %51 = sbr.rel (0) target = $region61
  $region60: #{faster_rcnn_forward.7} parent=0 // pred_region
    _
  $region61: #{faster_rcnn_forward.7} parent=0 // pred_fallthru
    _
  // Predicated region
  $region62: #{faster_rcnn_forward.7} parent=0 // pred_check
    _
  $region63: #{faster_rcnn_forward.7} parent=0 // pred_check_branch
    %53 = sbr.rel (0) target = $region65
  $region64: #{faster_rcnn_forward.7} parent=0 // pred_region
    _
  $region65: #{faster_rcnn_forward.7} parent=0 // pred_fallthru
    _
  // Predicated region
  $region66: #{faster_rcnn_forward.7} parent=0 // pred_check
    _
  $region67: #{faster_rcnn_forward.7} parent=0 // pred_check_branch
    %55 = sbr.rel (0) target = $region69
  $region68: #{faster_rcnn_forward.7} parent=0 // pred_region
    _
  $region69: #{faster_rcnn_forward.7} parent=0 // pred_fallthru
    _
  %v56 = vld [vmem:[%s0] sm:$0xff]
  %v57 = vld [vmem:[%s0 + $0x8] sm:$0xff]
  %v58 = vld [vmem:[%s1] sm:$0xff]
  %v59 = vld [vmem:[%s1 + $0x8] sm:$0xff]
  %v60 = vmax.f32 %v56, 1e-10
  %v61 = vmax.f32 %v57, 1e-10
  %v62 = vmin.f32 %v60, 1.0
  %v63 = vmin.f32 %v61, 1.0
  %v64 = vlog2.pop %v62
  %v65 = vmul.f32 %v64, 0.6931472
  %v66 = vlog2.pop %v63
  %v67 = vmul.f32 %v66, 0.6931472
  %v68 = vmul.f32 %v58, %v65
  %v69 = vmul.f32 %v59, %v67
  %v70 = vsub.f32 1.0, %v58
  %v71 = vsub.f32 1.0, %v59
  %v72 = vsub.f32 1.0, %v62
  %v73 = vsub.f32 1.0, %v63
  %v74 = vlog2.pop %v72
  %v75 = vmul.f32 %v74, 0.6931472
  %v76 = vlog2.pop %v73
  %v77 = vmul.f32 %v76, 0.6931472
  %v78 = vmul.f32 %v70, %v75
  %v79 = vmul.f32 %v71, %v77
  %v80 = vadd.f32 %v68, %v78
  %v81 = vadd.f32 %v69, %v79
  %v82 = vsub.f32 0.0, %v80
  %v83 = vsub.f32 0.0, %v81
  %v84 = vadd.f32 %v82, 0.0
  %v85 = vadd.f32 %v83, 0.0
  %vm86 = vcmask 7168
  %v87 = vsel %vm86, %v84, 0.0
  %v88 = vsel %vm86, %v85, 0.0
  %v89 = vadd.f32 %v87, %v88
  %v90 = vrot.slane %v89, 4
  %v91 = vadd.f32 %v89, %v90
  %v92 = vrot.slane %v91, 2
  %v93 = vadd.f32 %v91, %v92
  %v94 = vrot.slane %v93, 1
  %v95 = vadd.f32 %v93, %v94
  %v96 = vrcp.pop 16.0
  %v97 = vmul.f32 %v95, %v96
  %v98 = vld [vmem:[%s2] sm:$0xff]
  %v99 = vld [vmem:[%s2 + $0x8] sm:$0xff]
  %v100 = vld [vmem:[%s3] sm:$0xff]
  %v101 = vld [vmem:[%s3 + $0x8] sm:$0xff]
  %v102 = vld [vmem:[%s4] sm:$0xff]
  %v103 = vld [vmem:[%s4 + $0x8] sm:$0xff]
  %v104 = vsub.f32 %v98, %v100
  %v105 = vsub.f32 %v99, %v101
  %v106 = vmul.f32 %v102, %v104
  %v107 = vmul.f32 %v103, %v105
  %v108 = vand.u32 2147483647, %v106
  %v109 = vand.u32 2147483647, %v107
  %vm110 = vcmp.lt.f32.partialorder %v108, 0.11111111
  %vm111 = vcmp.lt.f32.partialorder %v109, 0.11111111
  %v112 = vsel %vm110, 1, 0
  %v113 = vsel %vm111, 1, 0
  %v114 = vcvt.s32.f32 %v112
  %v115 = vcvt.s32.f32 %v113
  %v116 = vmul.f32 %v106, %v106
  %v117 = vmul.f32 %v107, %v107
  %v118 = vmul.f32 %v116, 4.5
  %v119 = vmul.f32 %v117, 4.5
  %v120 = vmul.f32 %v118, %v114
  %v121 = vmul.f32 %v119, %v115
  %v122 = vsub.f32 %v108, 0.055555556
  %v123 = vsub.f32 %v109, 0.055555556
  %v124 = vsub.f32 1.0, %v114
  %v125 = vsub.f32 1.0, %v115
  %v126 = vmul.f32 %v122, %v124
  %v127 = vmul.f32 %v123, %v125
  %v128 = vadd.f32 %v120, %v126
  %v129 = vadd.f32 %v121, %v127
  %v130 = vmul.f32 %v102, %v128
  %v131 = vmul.f32 %v103, %v129
  %vm132 = vcmask 31744
  %v133 = vsel %vm132, %v130, 0.0
  %134 = vadd.xlane.f32.xlu0 %v133
  %v135 = vpop.xlane.xlu0 %134
  %v136 = vsel %vm132, %v131, 0.0
  %137 = vadd.xlane.f32.xlu0 %v136
  %v138 = vpop.xlane.xlu0 %137
  %v139 = vadd.f32 %v135, %v138
  %v140 = vrot.slane %v139, 4
  %v141 = vadd.f32 %v139, %v140
  %v142 = vrot.slane %v141, 2
  %v143 = vadd.f32 %v141, %v142
  %v144 = vrot.slane %v143, 1
  %v145 = vadd.f32 %v143, %v144
  %v146 = vmul.f32 %v145, %v96
  %v147 = vld [vmem:[%s5] sm:$0xff]
  %v148 = vld [vmem:[%s6] sm:$0xff]
  %vm149 = vcmask 39936
  %v150 = vsel %vm149, %v147, -inf
  %151 = vmax.xlane.f32.xlu0 %v150
  %v152 = vpop.xlane.xlu0 %151
  %v153 = vsub.f32 %v147, %v152
  %v154 = vmul.f32 %v153, 1.442695
  %v155 = vpow.pop %v154
  %v156 = vsel %vm149, %v155, 0.0
  %157 = vadd.xlane.f32.xlu0 %v156
  %v158 = vpop.xlane.xlu0 %157
  %v159 = vlog2.pop %v158
  %v160 = vmul.f32 %v159, 0.6931472
  %v161 = vadd.f32 %v160, %v152
  %v162 = vsub.f32 %v147, %v161
  %v163 = vmul.f32 %v148, %v162
  %v164 = vsel %vm149, %v163, 0.0
  %165 = vadd.xlane.f32.xlu0 %v164
  %v166 = vpop.xlane.xlu0 %165
  %v167 = vsub.f32 0.0, %v166
  %v168 = vrot.slane %v167, 4
  %v169 = vadd.f32 %v167, %v168
  %v170 = vrot.slane %v169, 2
  %v171 = vadd.f32 %v169, %v170
  %v172 = vrot.slane %v171, 1
  %v173 = vadd.f32 %v171, %v172
  %v174 = vrcp.pop 8.0
  %v175 = vmul.f32 %v173, %v174
  %v176 = vld [vmem:[%s7] sm:$0xff]
  %v177 = vld [vmem:[%s8] sm:$0xff]
  %v178 = vld [vmem:[%s9] sm:$0xff]
  %v179 = vld [vmem:[%s10] sm:$0xff]
  %v180 = vsub.f32 %v176, %v177
  %v181 = vmul.f32 %v178, %v180
  %v182 = vand.u32 2147483647, %v181
  %vm183 = vcmp.lt.f32.partialorder %v182, 1.0
  %v184 = vsel %vm183, 1, 0
  %v185 = vcvt.s32.f32 %v184
  %v186 = vmul.f32 %v181, %v181
  %v187 = vmul.f32 %v186, 0.5
  %v188 = vmul.f32 %v187, %v185
  %v189 = vsub.f32 %v182, 0.5
  %v190 = vsub.f32 1.0, %v185
  %v191 = vmul.f32 %v189, %v190
  %v192 = vadd.f32 %v188, %v191
  %v193 = vmul.f32 %v179, %v192
  %v194 = vsel %vm132, %v193, 0.0
  %195 = vadd.xlane.f32.xlu0 %v194
  %v196 = vpop.xlane.xlu0 %195
  %v197 = vrot.slane %v196, 4
  %v198 = vadd.f32 %v196, %v197
  %v199 = vrot.slane %v198, 2
  %v200 = vadd.f32 %v198, %v199
  %v201 = vrot.slane %v200, 1
  %v202 = vadd.f32 %v200, %v201
  %v203 = vmul.f32 %v202, %v174
  %v204 = vld [vmem:[%s11] sm:$0xff]
  %v205 = vld [vmem:[%s11 + $0x8] sm:$0xff]
  %v206 = vmax.f32 %v204, 1e-10
  %v207 = vmax.f32 %v205, 1e-10
  %v208 = vmin.f32 %v206, 1.0
  %v209 = vmin.f32 %v207, 1.0
  %v210 = vlog2.pop %v208
  %v211 = vmul.f32 %v210, 0.6931472
  %v212 = vlog2.pop %v209
  %v213 = vmul.f32 %v212, 0.6931472
  %v214 = vsub.f32 0.0, %v211
  %v215 = vsub.f32 0.0, %v213
  %v216 = vadd.f32 %v214, 0.0
  %v217 = vadd.f32 %v215, 0.0
  %v218 = vsel %vm86, %v216, 0.0
  %v219 = vsel %vm86, %v217, 0.0
  %v220 = vadd.f32 %v218, %v219
  %v221 = vrot.slane %v220, 4
  %v222 = vadd.f32 %v220, %v221
  %v223 = vrot.slane %v222, 2
  %v224 = vadd.f32 %v222, %v223
  %v225 = vrot.slane %v224, 1
  %v226 = vadd.f32 %v224, %v225
  %v227 = vmul.f32 %v226, %v96
  %v228 = vld [vmem:[%s13] sm:$0xff]
  %v229 = vld [vmem:[%s14] sm:$0xff]
  %v230 = vadd.f32 %v228, 1e-10
  %v231 = vlog2.pop %v230
  %v232 = vmul.f32 %v231, 0.6931472
  %v233 = vmul.f32 %v229, %v232
  %v234 = vsub.f32 1.0, %v229
  %v235 = vsub.f32 1.0, %v228
  %v236 = vadd.f32 %v235, 1e-10
  %v237 = vlog2.pop %v236
  %v238 = vmul.f32 %v237, 0.6931472
  %v239 = vmul.f32 %v234, %v238
  %v240 = vadd.f32 %v233, %v239
  %v241 = vsub.f32 0.0, %v240
  %vm242 = vcmp.gt.f32.partialorder %v241, 0.5
  %v243 = vsel %vm242, 1, 0
  %v244 = vcvt.s32.f32 %v243
  %v245 = vlaneseq
  %v246 = vand.u32 %v245, 127
  %vm247 = vcmp.eq.s32.totalorder %v246, 0
  %249 = vset.pattern.permute.xlu0 0
  %250 = vperm.xlu0 %249, %v244
  %v251 = vpop.permute.xlu0 %250
  %v253 = vsel %vm247, %v251, 1.0
  %v254 = vmul.f32 %v241, %v253
  %v255 = vsel %vm132, %v254, 0.0
  %256 = vadd.xlane.f32.xlu0 %v255
  %v257 = vpop.xlane.xlu0 %256
  %v258 = vrot.slane %v257, 4
  %v259 = vadd.f32 %v257, %v258
  %v260 = vrot.slane %v259, 2
  %v261 = vadd.f32 %v259, %v260
  %v262 = vrot.slane %v261, 1
  %v263 = vadd.f32 %v261, %v262
  %v264 = vrcp.pop 32.0
  %v265 = vmul.f32 %v263, %v264
  %v266 = vld [vmem:[%s12] sm:$0xff]
  %v267 = vld [vmem:[%s12 + $0x8] sm:$0xff]
  %v268 = vmax.f32 %v266, 1e-10
  %v269 = vmax.f32 %v267, 1e-10
  %v270 = vmin.f32 %v268, 1.0
  %v271 = vmin.f32 %v269, 1.0
  %v272 = vsub.f32 1.0, %v270
  %v273 = vsub.f32 1.0, %v271
  %v274 = vlog2.pop %v272
  %v275 = vmul.f32 %v274, 0.6931472
  %v276 = vlog2.pop %v273
  %v277 = vmul.f32 %v276, 0.6931472
  %v278 = vsub.f32 0.0, %v275
  %v279 = vsub.f32 0.0, %v277
  %v280 = vadd.f32 %v278, 0.0
  %v281 = vadd.f32 %v279, 0.0
  %v282 = vsel %vm86, %v280, 0.0
  %v283 = vsel %vm86, %v281, 0.0
  %v284 = vadd.f32 %v282, %v283
  %v285 = vrot.slane %v284, 4
  %v286 = vadd.f32 %v284, %v285
  %v287 = vrot.slane %v286, 2
  %v288 = vadd.f32 %v286, %v287
  %v289 = vrot.slane %v288, 1
  %v290 = vadd.f32 %v288, %v289
  %v291 = vmul.f32 %v290, %v96
  %v292 = vld [vmem:[%s15] sm:$0xff]
  %v293 = vld [vmem:[%s16] sm:$0xff]
  %v294 = vadd.f32 %v292, 1e-10
  %v295 = vlog2.pop %v294
  %v296 = vmul.f32 %v295, 0.6931472
  %v297 = vmul.f32 %v293, %v296
  %v298 = vsub.f32 1.0, %v293
  %v299 = vsub.f32 1.0, %v292
  %v300 = vadd.f32 %v299, 1e-10
  %v301 = vlog2.pop %v300
  %v302 = vmul.f32 %v301, 0.6931472
  %v303 = vmul.f32 %v298, %v302
  %v304 = vadd.f32 %v297, %v303
  %v305 = vsub.f32 0.0, %v304
  %vm306 = vcmp.gt.f32.partialorder %v305, 0.5
  %v307 = vsel %vm306, 1, 0
  %v308 = vcvt.s32.f32 %v307
  %310 = vset.pattern.permute.xlu0 0
  %311 = vperm.xlu0 %310, %v308
  %v312 = vpop.permute.xlu0 %311
  %v314 = vsel %vm247, %v312, 1.0
  %v315 = vmul.f32 %v305, %v314
  %v316 = vsel %vm132, %v315, 0.0
  %317 = vadd.xlane.f32.xlu0 %v316
  %v318 = vpop.xlane.xlu0 %317
  %v319 = vrot.slane %v318, 4
  %v320 = vadd.f32 %v318, %v319
  %v321 = vrot.slane %v320, 2
  %v322 = vadd.f32 %v320, %v321
  %v323 = vrot.slane %v322, 1
  %v324 = vadd.f32 %v322, %v323
  %v325 = vmul.f32 %v324, %v264
  %327 = vset.pattern.permute.xlu0 0
  %328 = vperm.xlu0 %327, %v97
  %v329 = vpop.permute.xlu0 %328
  %v331 = vsel %vm247, %v329, 0.0
  %v332 = vadd.f32 %v331, 0.0
  %vm333 = vcmp.eq.s32.totalorder %v246, 1
  %v334 = vsel %vm333, %v146, 0.0
  %v335 = vadd.f32 %v332, %v334
  %vm336 = vcmp.eq.s32.totalorder %v246, 2
  %v337 = vsel %vm336, %v175, 0.0
  %v338 = vadd.f32 %v335, %v337
  %vm339 = vcmp.eq.s32.totalorder %v246, 3
  %v340 = vsel %vm339, %v203, 0.0
  %v341 = vadd.f32 %v338, %v340
  %vm342 = vcmp.eq.s32.totalorder %v246, 4
  %344 = vset.pattern.permute.xlu0 0
  %345 = vperm.xlu0 %344, %v227
  %v346 = vpop.permute.xlu0 %345
  %v348 = vsel %vm342, %v346, 0.0
  %v349 = vadd.f32 %v341, %v348
  %vm350 = vcmp.eq.s32.totalorder %v246, 5
  %v351 = vsel %vm350, %v265, 0.0
  %v352 = vadd.f32 %v349, %v351
  %vm353 = vcmp.eq.s32.totalorder %v246, 6
  %355 = vset.pattern.permute.xlu0 0
  %356 = vperm.xlu0 %355, %v291
  %v357 = vpop.permute.xlu0 %356
  %v359 = vsel %vm353, %v357, 0.0
  %v360 = vadd.f32 %v352, %v359
  %vm361 = vcmp.eq.s32.totalorder %v246, 7
  %v362 = vsel %vm361, %v325, 0.0
  %v363 = vadd.f32 %v360, %v362
  %vm364 = vcmask 57344
  %365 = vst.msk [vmem:[%s17] sm:$0x1] %vm364, %v363
  // Predicated region
  $region70: #{faster_rcnn_forward.7} parent=0 // pred_check
    _
  $region71: #{faster_rcnn_forward.7} parent=0 // pred_check_branch
    %367 = sbr.rel (0) target = $region73
  $region72: #{faster_rcnn_forward.7} parent=0 // pred_region
    _
  $region73: #{faster_rcnn_forward.7} parent=0 // pred_fallthru
    _
  // Predicated region
  $region74: #{faster_rcnn_forward.7} parent=0 // pred_check
    _
  $region75: #{faster_rcnn_forward.7} parent=0 // pred_check_branch
    %369 = sbr.rel (0) target = $region77
  $region76: #{faster_rcnn_forward.7} parent=0 // pred_region
    _
  $region77: #{faster_rcnn_forward.7} parent=0 // pred_fallthru
    _

</llo_original>
